<compile_context>
chip_gen: v6e
topology: v6e:2x2x1
jax: 0.10.0
libtpu: 0.0.40
codegen_flags: <defaults>
</compile_context>

<pallas_src>
import jax
import jax.numpy as jnp
from jax.experimental import pallas as pl
from jax.experimental.pallas import tpu as pltpu

D = 512
EPS = 1e-5


# ---------------- in-kernel helpers (all elementwise math in f32) ----------------

def _bn_normalize(z):
    # training-mode BN core: batch mean + biased batch variance over axis 0
    mean = jnp.mean(z, axis=0, keepdims=True)
    zc = z - mean
    var = jnp.mean(zc * zc, axis=0, keepdims=True)
    return zc * jax.lax.rsqrt(var + EPS)


def _bn_full(h, gamma, beta):
    return _bn_normalize(h) * gamma + beta


def _bn_per_half(h, half, gamma, beta):
    # h is (2B, D) = [m-half; f-half]; statistics must be computed per half so the
    # result equals running the encoder on m and f as separate batches.
    top = _bn_normalize(h[:half])
    bot = _bn_normalize(h[half:])
    return jnp.concatenate([top, bot], axis=0) * gamma + beta


def _prelu(h, a):
    return jnp.where(h >= 0, h, a * h)


def _dot_bf16(x_f32, w_bf16):
    # bf16 x bf16 -> f32 accumulate on the MXU
    return jnp.dot(x_f32.astype(jnp.bfloat16), w_bf16,
                   preferred_element_type=jnp.float32)


def _encoder_fused(x, half, w_ref, b2_ref, g_ref, bt_ref, a_ref):
    """Linear -> BN -> PReLU -> Linear -> BN -> PReLU -> Linear on [m; f] rows.

    Biases of the first two Linears are omitted: BN's mean subtraction cancels them.
    """
    h = _dot_bf16(x, w_ref[0])
    h = _prelu(_bn_per_half(h, half, g_ref[0], bt_ref[0]), a_ref[0])
    h = _dot_bf16(h, w_ref[1])
    h = _prelu(_bn_per_half(h, half, g_ref[1], bt_ref[1]), a_ref[1])
    h = _dot_bf16(h, w_ref[2]) + b2_ref[...]
    return h


def _decoder(x, w_ref, b2_ref, g_ref, bt_ref, a_ref):
    h = _dot_bf16(x, w_ref[0])
    h = _prelu(_bn_full(h, g_ref[0], bt_ref[0]), a_ref[0])
    h = _dot_bf16(h, w_ref[1])
    h = _prelu(_bn_full(h, g_ref[1], bt_ref[1]), a_ref[1])
    h = _dot_bf16(h, w_ref[2]) + b2_ref[...]
    return h


# ---------------- the Pallas kernel ----------------

def dnanet_kernel(ae_ref, ad_ref,                       # SMEM: PReLU slopes (2,) each
                  m_ref, f_ref,                         # VMEM: (B, 512) f32 inputs
                  we_ref, be2_ref, ge_ref, bte_ref,     # encoder: W(bf16), last bias, BN gamma/beta
                  wd_ref, bd2_ref, gd_ref, btd_ref,     # decoder: same layout
                  out_ref):                             # (B, 512) f32 output
    B = m_ref.shape[0]
    # Fuse the two encoder passes into one set of matmuls over (2B, 512) rows.
    x = jnp.concatenate([m_ref[...], f_ref[...]], axis=0)            # (2B, D) f32
    genes = _encoder_fused(x, B, we_ref, be2_ref, ge_ref, bte_ref, ae_ref)
    # alpha is None path: elementwise max of m_gene and f_gene
    s_gene = jnp.maximum(genes[:B], genes[B:])
    s = _decoder(s_gene, wd_ref, bd2_ref, gd_ref, btd_ref, ad_ref)
    out_ref[...] = s.astype(out_ref.dtype)


# ---------------- wrapper ----------------

def dnanet_forward(m, f, params):
    (we, be, ge, bte, ae), (wd, bd, gd, btd, ad) = params
    B = m.shape[0]

    # Only the final Linear bias of each block survives BN cancellation.
    be2 = be[2]          # (1, D)
    bd2 = bd[2]          # (1, D)

    vmem = pl.BlockSpec(memory_space=pltpu.MemorySpace.VMEM)
    smem = pl.BlockSpec(memory_space=pltpu.MemorySpace.SMEM)

    # Advisory cost estimate: 3 encoder matmuls on 2B rows + 3 decoder matmuls on B rows.
    flops = 2 * D * D * (3 * 2 * B + 3 * B)
    bytes_accessed = (
        we.size * we.dtype.itemsize + wd.size * wd.dtype.itemsize      # bf16 weights
        + (be2.size + bd2.size + ge.size + bte.size + gd.size + btd.size) * 4
        + (m.size + f.size) * 4 + B * D * 4
    )
    cost = pl.CostEstimate(flops=flops, transcendentals=8 * D,
                           bytes_accessed=bytes_accessed)

    return pl.pallas_call(
        dnanet_kernel,
        out_shape=jax.ShapeDtypeStruct((B, D), jnp.float32),
        in_specs=[smem, smem,                 # prelu slopes
                  vmem, vmem,                 # m, f
                  vmem, vmem, vmem, vmem,     # encoder W, last bias, gamma, beta
                  vmem, vmem, vmem, vmem],    # decoder W, last bias, gamma, beta
        out_specs=vmem,
        cost_estimate=cost,
    )(ae, ad, m, f, we, be2, ge, bte, wd, bd2, gd, btd)


# ---------------- deterministic parameter init (matches shapes in __init__) ----------------

def make_block_params(key):
    """One Sequential(Linear, BN, PReLU, Linear, BN, PReLU, Linear) parameter set.

    Linear weights are stored pre-transposed as (in, out) in bfloat16; everything
    else stays float32.
    """
    ks = jax.random.split(key, 8)
    xavier_std = jnp.sqrt(2.0 / (D + D))        # xavier_normal_ for 512->512
    w = (jax.random.normal(ks[0], (3, D, D), jnp.float32) * xavier_std).astype(jnp.bfloat16)
    b = jax.random.normal(ks[1], (3, 1, D), jnp.float32)                    # init.normal_ (std=1)
    gamma = 1.0 + 0.02 * jax.random.normal(ks[2], (2, 1, D), jnp.float32)   # BN weight ~ N(1, 0.02)
    beta = jnp.zeros((2, 1, D), jnp.float32)                                # BN bias = 0
    a = jnp.full((2,), 0.25, jnp.float32)                                   # PReLU default slope
    return (w, b, gamma, beta, a)


# ---------------- pure-JAX reference (PyTorch-faithful flow, same bf16 weights) ----------------

def _ref_block(x, p):
    w, b, g, bt, a = p
    h = jnp.dot(x.astype(jnp.bfloat16), w[0], preferred_element_type=jnp.float32) + b[0]
    mean = h.mean(0, keepdims=True)
    var = ((h - mean) ** 2).mean(0, keepdims=True)
    h = (h - mean) / jnp.sqrt(var + EPS) * g[0] + bt[0]
    h = jnp.where(h >= 0, h, a[0] * h)
    h = jnp.dot(h.astype(jnp.bfloat16), w[1], preferred_element_type=jnp.float32) + b[1]
    mean = h.mean(0, keepdims=True)
    var = ((h - mean) ** 2).mean(0, keepdims=True)
    h = (h - mean) / jnp.sqrt(var + EPS) * g[1] + bt[1]
    h = jnp.where(h >= 0, h, a[1] * h)
    return jnp.dot(h.astype(jnp.bfloat16), w[2], preferred_element_type=jnp.float32) + b[2]


def dnanet_reference(m, f, params):
    enc, dec = params
    m_gene = _ref_block(m, enc)   # encoder applied to m and f as separate batches
    f_gene = _ref_block(f, enc)
    s_gene = jnp.maximum(m_gene, f_gene)
    return _ref_block(s_gene, dec)


if __name__ == "__main__":
    key = jax.random.PRNGKey(0)
    k_enc, k_dec, k_m, k_f = jax.random.split(key, 4)

    params = (make_block_params(k_enc), make_block_params(k_dec))

    B = 16  # small demo batch; multiple of 8 (f32 sublane tile), encoder sees 2B = 32 rows
    m = jax.random.normal(k_m, (B, D), jnp.float32)
    f = jax.random.normal(k_f, (B, D), jnp.float32)

    out = dnanet_forward(m, f, params)
    out = jax.block_until_ready(out)

    ref = dnanet_reference(m, f, params)
    assert out.shape == (B, D), out.shape
    # Kernel skips the BN-cancelled biases and fuses the two encoder passes; the
    # remaining differences vs. the PyTorch-faithful reference are pure fp rounding.
    assert jnp.allclose(out, ref, atol=3e-2, rtol=3e-2), float(jnp.max(jnp.abs(out - ref)))

    print("KERNEL_OK")
</pallas_src>

<mosaic_0001>
module attributes {stable_mosaic.version = 11 : i64} {
  func.func @dnanet_kernel(%arg0: memref<2xf32, #tpu.memory_space<smem>>, %arg1: memref<2xf32, #tpu.memory_space<smem>>, %arg2: memref<16x512xf32, #tpu.memory_space<vmem>>, %arg3: memref<16x512xf32, #tpu.memory_space<vmem>>, %arg4: memref<3x512x512xbf16, #tpu.memory_space<vmem>>, %arg5: memref<1x512xf32, #tpu.memory_space<vmem>>, %arg6: memref<2x1x512xf32, #tpu.memory_space<vmem>>, %arg7: memref<2x1x512xf32, #tpu.memory_space<vmem>>, %arg8: memref<3x512x512xbf16, #tpu.memory_space<vmem>>, %arg9: memref<1x512xf32, #tpu.memory_space<vmem>>, %arg10: memref<2x1x512xf32, #tpu.memory_space<vmem>>, %arg11: memref<2x1x512xf32, #tpu.memory_space<vmem>>, %arg12: memref<16x512xf32, #tpu.memory_space<vmem>>) attributes {dimension_semantics = [], scalar_prefetch = 0 : i64, scratch_operands = 0 : i64, tpu.core_type = #tpu.core_type<tc>} {
    %c0 = arith.constant 0 : index
    %c0_0 = arith.constant 0 : index
    %0 = vector.load %arg2[%c0, %c0_0] : memref<16x512xf32, #tpu.memory_space<vmem>>, vector<16x512xf32>
    %c0_1 = arith.constant 0 : index
    %c0_2 = arith.constant 0 : index
    %1 = vector.load %arg3[%c0_1, %c0_2] : memref<16x512xf32, #tpu.memory_space<vmem>>, vector<16x512xf32>
    %2 = tpu.concatenate %0, %1 in 0 : vector<16x512xf32>, vector<16x512xf32> -> vector<32x512xf32>
    %c0_3 = arith.constant 0 : index
    %c0_4 = arith.constant 0 : index
    %c0_5 = arith.constant 0 : index
    %3 = vector.load %arg4[%c0_3, %c0_4, %c0_5] : memref<3x512x512xbf16, #tpu.memory_space<vmem>>, vector<1x512x512xbf16>
    %4 = vector.shape_cast %3 : vector<1x512x512xbf16> to vector<512x512xbf16>
    %5 = arith.truncf %2 : vector<32x512xf32> to vector<32x512xbf16>
    %cst = arith.constant dense<0.000000e+00> : vector<32x512xf32>
    %6 = tpu.matmul %5, %4, %cst {dimension_numbers = #tpu.dot_dimension_numbers<[1], [0], [0], [1], [0, 0, 1, 1], [], []>} : vector<32x512xbf16>, vector<512x512xbf16>, vector<32x512xf32> -> vector<32x512xf32>
    %c0_6 = arith.constant 0 : index
    %c0_7 = arith.constant 0 : index
    %c0_8 = arith.constant 0 : index
    %7 = vector.load %arg6[%c0_6, %c0_7, %c0_8] : memref<2x1x512xf32, #tpu.memory_space<vmem>>, vector<1x1x512xf32>
    %8 = vector.shape_cast %7 : vector<1x1x512xf32> to vector<1x512xf32>
    %c0_9 = arith.constant 0 : index
    %c0_10 = arith.constant 0 : index
    %c0_11 = arith.constant 0 : index
    %9 = vector.load %arg7[%c0_9, %c0_10, %c0_11] : memref<2x1x512xf32, #tpu.memory_space<vmem>>, vector<1x1x512xf32>
    %10 = vector.shape_cast %9 : vector<1x1x512xf32> to vector<1x512xf32>
    %11 = vector.extract_strided_slice %6 {offsets = [0, 0], sizes = [16, 512], strides = [1, 1]} : vector<32x512xf32> to vector<16x512xf32>
    %cst_12 = arith.constant dense<0.000000e+00> : vector<512xf32>
    %12 = vector.multi_reduction <add>, %11, %cst_12 [0] : vector<16x512xf32> to vector<512xf32>
    %13 = vector.shape_cast %12 : vector<512xf32> to vector<1x512xf32>
    %cst_13 = arith.constant 1.600000e+01 : f32
    %14 = vector.broadcast %cst_13 : f32 to vector<1x512xf32>
    %15 = arith.divf %13, %14 : vector<1x512xf32>
    %16 = vector.broadcast %15 : vector<1x512xf32> to vector<16x512xf32>
    %17 = arith.subf %11, %16 : vector<16x512xf32>
    %18 = arith.mulf %17, %17 : vector<16x512xf32>
    %cst_14 = arith.constant dense<0.000000e+00> : vector<512xf32>
    %19 = vector.multi_reduction <add>, %18, %cst_14 [0] : vector<16x512xf32> to vector<512xf32>
    %20 = vector.shape_cast %19 : vector<512xf32> to vector<1x512xf32>
    %cst_15 = arith.constant 1.600000e+01 : f32
    %21 = vector.broadcast %cst_15 : f32 to vector<1x512xf32>
    %22 = arith.divf %20, %21 : vector<1x512xf32>
    %cst_16 = arith.constant 9.99999974E-6 : f32
    %23 = vector.broadcast %cst_16 : f32 to vector<1x512xf32>
    %24 = arith.addf %22, %23 : vector<1x512xf32>
    %25 = math.rsqrt %24 : vector<1x512xf32>
    %26 = vector.broadcast %25 : vector<1x512xf32> to vector<16x512xf32>
    %27 = arith.mulf %17, %26 : vector<16x512xf32>
    %28 = vector.extract_strided_slice %6 {offsets = [16, 0], sizes = [16, 512], strides = [1, 1]} : vector<32x512xf32> to vector<16x512xf32>
    %cst_17 = arith.constant dense<0.000000e+00> : vector<512xf32>
    %29 = vector.multi_reduction <add>, %28, %cst_17 [0] : vector<16x512xf32> to vector<512xf32>
    %30 = vector.shape_cast %29 : vector<512xf32> to vector<1x512xf32>
    %cst_18 = arith.constant 1.600000e+01 : f32
    %31 = vector.broadcast %cst_18 : f32 to vector<1x512xf32>
    %32 = arith.divf %30, %31 : vector<1x512xf32>
    %33 = vector.broadcast %32 : vector<1x512xf32> to vector<16x512xf32>
    %34 = arith.subf %28, %33 : vector<16x512xf32>
    %35 = arith.mulf %34, %34 : vector<16x512xf32>
    %cst_19 = arith.constant dense<0.000000e+00> : vector<512xf32>
    %36 = vector.multi_reduction <add>, %35, %cst_19 [0] : vector<16x512xf32> to vector<512xf32>
    %37 = vector.shape_cast %36 : vector<512xf32> to vector<1x512xf32>
    %cst_20 = arith.constant 1.600000e+01 : f32
    %38 = vector.broadcast %cst_20 : f32 to vector<1x512xf32>
    %39 = arith.divf %37, %38 : vector<1x512xf32>
    %cst_21 = arith.constant 9.99999974E-6 : f32
    %40 = vector.broadcast %cst_21 : f32 to vector<1x512xf32>
    %41 = arith.addf %39, %40 : vector<1x512xf32>
    %42 = math.rsqrt %41 : vector<1x512xf32>
    %43 = vector.broadcast %42 : vector<1x512xf32> to vector<16x512xf32>
    %44 = arith.mulf %34, %43 : vector<16x512xf32>
    %45 = tpu.concatenate %27, %44 in 0 : vector<16x512xf32>, vector<16x512xf32> -> vector<32x512xf32>
    %46 = vector.broadcast %8 : vector<1x512xf32> to vector<32x512xf32>
    %47 = arith.mulf %45, %46 : vector<32x512xf32>
    %48 = vector.broadcast %10 : vector<1x512xf32> to vector<32x512xf32>
    %49 = arith.addf %47, %48 : vector<32x512xf32>
    %c0_22 = arith.constant 0 : index
    %50 = memref.load %arg0[%c0_22] : memref<2xf32, #tpu.memory_space<smem>>
    %cst_23 = arith.constant 0.000000e+00 : f32
    %51 = vector.broadcast %cst_23 : f32 to vector<32x512xf32>
    %52 = arith.cmpf oge, %49, %51 : vector<32x512xf32>
    %53 = vector.broadcast %50 : f32 to vector<32x512xf32>
    %54 = arith.mulf %53, %49 : vector<32x512xf32>
    %55 = arith.select %52, %49, %54 : vector<32x512xi1>, vector<32x512xf32>
    %c1 = arith.constant 1 : index
    %c0_24 = arith.constant 0 : index
    %c0_25 = arith.constant 0 : index
    %56 = vector.load %arg4[%c1, %c0_24, %c0_25] : memref<3x512x512xbf16, #tpu.memory_space<vmem>>, vector<1x512x512xbf16>
    %57 = vector.shape_cast %56 : vector<1x512x512xbf16> to vector<512x512xbf16>
    %58 = arith.truncf %55 : vector<32x512xf32> to vector<32x512xbf16>
    %cst_26 = arith.constant dense<0.000000e+00> : vector<32x512xf32>
    %59 = tpu.matmul %58, %57, %cst_26 {dimension_numbers = #tpu.dot_dimension_numbers<[1], [0], [0], [1], [0, 0, 1, 1], [], []>} : vector<32x512xbf16>, vector<512x512xbf16>, vector<32x512xf32> -> vector<32x512xf32>
    %c1_27 = arith.constant 1 : index
    %c0_28 = arith.constant 0 : index
    %c0_29 = arith.constant 0 : index
    %60 = vector.load %arg6[%c1_27, %c0_28, %c0_29] : memref<2x1x512xf32, #tpu.memory_space<vmem>>, vector<1x1x512xf32>
    %61 = vector.shape_cast %60 : vector<1x1x512xf32> to vector<1x512xf32>
    %c1_30 = arith.constant 1 : index
    %c0_31 = arith.constant 0 : index
    %c0_32 = arith.constant 0 : index
    %62 = vector.load %arg7[%c1_30, %c0_31, %c0_32] : memref<2x1x512xf32, #tpu.memory_space<vmem>>, vector<1x1x512xf32>
    %63 = vector.shape_cast %62 : vector<1x1x512xf32> to vector<1x512xf32>
    %64 = vector.extract_strided_slice %59 {offsets = [0, 0], sizes = [16, 512], strides = [1, 1]} : vector<32x512xf32> to vector<16x512xf32>
    %cst_33 = arith.constant dense<0.000000e+00> : vector<512xf32>
    %65 = vector.multi_reduction <add>, %64, %cst_33 [0] : vector<16x512xf32> to vector<512xf32>
    %66 = vector.shape_cast %65 : vector<512xf32> to vector<1x512xf32>
    %cst_34 = arith.constant 1.600000e+01 : f32
    %67 = vector.broadcast %cst_34 : f32 to vector<1x512xf32>
    %68 = arith.divf %66, %67 : vector<1x512xf32>
    %69 = vector.broadcast %68 : vector<1x512xf32> to vector<16x512xf32>
    %70 = arith.subf %64, %69 : vector<16x512xf32>
    %71 = arith.mulf %70, %70 : vector<16x512xf32>
    %cst_35 = arith.constant dense<0.000000e+00> : vector<512xf32>
    %72 = vector.multi_reduction <add>, %71, %cst_35 [0] : vector<16x512xf32> to vector<512xf32>
    %73 = vector.shape_cast %72 : vector<512xf32> to vector<1x512xf32>
    %cst_36 = arith.constant 1.600000e+01 : f32
    %74 = vector.broadcast %cst_36 : f32 to vector<1x512xf32>
    %75 = arith.divf %73, %74 : vector<1x512xf32>
    %cst_37 = arith.constant 9.99999974E-6 : f32
    %76 = vector.broadcast %cst_37 : f32 to vector<1x512xf32>
    %77 = arith.addf %75, %76 : vector<1x512xf32>
    %78 = math.rsqrt %77 : vector<1x512xf32>
    %79 = vector.broadcast %78 : vector<1x512xf32> to vector<16x512xf32>
    %80 = arith.mulf %70, %79 : vector<16x512xf32>
    %81 = vector.extract_strided_slice %59 {offsets = [16, 0], sizes = [16, 512], strides = [1, 1]} : vector<32x512xf32> to vector<16x512xf32>
    %cst_38 = arith.constant dense<0.000000e+00> : vector<512xf32>
    %82 = vector.multi_reduction <add>, %81, %cst_38 [0] : vector<16x512xf32> to vector<512xf32>
    %83 = vector.shape_cast %82 : vector<512xf32> to vector<1x512xf32>
    %cst_39 = arith.constant 1.600000e+01 : f32
    %84 = vector.broadcast %cst_39 : f32 to vector<1x512xf32>
    %85 = arith.divf %83, %84 : vector<1x512xf32>
    %86 = vector.broadcast %85 : vector<1x512xf32> to vector<16x512xf32>
    %87 = arith.subf %81, %86 : vector<16x512xf32>
    %88 = arith.mulf %87, %87 : vector<16x512xf32>
    %cst_40 = arith.constant dense<0.000000e+00> : vector<512xf32>
    %89 = vector.multi_reduction <add>, %88, %cst_40 [0] : vector<16x512xf32> to vector<512xf32>
    %90 = vector.shape_cast %89 : vector<512xf32> to vector<1x512xf32>
    %cst_41 = arith.constant 1.600000e+01 : f32
    %91 = vector.broadcast %cst_41 : f32 to vector<1x512xf32>
    %92 = arith.divf %90, %91 : vector<1x512xf32>
    %cst_42 = arith.constant 9.99999974E-6 : f32
    %93 = vector.broadcast %cst_42 : f32 to vector<1x512xf32>
    %94 = arith.addf %92, %93 : vector<1x512xf32>
    %95 = math.rsqrt %94 : vector<1x512xf32>
    %96 = vector.broadcast %95 : vector<1x512xf32> to vector<16x512xf32>
    %97 = arith.mulf %87, %96 : vector<16x512xf32>
    %98 = tpu.concatenate %80, %97 in 0 : vector<16x512xf32>, vector<16x512xf32> -> vector<32x512xf32>
    %99 = vector.broadcast %61 : vector<1x512xf32> to vector<32x512xf32>
    %100 = arith.mulf %98, %99 : vector<32x512xf32>
    %101 = vector.broadcast %63 : vector<1x512xf32> to vector<32x512xf32>
    %102 = arith.addf %100, %101 : vector<32x512xf32>
    %c1_43 = arith.constant 1 : index
    %103 = memref.load %arg0[%c1_43] : memref<2xf32, #tpu.memory_space<smem>>
    %cst_44 = arith.constant 0.000000e+00 : f32
    %104 = vector.broadcast %cst_44 : f32 to vector<32x512xf32>
    %105 = arith.cmpf oge, %102, %104 : vector<32x512xf32>
    %106 = vector.broadcast %103 : f32 to vector<32x512xf32>
    %107 = arith.mulf %106, %102 : vector<32x512xf32>
    %108 = arith.select %105, %102, %107 : vector<32x512xi1>, vector<32x512xf32>
    %c2 = arith.constant 2 : index
    %c0_45 = arith.constant 0 : index
    %c0_46 = arith.constant 0 : index
    %109 = vector.load %arg4[%c2, %c0_45, %c0_46] : memref<3x512x512xbf16, #tpu.memory_space<vmem>>, vector<1x512x512xbf16>
    %110 = vector.shape_cast %109 : vector<1x512x512xbf16> to vector<512x512xbf16>
    %111 = arith.truncf %108 : vector<32x512xf32> to vector<32x512xbf16>
    %cst_47 = arith.constant dense<0.000000e+00> : vector<32x512xf32>
    %112 = tpu.matmul %111, %110, %cst_47 {dimension_numbers = #tpu.dot_dimension_numbers<[1], [0], [0], [1], [0, 0, 1, 1], [], []>} : vector<32x512xbf16>, vector<512x512xbf16>, vector<32x512xf32> -> vector<32x512xf32>
    %c0_48 = arith.constant 0 : index
    %c0_49 = arith.constant 0 : index
    %113 = vector.load %arg5[%c0_48, %c0_49] : memref<1x512xf32, #tpu.memory_space<vmem>>, vector<1x512xf32>
    %114 = vector.broadcast %113 : vector<1x512xf32> to vector<32x512xf32>
    %115 = arith.addf %112, %114 : vector<32x512xf32>
    %116 = vector.extract_strided_slice %115 {offsets = [0, 0], sizes = [16, 512], strides = [1, 1]} : vector<32x512xf32> to vector<16x512xf32>
    %117 = vector.extract_strided_slice %115 {offsets = [16, 0], sizes = [16, 512], strides = [1, 1]} : vector<32x512xf32> to vector<16x512xf32>
    %118 = arith.maximumf %116, %117 : vector<16x512xf32>
    %c0_50 = arith.constant 0 : index
    %c0_51 = arith.constant 0 : index
    %c0_52 = arith.constant 0 : index
    %119 = vector.load %arg8[%c0_50, %c0_51, %c0_52] : memref<3x512x512xbf16, #tpu.memory_space<vmem>>, vector<1x512x512xbf16>
    %120 = vector.shape_cast %119 : vector<1x512x512xbf16> to vector<512x512xbf16>
    %121 = arith.truncf %118 : vector<16x512xf32> to vector<16x512xbf16>
    %cst_53 = arith.constant dense<0.000000e+00> : vector<16x512xf32>
    %122 = tpu.matmul %121, %120, %cst_53 {dimension_numbers = #tpu.dot_dimension_numbers<[1], [0], [0], [1], [0, 0, 1, 1], [], []>} : vector<16x512xbf16>, vector<512x512xbf16>, vector<16x512xf32> -> vector<16x512xf32>
    %c0_54 = arith.constant 0 : index
    %c0_55 = arith.constant 0 : index
    %c0_56 = arith.constant 0 : index
    %123 = vector.load %arg10[%c0_54, %c0_55, %c0_56] : memref<2x1x512xf32, #tpu.memory_space<vmem>>, vector<1x1x512xf32>
    %124 = vector.shape_cast %123 : vector<1x1x512xf32> to vector<1x512xf32>
    %c0_57 = arith.constant 0 : index
    %c0_58 = arith.constant 0 : index
    %c0_59 = arith.constant 0 : index
    %125 = vector.load %arg11[%c0_57, %c0_58, %c0_59] : memref<2x1x512xf32, #tpu.memory_space<vmem>>, vector<1x1x512xf32>
    %126 = vector.shape_cast %125 : vector<1x1x512xf32> to vector<1x512xf32>
    %cst_60 = arith.constant dense<0.000000e+00> : vector<512xf32>
    %127 = vector.multi_reduction <add>, %122, %cst_60 [0] : vector<16x512xf32> to vector<512xf32>
    %128 = vector.shape_cast %127 : vector<512xf32> to vector<1x512xf32>
    %cst_61 = arith.constant 1.600000e+01 : f32
    %129 = vector.broadcast %cst_61 : f32 to vector<1x512xf32>
    %130 = arith.divf %128, %129 : vector<1x512xf32>
    %131 = vector.broadcast %130 : vector<1x512xf32> to vector<16x512xf32>
    %132 = arith.subf %122, %131 : vector<16x512xf32>
    %133 = arith.mulf %132, %132 : vector<16x512xf32>
    %cst_62 = arith.constant dense<0.000000e+00> : vector<512xf32>
    %134 = vector.multi_reduction <add>, %133, %cst_62 [0] : vector<16x512xf32> to vector<512xf32>
    %135 = vector.shape_cast %134 : vector<512xf32> to vector<1x512xf32>
    %cst_63 = arith.constant 1.600000e+01 : f32
    %136 = vector.broadcast %cst_63 : f32 to vector<1x512xf32>
    %137 = arith.divf %135, %136 : vector<1x512xf32>
    %cst_64 = arith.constant 9.99999974E-6 : f32
    %138 = vector.broadcast %cst_64 : f32 to vector<1x512xf32>
    %139 = arith.addf %137, %138 : vector<1x512xf32>
    %140 = math.rsqrt %139 : vector<1x512xf32>
    %141 = vector.broadcast %140 : vector<1x512xf32> to vector<16x512xf32>
    %142 = arith.mulf %132, %141 : vector<16x512xf32>
    %143 = vector.broadcast %124 : vector<1x512xf32> to vector<16x512xf32>
    %144 = arith.mulf %142, %143 : vector<16x512xf32>
    %145 = vector.broadcast %126 : vector<1x512xf32> to vector<16x512xf32>
    %146 = arith.addf %144, %145 : vector<16x512xf32>
    %c0_65 = arith.constant 0 : index
    %147 = memref.load %arg1[%c0_65] : memref<2xf32, #tpu.memory_space<smem>>
    %cst_66 = arith.constant 0.000000e+00 : f32
    %148 = vector.broadcast %cst_66 : f32 to vector<16x512xf32>
    %149 = arith.cmpf oge, %146, %148 : vector<16x512xf32>
    %150 = vector.broadcast %147 : f32 to vector<16x512xf32>
    %151 = arith.mulf %150, %146 : vector<16x512xf32>
    %152 = arith.select %149, %146, %151 : vector<16x512xi1>, vector<16x512xf32>
    %c1_67 = arith.constant 1 : index
    %c0_68 = arith.constant 0 : index
    %c0_69 = arith.constant 0 : index
    %153 = vector.load %arg8[%c1_67, %c0_68, %c0_69] : memref<3x512x512xbf16, #tpu.memory_space<vmem>>, vector<1x512x512xbf16>
    %154 = vector.shape_cast %153 : vector<1x512x512xbf16> to vector<512x512xbf16>
    %155 = arith.truncf %152 : vector<16x512xf32> to vector<16x512xbf16>
    %cst_70 = arith.constant dense<0.000000e+00> : vector<16x512xf32>
    %156 = tpu.matmul %155, %154, %cst_70 {dimension_numbers = #tpu.dot_dimension_numbers<[1], [0], [0], [1], [0, 0, 1, 1], [], []>} : vector<16x512xbf16>, vector<512x512xbf16>, vector<16x512xf32> -> vector<16x512xf32>
    %c1_71 = arith.constant 1 : index
    %c0_72 = arith.constant 0 : index
    %c0_73 = arith.constant 0 : index
    %157 = vector.load %arg10[%c1_71, %c0_72, %c0_73] : memref<2x1x512xf32, #tpu.memory_space<vmem>>, vector<1x1x512xf32>
    %158 = vector.shape_cast %157 : vector<1x1x512xf32> to vector<1x512xf32>
    %c1_74 = arith.constant 1 : index
    %c0_75 = arith.constant 0 : index
    %c0_76 = arith.constant 0 : index
    %159 = vector.load %arg11[%c1_74, %c0_75, %c0_76] : memref<2x1x512xf32, #tpu.memory_space<vmem>>, vector<1x1x512xf32>
    %160 = vector.shape_cast %159 : vector<1x1x512xf32> to vector<1x512xf32>
    %cst_77 = arith.constant dense<0.000000e+00> : vector<512xf32>
    %161 = vector.multi_reduction <add>, %156, %cst_77 [0] : vector<16x512xf32> to vector<512xf32>
    %162 = vector.shape_cast %161 : vector<512xf32> to vector<1x512xf32>
    %cst_78 = arith.constant 1.600000e+01 : f32
    %163 = vector.broadcast %cst_78 : f32 to vector<1x512xf32>
    %164 = arith.divf %162, %163 : vector<1x512xf32>
    %165 = vector.broadcast %164 : vector<1x512xf32> to vector<16x512xf32>
    %166 = arith.subf %156, %165 : vector<16x512xf32>
    %167 = arith.mulf %166, %166 : vector<16x512xf32>
    %cst_79 = arith.constant dense<0.000000e+00> : vector<512xf32>
    %168 = vector.multi_reduction <add>, %167, %cst_79 [0] : vector<16x512xf32> to vector<512xf32>
    %169 = vector.shape_cast %168 : vector<512xf32> to vector<1x512xf32>
    %cst_80 = arith.constant 1.600000e+01 : f32
    %170 = vector.broadcast %cst_80 : f32 to vector<1x512xf32>
    %171 = arith.divf %169, %170 : vector<1x512xf32>
    %cst_81 = arith.constant 9.99999974E-6 : f32
    %172 = vector.broadcast %cst_81 : f32 to vector<1x512xf32>
    %173 = arith.addf %171, %172 : vector<1x512xf32>
    %174 = math.rsqrt %173 : vector<1x512xf32>
    %175 = vector.broadcast %174 : vector<1x512xf32> to vector<16x512xf32>
    %176 = arith.mulf %166, %175 : vector<16x512xf32>
    %177 = vector.broadcast %158 : vector<1x512xf32> to vector<16x512xf32>
    %178 = arith.mulf %176, %177 : vector<16x512xf32>
    %179 = vector.broadcast %160 : vector<1x512xf32> to vector<16x512xf32>
    %180 = arith.addf %178, %179 : vector<16x512xf32>
    %c1_82 = arith.constant 1 : index
    %181 = memref.load %arg1[%c1_82] : memref<2xf32, #tpu.memory_space<smem>>
    %cst_83 = arith.constant 0.000000e+00 : f32
    %182 = vector.broadcast %cst_83 : f32 to vector<16x512xf32>
    %183 = arith.cmpf oge, %180, %182 : vector<16x512xf32>
    %184 = vector.broadcast %181 : f32 to vector<16x512xf32>
    %185 = arith.mulf %184, %180 : vector<16x512xf32>
    %186 = arith.select %183, %180, %185 : vector<16x512xi1>, vector<16x512xf32>
    %c2_84 = arith.constant 2 : index
    %c0_85 = arith.constant 0 : index
    %c0_86 = arith.constant 0 : index
    %187 = vector.load %arg8[%c2_84, %c0_85, %c0_86] : memref<3x512x512xbf16, #tpu.memory_space<vmem>>, vector<1x512x512xbf16>
    %188 = vector.shape_cast %187 : vector<1x512x512xbf16> to vector<512x512xbf16>
    %189 = arith.truncf %186 : vector<16x512xf32> to vector<16x512xbf16>
    %cst_87 = arith.constant dense<0.000000e+00> : vector<16x512xf32>
    %190 = tpu.matmul %189, %188, %cst_87 {dimension_numbers = #tpu.dot_dimension_numbers<[1], [0], [0], [1], [0, 0, 1, 1], [], []>} : vector<16x512xbf16>, vector<512x512xbf16>, vector<16x512xf32> -> vector<16x512xf32>
    %c0_88 = arith.constant 0 : index
    %c0_89 = arith.constant 0 : index
    %191 = vector.load %arg9[%c0_88, %c0_89] : memref<1x512xf32, #tpu.memory_space<vmem>>, vector<1x512xf32>
    %192 = vector.broadcast %191 : vector<1x512xf32> to vector<16x512xf32>
    %193 = arith.addf %190, %192 : vector<16x512xf32>
    %c0_90 = arith.constant 0 : index
    %c0_91 = arith.constant 0 : index
    %194 = vector.load %arg12[%c0_90, %c0_91] : memref<16x512xf32, #tpu.memory_space<vmem>>, vector<16x512xf32>
    tpu.vector_store %arg12[%c0_90, %c0_91], %193 {strides = array<i32>} : memref<16x512xf32, #tpu.memory_space<vmem>>, vector<16x512xf32>,
    return
  }
}

</mosaic_0001>

<llo_original>
// kernel: tpu_custom_call.1
$region0: #{tpu_custom_call.1}
  #allocation0 [shape = 'u32[]', space=smem, size = 0x4, offset = 0x4, fixed_abs, tag = 'smem constant byte address 0x4 - core index']
  #allocation1 [shape = 'u32[144,128]{1,0:T(1,128)}', space=vmem, size = 0x12000, scoped, tag = 'internal scratch']
  %s0 = inlined_call_operand.hbm [shape: f32[2], index: 0, kind: input, shape index: {}]
  %s1 = inlined_call_operand.hbm [shape: f32[2], index: 1, kind: input, shape index: {}]
  %s2 = inlined_call_operand.hbm [shape: f32[16,512], index: 2, kind: input, shape index: {}]
  %s3 = inlined_call_operand.hbm [shape: f32[16,512], index: 3, kind: input, shape index: {}]
  %s4 = inlined_call_operand.hbm [shape: bf16[3,512,512], index: 4, kind: input, shape index: {}]
  %s5 = inlined_call_operand.hbm [shape: f32[1,512], index: 5, kind: input, shape index: {}]
  %s6 = inlined_call_operand.hbm [shape: f32[2,1,512], index: 6, kind: input, shape index: {}]
  %s7 = inlined_call_operand.hbm [shape: f32[2,1,512], index: 7, kind: input, shape index: {}]
  %s8 = inlined_call_operand.hbm [shape: bf16[3,512,512], index: 8, kind: input, shape index: {}]
  %s9 = inlined_call_operand.hbm [shape: f32[1,512], index: 9, kind: input, shape index: {}]
  %s10 = inlined_call_operand.hbm [shape: f32[2,1,512], index: 10, kind: input, shape index: {}]
  %s11 = inlined_call_operand.hbm [shape: f32[2,1,512], index: 11, kind: input, shape index: {}]
  %s12 = inlined_call_operand.hbm [shape: f32[16,512], index: 12, kind: output, shape index: {}]
  %s13 = sld [smem:[#allocation0]]
  $region106: #{tpu_custom_call.1} parent=0
    _
  %s15 = ssub.s32 1, %s13
  %s16 = scalar_select 0, %s15, %s13
  $region1: #{tpu_custom_call.1} parent=0
    #allocation2 [shape = 'u8[512]{0}', space=smem, size = 0x200, scoped, tag = 'input window, operand 0, single buffered']
    #allocation3 [shape = 's32[1]{0}', space=sflag, size = 0x4, scoped, tag = 'scoped memory for tpu_custom_call.1']
    #allocation4 [shape = 's32[1]{0}', space=sflag, size = 0x4, scoped, tag = 'scoped memory for tpu_custom_call.1']
    #allocation5 [shape = 's32[1]{0}', space=sflag, size = 0x4, scoped, tag = 'scoped memory for tpu_custom_call.1']
    #allocation6 [shape = 'u8[512]{0}', space=smem, size = 0x200, scoped, tag = 'input window, operand 1, single buffered']
    #allocation7 [shape = 's32[1]{0}', space=sflag, size = 0x4, scoped, tag = 'scoped memory for tpu_custom_call.1']
    #allocation8 [shape = 'u8[32768]{0}', space=vmem, size = 0x8000, scoped, tag = 'input window, operand 2, single buffered']
    #allocation9 [shape = 'u8[32768]{0}', space=vmem, size = 0x8000, scoped, tag = 'input window, operand 3, single buffered']
    #allocation10 [shape = 's32[1]{0}', space=sflag, size = 0x4, scoped, tag = 'scoped memory for tpu_custom_call.1']
    #allocation11 [shape = 'u8[1572864]{0}', space=vmem, size = 0x180000, scoped, tag = 'input window, operand 4, single buffered']
    #allocation12 [shape = 'u8[2048]{0}', space=vmem, size = 0x800, scoped, tag = 'input window, operand 5, single buffered']
    #allocation13 [shape = 's32[1]{0}', space=sflag, size = 0x4, scoped, tag = 'scoped memory for tpu_custom_call.1']
    #allocation14 [shape = 'u8[4096]{0}', space=vmem, size = 0x1000, scoped, tag = 'input window, operand 6, single buffered']
    #allocation15 [shape = 'u8[4096]{0}', space=vmem, size = 0x1000, scoped, tag = 'input window, operand 7, single buffered']
    #allocation16 [shape = 's32[1]{0}', space=sflag, size = 0x4, scoped, tag = 'scoped memory for tpu_custom_call.1']
    #allocation17 [shape = 'u8[1572864]{0}', space=vmem, size = 0x180000, scoped, tag = 'input window, operand 8, single buffered']
    #allocation18 [shape = 'u8[2048]{0}', space=vmem, size = 0x800, scoped, tag = 'input window, operand 9, single buffered']
    #allocation19 [shape = 's32[1]{0}', space=sflag, size = 0x4, scoped, tag = 'scoped memory for tpu_custom_call.1']
    #allocation20 [shape = 'u8[4096]{0}', space=vmem, size = 0x1000, scoped, tag = 'input window, operand 10, single buffered']
    #allocation21 [shape = 'u8[4096]{0}', space=vmem, size = 0x1000, scoped, tag = 'input window, operand 11, single buffered']
    #allocation22 [shape = 's32[1]{0}', space=sflag, size = 0x4, scoped, tag = 'scoped memory for tpu_custom_call.1']
    #allocation23 [shape = 'u8[32768]{0}', space=vmem, size = 0x8000, scoped, tag = 'output window, operand 0, single buffered']
    %17 = vsyncpa [#allocation5], 0
    %18 = vsyncpa [#allocation7], 0
    %19 = vsyncpa [#allocation3], 0
    %20 = vsyncpa [#allocation10], 0
    %21 = vsyncpa [#allocation13], 0
    %22 = vsyncpa [#allocation16], 0
    %23 = vsyncpa [#allocation19], 0
    %24 = vsyncpa [#allocation22], 0
    %25 = vsyncpa [#allocation4], 0
    // Predicated region
    $region2: #{tpu_custom_call.1} parent=1 // pred_check
      _
    $region3: #{tpu_custom_call.1} parent=1 // pred_check_branch
      %27 = sbr.rel (0) target = $region5
    $region4: #{tpu_custom_call.1} parent=1 // pred_region
      %s29 = ssub.s32 16, 16
      %30 = vsyncadd [#allocation5], %s29
      %33 = dma.hbm_to_smem %s0, 16, [#allocation2], [#allocation5]
    $region5: #{tpu_custom_call.1} parent=1 // pred_fallthru
      _
    // Predicated region
    $region6: #{tpu_custom_call.1} parent=1 // pred_check
      _
    $region7: #{tpu_custom_call.1} parent=1 // pred_check_branch
      %35 = sbr.rel (0) target = $region9
    $region8: #{tpu_custom_call.1} parent=1 // pred_region
      %s37 = ssub.s32 16, 16
      %38 = vsyncadd [#allocation7], %s37
      %41 = dma.hbm_to_smem %s1, 16, [#allocation6], [#allocation7]
    $region9: #{tpu_custom_call.1} parent=1 // pred_fallthru
      _
    // Predicated region
    $region10: #{tpu_custom_call.1} parent=1 // pred_check
      _
    $region11: #{tpu_custom_call.1} parent=1 // pred_check_branch
      %43 = sbr.rel (0) target = $region13
    $region12: #{tpu_custom_call.1} parent=1 // pred_region
      %s45 = ssub.s32 1024, 1024
      %46 = vsyncadd [#allocation3], %s45
      %s47 = sshll.u32 [#allocation8], 4
      %s48 = int_to_ptr.vmem [resolvable:$true] %s47
      %53 = dma.hbm_to_vmem [thread:$0]  %s2, 1024, %s48, [#allocation3], 512, 512, 32
    $region13: #{tpu_custom_call.1} parent=1 // pred_fallthru
      _
    // Predicated region
    $region14: #{tpu_custom_call.1} parent=1 // pred_check
      _
    $region15: #{tpu_custom_call.1} parent=1 // pred_check_branch
      %55 = sbr.rel (0) target = $region17
    $region16: #{tpu_custom_call.1} parent=1 // pred_region
      %s57 = ssub.s32 1024, 1024
      %58 = vsyncadd [#allocation10], %s57
      %s59 = sshll.u32 [#allocation9], 4
      %s60 = int_to_ptr.vmem [resolvable:$true] %s59
      %65 = dma.hbm_to_vmem [thread:$0]  %s3, 1024, %s60, [#allocation10], 512, 512, 32
    $region17: #{tpu_custom_call.1} parent=1 // pred_fallthru
      _
    // Predicated region
    $region18: #{tpu_custom_call.1} parent=1 // pred_check
      _
    $region19: #{tpu_custom_call.1} parent=1 // pred_check_branch
      %67 = sbr.rel (0) target = $region21
    $region20: #{tpu_custom_call.1} parent=1 // pred_region
      %s69 = ssub.s32 49152, 49152
      %70 = vsyncadd [#allocation10], %s69
      %s71 = sshll.u32 [#allocation11], 4
      %s72 = int_to_ptr.vmem [resolvable:$true] %s71
      %77 = dma.hbm_to_vmem [thread:$0]  %s4, 49152, %s72, [#allocation10], 256, 256, 16
    $region21: #{tpu_custom_call.1} parent=1 // pred_fallthru
      _
    // Predicated region
    $region22: #{tpu_custom_call.1} parent=1 // pred_check
      _
    $region23: #{tpu_custom_call.1} parent=1 // pred_check_branch
      %79 = sbr.rel (0) target = $region25
    $region24: #{tpu_custom_call.1} parent=1 // pred_region
      %s81 = ssub.s32 64, 64
      %82 = vsyncadd [#allocation13], %s81
      %s84 = sshll.u32 [#allocation12], 4
      %s85 = int_to_ptr.vmem [resolvable:$true] %s84
      %87 = dma.hbm_to_vmem [thread:$0]  %s5, 64, %s85, [#allocation13]
    $region25: #{tpu_custom_call.1} parent=1 // pred_fallthru
      _
    // Predicated region
    $region26: #{tpu_custom_call.1} parent=1 // pred_check
      _
    $region27: #{tpu_custom_call.1} parent=1 // pred_check_branch
      %89 = sbr.rel (0) target = $region29
    $region28: #{tpu_custom_call.1} parent=1 // pred_region
      %s91 = ssub.s32 128, 128
      %92 = vsyncadd [#allocation13], %s91
      %s93 = sshll.u32 [#allocation14], 4
      %s94 = int_to_ptr.vmem [resolvable:$true] %s93
      %99 = dma.hbm_to_vmem [thread:$0]  %s6, 128, %s94, [#allocation13], 64, 64, 4
    $region29: #{tpu_custom_call.1} parent=1 // pred_fallthru
      _
    // Predicated region
    $region30: #{tpu_custom_call.1} parent=1 // pred_check
      _
    $region31: #{tpu_custom_call.1} parent=1 // pred_check_branch
      %101 = sbr.rel (0) target = $region33
    $region32: #{tpu_custom_call.1} parent=1 // pred_region
      %s103 = ssub.s32 128, 128
      %104 = vsyncadd [#allocation16], %s103
      %s105 = sshll.u32 [#allocation15], 4
      %s106 = int_to_ptr.vmem [resolvable:$true] %s105
      %111 = dma.hbm_to_vmem [thread:$0]  %s7, 128, %s106, [#allocation16], 64, 64, 4
    $region33: #{tpu_custom_call.1} parent=1 // pred_fallthru
      _
    // Predicated region
    $region34: #{tpu_custom_call.1} parent=1 // pred_check
      _
    $region35: #{tpu_custom_call.1} parent=1 // pred_check_branch
      %113 = sbr.rel (0) target = $region37
    $region36: #{tpu_custom_call.1} parent=1 // pred_region
      %s115 = ssub.s32 49152, 49152
      %116 = vsyncadd [#allocation16], %s115
      %s117 = sshll.u32 [#allocation17], 4
      %s118 = int_to_ptr.vmem [resolvable:$true] %s117
      %123 = dma.hbm_to_vmem [thread:$0]  %s8, 49152, %s118, [#allocation16], 256, 256, 16
    $region37: #{tpu_custom_call.1} parent=1 // pred_fallthru
      _
    // Predicated region
    $region38: #{tpu_custom_call.1} parent=1 // pred_check
      _
    $region39: #{tpu_custom_call.1} parent=1 // pred_check_branch
      %125 = sbr.rel (0) target = $region41
    $region40: #{tpu_custom_call.1} parent=1 // pred_region
      %s127 = ssub.s32 64, 64
      %128 = vsyncadd [#allocation19], %s127
      %s130 = sshll.u32 [#allocation18], 4
      %s131 = int_to_ptr.vmem [resolvable:$true] %s130
      %133 = dma.hbm_to_vmem [thread:$0]  %s9, 64, %s131, [#allocation19]
    $region41: #{tpu_custom_call.1} parent=1 // pred_fallthru
      _
    // Predicated region
    $region42: #{tpu_custom_call.1} parent=1 // pred_check
      _
    $region43: #{tpu_custom_call.1} parent=1 // pred_check_branch
      %135 = sbr.rel (0) target = $region45
    $region44: #{tpu_custom_call.1} parent=1 // pred_region
      %s137 = ssub.s32 128, 128
      %138 = vsyncadd [#allocation19], %s137
      %s139 = sshll.u32 [#allocation20], 4
      %s140 = int_to_ptr.vmem [resolvable:$true] %s139
      %145 = dma.hbm_to_vmem [thread:$0]  %s10, 128, %s140, [#allocation19], 64, 64, 4
    $region45: #{tpu_custom_call.1} parent=1 // pred_fallthru
      _
    // Predicated region
    $region46: #{tpu_custom_call.1} parent=1 // pred_check
      _
    $region47: #{tpu_custom_call.1} parent=1 // pred_check_branch
      %147 = sbr.rel (0) target = $region49
    $region48: #{tpu_custom_call.1} parent=1 // pred_region
      %s149 = ssub.s32 128, 128
      %150 = vsyncadd [#allocation22], %s149
      %s151 = sshll.u32 [#allocation21], 4
      %s152 = int_to_ptr.vmem [resolvable:$true] %s151
      %157 = dma.hbm_to_vmem [thread:$0]  %s11, 128, %s152, [#allocation22], 64, 64, 4
    $region49: #{tpu_custom_call.1} parent=1 // pred_fallthru
      _
    // Predicated region
    $region50: #{tpu_custom_call.1} parent=1 // pred_check
      _
    $region51: #{tpu_custom_call.1} parent=1 // pred_check_branch
      %159 = sbr.rel (0) target = $region53
    $region52: #{tpu_custom_call.1} parent=1 // pred_region
      %160 = dma.done [#allocation5], 16
    $region53: #{tpu_custom_call.1} parent=1 // pred_fallthru
      _
    // Predicated region
    $region54: #{tpu_custom_call.1} parent=1 // pred_check
      _
    $region55: #{tpu_custom_call.1} parent=1 // pred_check_branch
      %162 = sbr.rel (0) target = $region57
    $region56: #{tpu_custom_call.1} parent=1 // pred_region
      %163 = dma.done [#allocation7], 16
    $region57: #{tpu_custom_call.1} parent=1 // pred_fallthru
      _
    // Predicated region
    $region58: #{tpu_custom_call.1} parent=1 // pred_check
      _
    $region59: #{tpu_custom_call.1} parent=1 // pred_check_branch
      %165 = sbr.rel (0) target = $region61
    $region60: #{tpu_custom_call.1} parent=1 // pred_region
      %166 = dma.done [#allocation3], 1024
    $region61: #{tpu_custom_call.1} parent=1 // pred_fallthru
      _
    // Predicated region
    $region62: #{tpu_custom_call.1} parent=1 // pred_check
      _
    $region63: #{tpu_custom_call.1} parent=1 // pred_check_branch
      %168 = sbr.rel (0) target = $region65
    $region64: #{tpu_custom_call.1} parent=1 // pred_region
      %169 = dma.done [#allocation10], 1024
    $region65: #{tpu_custom_call.1} parent=1 // pred_fallthru
      _
    // Predicated region
    $region66: #{tpu_custom_call.1} parent=1 // pred_check
      _
    $region67: #{tpu_custom_call.1} parent=1 // pred_check_branch
      %171 = sbr.rel (0) target = $region69
    $region68: #{tpu_custom_call.1} parent=1 // pred_region
      %172 = dma.done [#allocation10], 49152
    $region69: #{tpu_custom_call.1} parent=1 // pred_fallthru
      _
    // Predicated region
    $region70: #{tpu_custom_call.1} parent=1 // pred_check
      _
    $region71: #{tpu_custom_call.1} parent=1 // pred_check_branch
      %174 = sbr.rel (0) target = $region73
    $region72: #{tpu_custom_call.1} parent=1 // pred_region
      %175 = dma.done [#allocation13], 64
    $region73: #{tpu_custom_call.1} parent=1 // pred_fallthru
      _
    // Predicated region
    $region74: #{tpu_custom_call.1} parent=1 // pred_check
      _
    $region75: #{tpu_custom_call.1} parent=1 // pred_check_branch
      %177 = sbr.rel (0) target = $region77
    $region76: #{tpu_custom_call.1} parent=1 // pred_region
      %178 = dma.done [#allocation13], 128
    $region77: #{tpu_custom_call.1} parent=1 // pred_fallthru
      _
    // Predicated region
    $region78: #{tpu_custom_call.1} parent=1 // pred_check
      _
    $region79: #{tpu_custom_call.1} parent=1 // pred_check_branch
      %180 = sbr.rel (0) target = $region81
    $region80: #{tpu_custom_call.1} parent=1 // pred_region
      %181 = dma.done [#allocation16], 128
    $region81: #{tpu_custom_call.1} parent=1 // pred_fallthru
      _
    // Predicated region
    $region82: #{tpu_custom_call.1} parent=1 // pred_check
      _
    $region83: #{tpu_custom_call.1} parent=1 // pred_check_branch
      %183 = sbr.rel (0) target = $region85
    $region84: #{tpu_custom_call.1} parent=1 // pred_region
      %184 = dma.done [#allocation16], 49152
    $region85: #{tpu_custom_call.1} parent=1 // pred_fallthru
      _
    // Predicated region
    $region86: #{tpu_custom_call.1} parent=1 // pred_check
      _
    $region87: #{tpu_custom_call.1} parent=1 // pred_check_branch
      %186 = sbr.rel (0) target = $region89
    $region88: #{tpu_custom_call.1} parent=1 // pred_region
      %187 = dma.done [#allocation19], 64
    $region89: #{tpu_custom_call.1} parent=1 // pred_fallthru
      _
    // Predicated region
    $region90: #{tpu_custom_call.1} parent=1 // pred_check
      _
    $region91: #{tpu_custom_call.1} parent=1 // pred_check_branch
      %189 = sbr.rel (0) target = $region93
    $region92: #{tpu_custom_call.1} parent=1 // pred_region
      %190 = dma.done [#allocation19], 128
    $region93: #{tpu_custom_call.1} parent=1 // pred_fallthru
      _
    // Predicated region
    $region94: #{tpu_custom_call.1} parent=1 // pred_check
      _
    $region95: #{tpu_custom_call.1} parent=1 // pred_check_branch
      %192 = sbr.rel (0) target = $region97
    $region96: #{tpu_custom_call.1} parent=1 // pred_region
      %193 = dma.done [#allocation22], 128
    $region97: #{tpu_custom_call.1} parent=1 // pred_fallthru
      _
    %194 = sfence
    %v195 = vld [vmem:[#allocation8] sm:$0xff]
    %v196 = vld [vmem:[#allocation8 + $0x8] sm:$0xff]
    %v197 = vld [vmem:[#allocation8 + $0x10] sm:$0xff]
    %v198 = vld [vmem:[#allocation8 + $0x18] sm:$0xff]
    %v199 = vld [vmem:[#allocation8 + $0x20] sm:$0xff]
    %v200 = vld [vmem:[#allocation8 + $0x28] sm:$0xff]
    %v201 = vld [vmem:[#allocation8 + $0x30] sm:$0xff]
    %v202 = vld [vmem:[#allocation8 + $0x38] sm:$0xff]
    %v203 = vld [vmem:[#allocation9] sm:$0xff]
    %v204 = vld [vmem:[#allocation9 + $0x8] sm:$0xff]
    %v205 = vld [vmem:[#allocation9 + $0x10] sm:$0xff]
    %v206 = vld [vmem:[#allocation9 + $0x18] sm:$0xff]
    %v207 = vld [vmem:[#allocation9 + $0x20] sm:$0xff]
    %v208 = vld [vmem:[#allocation9 + $0x28] sm:$0xff]
    %v209 = vld [vmem:[#allocation9 + $0x30] sm:$0xff]
    %v210 = vld [vmem:[#allocation9 + $0x38] sm:$0xff]
    %v211 = vld [vmem:[#allocation11] sm:$0xff]
    %v212 = vld [vmem:[#allocation11 + $0x8] sm:$0xff]
    %v213 = vld [vmem:[#allocation11 + $0x10] sm:$0xff]
    %v214 = vld [vmem:[#allocation11 + $0x18] sm:$0xff]
    %v215 = vld [vmem:[#allocation11 + $0x20] sm:$0xff]
    %v216 = vld [vmem:[#allocation11 + $0x28] sm:$0xff]
    %v217 = vld [vmem:[#allocation11 + $0x30] sm:$0xff]
    %v218 = vld [vmem:[#allocation11 + $0x38] sm:$0xff]
    %v219 = vld [vmem:[#allocation11 + $0x40] sm:$0xff]
    %v220 = vld [vmem:[#allocation11 + $0x48] sm:$0xff]
    %v221 = vld [vmem:[#allocation11 + $0x50] sm:$0xff]
    %v222 = vld [vmem:[#allocation11 + $0x58] sm:$0xff]
    %v223 = vld [vmem:[#allocation11 + $0x60] sm:$0xff]
    %v224 = vld [vmem:[#allocation11 + $0x68] sm:$0xff]
    %v225 = vld [vmem:[#allocation11 + $0x70] sm:$0xff]
    %v226 = vld [vmem:[#allocation11 + $0x78] sm:$0xff]
    %v227 = vld [vmem:[#allocation11 + $0x80] sm:$0xff]
    %v228 = vld [vmem:[#allocation11 + $0x88] sm:$0xff]
    %v229 = vld [vmem:[#allocation11 + $0x90] sm:$0xff]
    %v230 = vld [vmem:[#allocation11 + $0x98] sm:$0xff]
    %v231 = vld [vmem:[#allocation11 + $0xa0] sm:$0xff]
    %v232 = vld [vmem:[#allocation11 + $0xa8] sm:$0xff]
    %v233 = vld [vmem:[#allocation11 + $0xb0] sm:$0xff]
    %v234 = vld [vmem:[#allocation11 + $0xb8] sm:$0xff]
    %v235 = vld [vmem:[#allocation11 + $0xc0] sm:$0xff]
    %v236 = vld [vmem:[#allocation11 + $0xc8] sm:$0xff]
    %v237 = vld [vmem:[#allocation11 + $0xd0] sm:$0xff]
    %v238 = vld [vmem:[#allocation11 + $0xd8] sm:$0xff]
    %v239 = vld [vmem:[#allocation11 + $0xe0] sm:$0xff]
    %v240 = vld [vmem:[#allocation11 + $0xe8] sm:$0xff]
    %v241 = vld [vmem:[#allocation11 + $0xf0] sm:$0xff]
    %v242 = vld [vmem:[#allocation11 + $0xf8] sm:$0xff]
    %v243 = vld [vmem:[#allocation11 + $0x100] sm:$0xff]
    %v244 = vld [vmem:[#allocation11 + $0x108] sm:$0xff]
    %v245 = vld [vmem:[#allocation11 + $0x110] sm:$0xff]
    %v246 = vld [vmem:[#allocation11 + $0x118] sm:$0xff]
    %v247 = vld [vmem:[#allocation11 + $0x120] sm:$0xff]
    %v248 = vld [vmem:[#allocation11 + $0x128] sm:$0xff]
    %v249 = vld [vmem:[#allocation11 + $0x130] sm:$0xff]
    %v250 = vld [vmem:[#allocation11 + $0x138] sm:$0xff]
    %v251 = vld [vmem:[#allocation11 + $0x140] sm:$0xff]
    %v252 = vld [vmem:[#allocation11 + $0x148] sm:$0xff]
    %v253 = vld [vmem:[#allocation11 + $0x150] sm:$0xff]
    %v254 = vld [vmem:[#allocation11 + $0x158] sm:$0xff]
    %v255 = vld [vmem:[#allocation11 + $0x160] sm:$0xff]
    %v256 = vld [vmem:[#allocation11 + $0x168] sm:$0xff]
    %v257 = vld [vmem:[#allocation11 + $0x170] sm:$0xff]
    %v258 = vld [vmem:[#allocation11 + $0x178] sm:$0xff]
    %v259 = vld [vmem:[#allocation11 + $0x180] sm:$0xff]
    %v260 = vld [vmem:[#allocation11 + $0x188] sm:$0xff]
    %v261 = vld [vmem:[#allocation11 + $0x190] sm:$0xff]
    %v262 = vld [vmem:[#allocation11 + $0x198] sm:$0xff]
    %v263 = vld [vmem:[#allocation11 + $0x1a0] sm:$0xff]
    %v264 = vld [vmem:[#allocation11 + $0x1a8] sm:$0xff]
    %v265 = vld [vmem:[#allocation11 + $0x1b0] sm:$0xff]
    %v266 = vld [vmem:[#allocation11 + $0x1b8] sm:$0xff]
    %v267 = vld [vmem:[#allocation11 + $0x1c0] sm:$0xff]
    %v268 = vld [vmem:[#allocation11 + $0x1c8] sm:$0xff]
    %v269 = vld [vmem:[#allocation11 + $0x1d0] sm:$0xff]
    %v270 = vld [vmem:[#allocation11 + $0x1d8] sm:$0xff]
    %v271 = vld [vmem:[#allocation11 + $0x1e0] sm:$0xff]
    %v272 = vld [vmem:[#allocation11 + $0x1e8] sm:$0xff]
    %v273 = vld [vmem:[#allocation11 + $0x1f0] sm:$0xff]
    %v274 = vld [vmem:[#allocation11 + $0x1f8] sm:$0xff]
    %v275 = vld [vmem:[#allocation11 + $0x200] sm:$0xff]
    %v276 = vld [vmem:[#allocation11 + $0x208] sm:$0xff]
    %v277 = vld [vmem:[#allocation11 + $0x210] sm:$0xff]
    %v278 = vld [vmem:[#allocation11 + $0x218] sm:$0xff]
    %v279 = vld [vmem:[#allocation11 + $0x220] sm:$0xff]
    %v280 = vld [vmem:[#allocation11 + $0x228] sm:$0xff]
    %v281 = vld [vmem:[#allocation11 + $0x230] sm:$0xff]
    %v282 = vld [vmem:[#allocation11 + $0x238] sm:$0xff]
    %v283 = vld [vmem:[#allocation11 + $0x240] sm:$0xff]
    %v284 = vld [vmem:[#allocation11 + $0x248] sm:$0xff]
    %v285 = vld [vmem:[#allocation11 + $0x250] sm:$0xff]
    %v286 = vld [vmem:[#allocation11 + $0x258] sm:$0xff]
    %v287 = vld [vmem:[#allocation11 + $0x260] sm:$0xff]
    %v288 = vld [vmem:[#allocation11 + $0x268] sm:$0xff]
    %v289 = vld [vmem:[#allocation11 + $0x270] sm:$0xff]
    %v290 = vld [vmem:[#allocation11 + $0x278] sm:$0xff]
    %v291 = vld [vmem:[#allocation11 + $0x280] sm:$0xff]
    %v292 = vld [vmem:[#allocation11 + $0x288] sm:$0xff]
    %v293 = vld [vmem:[#allocation11 + $0x290] sm:$0xff]
    %v294 = vld [vmem:[#allocation11 + $0x298] sm:$0xff]
    %v295 = vld [vmem:[#allocation11 + $0x2a0] sm:$0xff]
    %v296 = vld [vmem:[#allocation11 + $0x2a8] sm:$0xff]
    %v297 = vld [vmem:[#allocation11 + $0x2b0] sm:$0xff]
    %v298 = vld [vmem:[#allocation11 + $0x2b8] sm:$0xff]
    %v299 = vld [vmem:[#allocation11 + $0x2c0] sm:$0xff]
    %v300 = vld [vmem:[#allocation11 + $0x2c8] sm:$0xff]
    %v301 = vld [vmem:[#allocation11 + $0x2d0] sm:$0xff]
    %v302 = vld [vmem:[#allocation11 + $0x2d8] sm:$0xff]
    %v303 = vld [vmem:[#allocation11 + $0x2e0] sm:$0xff]
    %v304 = vld [vmem:[#allocation11 + $0x2e8] sm:$0xff]
    %v305 = vld [vmem:[#allocation11 + $0x2f0] sm:$0xff]
    %v306 = vld [vmem:[#allocation11 + $0x2f8] sm:$0xff]
    %v307 = vld [vmem:[#allocation11 + $0x300] sm:$0xff]
    %v308 = vld [vmem:[#allocation11 + $0x308] sm:$0xff]
    %v309 = vld [vmem:[#allocation11 + $0x310] sm:$0xff]
    %v310 = vld [vmem:[#allocation11 + $0x318] sm:$0xff]
    %v311 = vld [vmem:[#allocation11 + $0x320] sm:$0xff]
    %v312 = vld [vmem:[#allocation11 + $0x328] sm:$0xff]
    %v313 = vld [vmem:[#allocation11 + $0x330] sm:$0xff]
    %v314 = vld [vmem:[#allocation11 + $0x338] sm:$0xff]
    %v315 = vld [vmem:[#allocation11 + $0x340] sm:$0xff]
    %v316 = vld [vmem:[#allocation11 + $0x348] sm:$0xff]
    %v317 = vld [vmem:[#allocation11 + $0x350] sm:$0xff]
    %v318 = vld [vmem:[#allocation11 + $0x358] sm:$0xff]
    %v319 = vld [vmem:[#allocation11 + $0x360] sm:$0xff]
    %v320 = vld [vmem:[#allocation11 + $0x368] sm:$0xff]
    %v321 = vld [vmem:[#allocation11 + $0x370] sm:$0xff]
    %v322 = vld [vmem:[#allocation11 + $0x378] sm:$0xff]
    %v323 = vld [vmem:[#allocation11 + $0x380] sm:$0xff]
    %v324 = vld [vmem:[#allocation11 + $0x388] sm:$0xff]
    %v325 = vld [vmem:[#allocation11 + $0x390] sm:$0xff]
    %v326 = vld [vmem:[#allocation11 + $0x398] sm:$0xff]
    %v327 = vld [vmem:[#allocation11 + $0x3a0] sm:$0xff]
    %v328 = vld [vmem:[#allocation11 + $0x3a8] sm:$0xff]
    %v329 = vld [vmem:[#allocation11 + $0x3b0] sm:$0xff]
    %v330 = vld [vmem:[#allocation11 + $0x3b8] sm:$0xff]
    %v331 = vld [vmem:[#allocation11 + $0x3c0] sm:$0xff]
    %v332 = vld [vmem:[#allocation11 + $0x3c8] sm:$0xff]
    %v333 = vld [vmem:[#allocation11 + $0x3d0] sm:$0xff]
    %v334 = vld [vmem:[#allocation11 + $0x3d8] sm:$0xff]
    %v335 = vld [vmem:[#allocation11 + $0x3e0] sm:$0xff]
    %v336 = vld [vmem:[#allocation11 + $0x3e8] sm:$0xff]
    %v337 = vld [vmem:[#allocation11 + $0x3f0] sm:$0xff]
    %v338 = vld [vmem:[#allocation11 + $0x3f8] sm:$0xff]
    %v339 = vpack.c.bf16 %v199, %v195
    %v340 = vpack.c.bf16 %v200, %v196
    %v341 = vpack.c.bf16 %v201, %v197
    %v342 = vpack.c.bf16 %v202, %v198
    %v343 = vpack.c.bf16 %v207, %v203
    %v344 = vpack.c.bf16 %v208, %v204
    %v345 = vpack.c.bf16 %v209, %v205
    %v346 = vpack.c.bf16 %v210, %v206
    %v475 = vunpack.c.l.b16 %v211
    %v476 = vunpack.c.h.b16 %v211
    %v477 = vunpack.c.l.b16 %v212
    %v478 = vunpack.c.h.b16 %v212
    %v479 = vunpack.c.l.b16 %v213
    %v480 = vunpack.c.h.b16 %v213
    %v481 = vunpack.c.l.b16 %v214
    %v482 = vunpack.c.h.b16 %v214
    %v483 = vunpack.c.l.b16 %v215
    %v484 = vunpack.c.h.b16 %v215
    %v485 = vunpack.c.l.b16 %v216
    %v486 = vunpack.c.h.b16 %v216
    %v487 = vunpack.c.l.b16 %v217
    %v488 = vunpack.c.h.b16 %v217
    %v489 = vunpack.c.l.b16 %v218
    %v490 = vunpack.c.h.b16 %v218
    %v491 = vunpack.c.l.b16 %v219
    %v492 = vunpack.c.h.b16 %v219
    %v493 = vunpack.c.l.b16 %v220
    %v494 = vunpack.c.h.b16 %v220
    %v495 = vunpack.c.l.b16 %v221
    %v496 = vunpack.c.h.b16 %v221
    %v497 = vunpack.c.l.b16 %v222
    %v498 = vunpack.c.h.b16 %v222
    %v499 = vunpack.c.l.b16 %v223
    %v500 = vunpack.c.h.b16 %v223
    %v501 = vunpack.c.l.b16 %v224
    %v502 = vunpack.c.h.b16 %v224
    %v503 = vunpack.c.l.b16 %v225
    %v504 = vunpack.c.h.b16 %v225
    %v505 = vunpack.c.l.b16 %v226
    %v506 = vunpack.c.h.b16 %v226
    %v507 = vunpack.c.l.b16 %v227
    %v508 = vunpack.c.h.b16 %v227
    %v509 = vunpack.c.l.b16 %v228
    %v510 = vunpack.c.h.b16 %v228
    %v511 = vunpack.c.l.b16 %v229
    %v512 = vunpack.c.h.b16 %v229
    %v513 = vunpack.c.l.b16 %v230
    %v514 = vunpack.c.h.b16 %v230
    %v515 = vunpack.c.l.b16 %v231
    %v516 = vunpack.c.h.b16 %v231
    %v517 = vunpack.c.l.b16 %v232
    %v518 = vunpack.c.h.b16 %v232
    %v519 = vunpack.c.l.b16 %v233
    %v520 = vunpack.c.h.b16 %v233
    %v521 = vunpack.c.l.b16 %v234
    %v522 = vunpack.c.h.b16 %v234
    %v523 = vunpack.c.l.b16 %v235
    %v524 = vunpack.c.h.b16 %v235
    %v525 = vunpack.c.l.b16 %v236
    %v526 = vunpack.c.h.b16 %v236
    %v527 = vunpack.c.l.b16 %v237
    %v528 = vunpack.c.h.b16 %v237
    %v529 = vunpack.c.l.b16 %v238
    %v530 = vunpack.c.h.b16 %v238
    %v531 = vunpack.c.l.b16 %v239
    %v532 = vunpack.c.h.b16 %v239
    %v533 = vunpack.c.l.b16 %v240
    %v534 = vunpack.c.h.b16 %v240
    %v535 = vunpack.c.l.b16 %v241
    %v536 = vunpack.c.h.b16 %v241
    %v537 = vunpack.c.l.b16 %v242
    %v538 = vunpack.c.h.b16 %v242
    %v539 = vunpack.c.l.b16 %v243
    %v540 = vunpack.c.h.b16 %v243
    %v541 = vunpack.c.l.b16 %v244
    %v542 = vunpack.c.h.b16 %v244
    %v543 = vunpack.c.l.b16 %v245
    %v544 = vunpack.c.h.b16 %v245
    %v545 = vunpack.c.l.b16 %v246
    %v546 = vunpack.c.h.b16 %v246
    %v547 = vunpack.c.l.b16 %v247
    %v548 = vunpack.c.h.b16 %v247
    %v549 = vunpack.c.l.b16 %v248
    %v550 = vunpack.c.h.b16 %v248
    %v551 = vunpack.c.l.b16 %v249
    %v552 = vunpack.c.h.b16 %v249
    %v553 = vunpack.c.l.b16 %v250
    %v554 = vunpack.c.h.b16 %v250
    %v555 = vunpack.c.l.b16 %v251
    %v556 = vunpack.c.h.b16 %v251
    %v557 = vunpack.c.l.b16 %v252
    %v558 = vunpack.c.h.b16 %v252
    %v559 = vunpack.c.l.b16 %v253
    %v560 = vunpack.c.h.b16 %v253
    %v561 = vunpack.c.l.b16 %v254
    %v562 = vunpack.c.h.b16 %v254
    %v563 = vunpack.c.l.b16 %v255
    %v564 = vunpack.c.h.b16 %v255
    %v565 = vunpack.c.l.b16 %v256
    %v566 = vunpack.c.h.b16 %v256
    %v567 = vunpack.c.l.b16 %v257
    %v568 = vunpack.c.h.b16 %v257
    %v569 = vunpack.c.l.b16 %v258
    %v570 = vunpack.c.h.b16 %v258
    %v571 = vunpack.c.l.b16 %v259
    %v572 = vunpack.c.h.b16 %v259
    %v573 = vunpack.c.l.b16 %v260
    %v574 = vunpack.c.h.b16 %v260
    %v575 = vunpack.c.l.b16 %v261
    %v576 = vunpack.c.h.b16 %v261
    %v577 = vunpack.c.l.b16 %v262
    %v578 = vunpack.c.h.b16 %v262
    %v579 = vunpack.c.l.b16 %v263
    %v580 = vunpack.c.h.b16 %v263
    %v581 = vunpack.c.l.b16 %v264
    %v582 = vunpack.c.h.b16 %v264
    %v583 = vunpack.c.l.b16 %v265
    %v584 = vunpack.c.h.b16 %v265
    %v585 = vunpack.c.l.b16 %v266
    %v586 = vunpack.c.h.b16 %v266
    %v587 = vunpack.c.l.b16 %v267
    %v588 = vunpack.c.h.b16 %v267
    %v589 = vunpack.c.l.b16 %v268
    %v590 = vunpack.c.h.b16 %v268
    %v591 = vunpack.c.l.b16 %v269
    %v592 = vunpack.c.h.b16 %v269
    %v593 = vunpack.c.l.b16 %v270
    %v594 = vunpack.c.h.b16 %v270
    %v595 = vunpack.c.l.b16 %v271
    %v596 = vunpack.c.h.b16 %v271
    %v597 = vunpack.c.l.b16 %v272
    %v598 = vunpack.c.h.b16 %v272
    %v599 = vunpack.c.l.b16 %v273
    %v600 = vunpack.c.h.b16 %v273
    %v601 = vunpack.c.l.b16 %v274
    %v602 = vunpack.c.h.b16 %v274
    %v603 = vunpack.c.l.b16 %v275
    %v604 = vunpack.c.h.b16 %v275
    %v605 = vunpack.c.l.b16 %v276
    %v606 = vunpack.c.h.b16 %v276
    %v607 = vunpack.c.l.b16 %v277
    %v608 = vunpack.c.h.b16 %v277
    %v609 = vunpack.c.l.b16 %v278
    %v610 = vunpack.c.h.b16 %v278
    %v611 = vunpack.c.l.b16 %v279
    %v612 = vunpack.c.h.b16 %v279
    %v613 = vunpack.c.l.b16 %v280
    %v614 = vunpack.c.h.b16 %v280
    %v615 = vunpack.c.l.b16 %v281
    %v616 = vunpack.c.h.b16 %v281
    %v617 = vunpack.c.l.b16 %v282
    %v618 = vunpack.c.h.b16 %v282
    %v619 = vunpack.c.l.b16 %v283
    %v620 = vunpack.c.h.b16 %v283
    %v621 = vunpack.c.l.b16 %v284
    %v622 = vunpack.c.h.b16 %v284
    %v623 = vunpack.c.l.b16 %v285
    %v624 = vunpack.c.h.b16 %v285
    %v625 = vunpack.c.l.b16 %v286
    %v626 = vunpack.c.h.b16 %v286
    %v627 = vunpack.c.l.b16 %v287
    %v628 = vunpack.c.h.b16 %v287
    %v629 = vunpack.c.l.b16 %v288
    %v630 = vunpack.c.h.b16 %v288
    %v631 = vunpack.c.l.b16 %v289
    %v632 = vunpack.c.h.b16 %v289
    %v633 = vunpack.c.l.b16 %v290
    %v634 = vunpack.c.h.b16 %v290
    %v635 = vunpack.c.l.b16 %v291
    %v636 = vunpack.c.h.b16 %v291
    %v637 = vunpack.c.l.b16 %v292
    %v638 = vunpack.c.h.b16 %v292
    %v639 = vunpack.c.l.b16 %v293
    %v640 = vunpack.c.h.b16 %v293
    %v641 = vunpack.c.l.b16 %v294
    %v642 = vunpack.c.h.b16 %v294
    %v643 = vunpack.c.l.b16 %v295
    %v644 = vunpack.c.h.b16 %v295
    %v645 = vunpack.c.l.b16 %v296
    %v646 = vunpack.c.h.b16 %v296
    %v647 = vunpack.c.l.b16 %v297
    %v648 = vunpack.c.h.b16 %v297
    %v649 = vunpack.c.l.b16 %v298
    %v650 = vunpack.c.h.b16 %v298
    %v651 = vunpack.c.l.b16 %v299
    %v652 = vunpack.c.h.b16 %v299
    %v653 = vunpack.c.l.b16 %v300
    %v654 = vunpack.c.h.b16 %v300
    %v655 = vunpack.c.l.b16 %v301
    %v656 = vunpack.c.h.b16 %v301
    %v657 = vunpack.c.l.b16 %v302
    %v658 = vunpack.c.h.b16 %v302
    %v659 = vunpack.c.l.b16 %v303
    %v660 = vunpack.c.h.b16 %v303
    %v661 = vunpack.c.l.b16 %v304
    %v662 = vunpack.c.h.b16 %v304
    %v663 = vunpack.c.l.b16 %v305
    %v664 = vunpack.c.h.b16 %v305
    %v665 = vunpack.c.l.b16 %v306
    %v666 = vunpack.c.h.b16 %v306
    %v667 = vunpack.c.l.b16 %v307
    %v668 = vunpack.c.h.b16 %v307
    %v669 = vunpack.c.l.b16 %v308
    %v670 = vunpack.c.h.b16 %v308
    %v671 = vunpack.c.l.b16 %v309
    %v672 = vunpack.c.h.b16 %v309
    %v673 = vunpack.c.l.b16 %v310
    %v674 = vunpack.c.h.b16 %v310
    %v675 = vunpack.c.l.b16 %v311
    %v676 = vunpack.c.h.b16 %v311
    %v677 = vunpack.c.l.b16 %v312
    %v678 = vunpack.c.h.b16 %v312
    %v679 = vunpack.c.l.b16 %v313
    %v680 = vunpack.c.h.b16 %v313
    %v681 = vunpack.c.l.b16 %v314
    %v682 = vunpack.c.h.b16 %v314
    %v683 = vunpack.c.l.b16 %v315
    %v684 = vunpack.c.h.b16 %v315
    %v685 = vunpack.c.l.b16 %v316
    %v686 = vunpack.c.h.b16 %v316
    %v687 = vunpack.c.l.b16 %v317
    %v688 = vunpack.c.h.b16 %v317
    %v689 = vunpack.c.l.b16 %v318
    %v690 = vunpack.c.h.b16 %v318
    %v691 = vunpack.c.l.b16 %v319
    %v692 = vunpack.c.h.b16 %v319
    %v693 = vunpack.c.l.b16 %v320
    %v694 = vunpack.c.h.b16 %v320
    %v695 = vunpack.c.l.b16 %v321
    %v696 = vunpack.c.h.b16 %v321
    %v697 = vunpack.c.l.b16 %v322
    %v698 = vunpack.c.h.b16 %v322
    %v699 = vunpack.c.l.b16 %v323
    %v700 = vunpack.c.h.b16 %v323
    %v701 = vunpack.c.l.b16 %v324
    %v702 = vunpack.c.h.b16 %v324
    %v703 = vunpack.c.l.b16 %v325
    %v704 = vunpack.c.h.b16 %v325
    %v705 = vunpack.c.l.b16 %v326
    %v706 = vunpack.c.h.b16 %v326
    %v707 = vunpack.c.l.b16 %v327
    %v708 = vunpack.c.h.b16 %v327
    %v709 = vunpack.c.l.b16 %v328
    %v710 = vunpack.c.h.b16 %v328
    %v711 = vunpack.c.l.b16 %v329
    %v712 = vunpack.c.h.b16 %v329
    %v713 = vunpack.c.l.b16 %v330
    %v714 = vunpack.c.h.b16 %v330
    %v715 = vunpack.c.l.b16 %v331
    %v716 = vunpack.c.h.b16 %v331
    %v717 = vunpack.c.l.b16 %v332
    %v718 = vunpack.c.h.b16 %v332
    %v719 = vunpack.c.l.b16 %v333
    %v720 = vunpack.c.h.b16 %v333
    %v721 = vunpack.c.l.b16 %v334
    %v722 = vunpack.c.h.b16 %v334
    %v723 = vunpack.c.l.b16 %v335
    %v724 = vunpack.c.h.b16 %v335
    %v725 = vunpack.c.l.b16 %v336
    %v726 = vunpack.c.h.b16 %v336
    %v727 = vunpack.c.l.b16 %v337
    %v728 = vunpack.c.h.b16 %v337
    %v729 = vunpack.c.l.b16 %v338
    %v730 = vunpack.c.h.b16 %v338
    %v731 = vpack.c.b16 %v479, %v475
    %v732 = vpack.c.b16 %v480, %v476
    %v733 = vpack.c.b16 %v481, %v477
    %v734 = vpack.c.b16 %v482, %v478
    %v735 = vpack.c.b16 %v487, %v483
    %v736 = vpack.c.b16 %v488, %v484
    %v737 = vpack.c.b16 %v489, %v485
    %v738 = vpack.c.b16 %v490, %v486
    %v739 = vpack.c.b16 %v495, %v491
    %v740 = vpack.c.b16 %v496, %v492
    %v741 = vpack.c.b16 %v497, %v493
    %v742 = vpack.c.b16 %v498, %v494
    %v743 = vpack.c.b16 %v503, %v499
    %v744 = vpack.c.b16 %v504, %v500
    %v745 = vpack.c.b16 %v505, %v501
    %v746 = vpack.c.b16 %v506, %v502
    %v747 = vpack.c.b16 %v511, %v507
    %v748 = vpack.c.b16 %v512, %v508
    %v749 = vpack.c.b16 %v513, %v509
    %v750 = vpack.c.b16 %v514, %v510
    %v751 = vpack.c.b16 %v519, %v515
    %v752 = vpack.c.b16 %v520, %v516
    %v753 = vpack.c.b16 %v521, %v517
    %v754 = vpack.c.b16 %v522, %v518
    %v755 = vpack.c.b16 %v527, %v523
    %v756 = vpack.c.b16 %v528, %v524
    %v757 = vpack.c.b16 %v529, %v525
    %v758 = vpack.c.b16 %v530, %v526
    %v759 = vpack.c.b16 %v535, %v531
    %v760 = vpack.c.b16 %v536, %v532
    %v761 = vpack.c.b16 %v537, %v533
    %v762 = vpack.c.b16 %v538, %v534
    %v763 = vpack.c.b16 %v543, %v539
    %v764 = vpack.c.b16 %v544, %v540
    %v765 = vpack.c.b16 %v545, %v541
    %v766 = vpack.c.b16 %v546, %v542
    %v767 = vpack.c.b16 %v551, %v547
    %v768 = vpack.c.b16 %v552, %v548
    %v769 = vpack.c.b16 %v553, %v549
    %v770 = vpack.c.b16 %v554, %v550
    %v771 = vpack.c.b16 %v559, %v555
    %v772 = vpack.c.b16 %v560, %v556
    %v773 = vpack.c.b16 %v561, %v557
    %v774 = vpack.c.b16 %v562, %v558
    %v775 = vpack.c.b16 %v567, %v563
    %v776 = vpack.c.b16 %v568, %v564
    %v777 = vpack.c.b16 %v569, %v565
    %v778 = vpack.c.b16 %v570, %v566
    %v779 = vpack.c.b16 %v575, %v571
    %v780 = vpack.c.b16 %v576, %v572
    %v781 = vpack.c.b16 %v577, %v573
    %v782 = vpack.c.b16 %v578, %v574
    %v783 = vpack.c.b16 %v583, %v579
    %v784 = vpack.c.b16 %v584, %v580
    %v785 = vpack.c.b16 %v585, %v581
    %v786 = vpack.c.b16 %v586, %v582
    %v787 = vpack.c.b16 %v591, %v587
    %v788 = vpack.c.b16 %v592, %v588
    %v789 = vpack.c.b16 %v593, %v589
    %v790 = vpack.c.b16 %v594, %v590
    %v791 = vpack.c.b16 %v599, %v595
    %v792 = vpack.c.b16 %v600, %v596
    %v793 = vpack.c.b16 %v601, %v597
    %v794 = vpack.c.b16 %v602, %v598
    %v795 = vpack.c.b16 %v607, %v603
    %v796 = vpack.c.b16 %v608, %v604
    %v797 = vpack.c.b16 %v609, %v605
    %v798 = vpack.c.b16 %v610, %v606
    %v799 = vpack.c.b16 %v615, %v611
    %v800 = vpack.c.b16 %v616, %v612
    %v801 = vpack.c.b16 %v617, %v613
    %v802 = vpack.c.b16 %v618, %v614
    %v803 = vpack.c.b16 %v623, %v619
    %v804 = vpack.c.b16 %v624, %v620
    %v805 = vpack.c.b16 %v625, %v621
    %v806 = vpack.c.b16 %v626, %v622
    %v807 = vpack.c.b16 %v631, %v627
    %v808 = vpack.c.b16 %v632, %v628
    %v809 = vpack.c.b16 %v633, %v629
    %v810 = vpack.c.b16 %v634, %v630
    %v811 = vpack.c.b16 %v639, %v635
    %v812 = vpack.c.b16 %v640, %v636
    %v813 = vpack.c.b16 %v641, %v637
    %v814 = vpack.c.b16 %v642, %v638
    %v815 = vpack.c.b16 %v647, %v643
    %v816 = vpack.c.b16 %v648, %v644
    %v817 = vpack.c.b16 %v649, %v645
    %v818 = vpack.c.b16 %v650, %v646
    %v819 = vpack.c.b16 %v655, %v651
    %v820 = vpack.c.b16 %v656, %v652
    %v821 = vpack.c.b16 %v657, %v653
    %v822 = vpack.c.b16 %v658, %v654
    %v823 = vpack.c.b16 %v663, %v659
    %v824 = vpack.c.b16 %v664, %v660
    %v825 = vpack.c.b16 %v665, %v661
    %v826 = vpack.c.b16 %v666, %v662
    %v827 = vpack.c.b16 %v671, %v667
    %v828 = vpack.c.b16 %v672, %v668
    %v829 = vpack.c.b16 %v673, %v669
    %v830 = vpack.c.b16 %v674, %v670
    %v831 = vpack.c.b16 %v679, %v675
    %v832 = vpack.c.b16 %v680, %v676
    %v833 = vpack.c.b16 %v681, %v677
    %v834 = vpack.c.b16 %v682, %v678
    %v835 = vpack.c.b16 %v687, %v683
    %v836 = vpack.c.b16 %v688, %v684
    %v837 = vpack.c.b16 %v689, %v685
    %v838 = vpack.c.b16 %v690, %v686
    %v839 = vpack.c.b16 %v695, %v691
    %v840 = vpack.c.b16 %v696, %v692
    %v841 = vpack.c.b16 %v697, %v693
    %v842 = vpack.c.b16 %v698, %v694
    %v843 = vpack.c.b16 %v703, %v699
    %v844 = vpack.c.b16 %v704, %v700
    %v845 = vpack.c.b16 %v705, %v701
    %v846 = vpack.c.b16 %v706, %v702
    %v847 = vpack.c.b16 %v711, %v707
    %v848 = vpack.c.b16 %v712, %v708
    %v849 = vpack.c.b16 %v713, %v709
    %v850 = vpack.c.b16 %v714, %v710
    %v851 = vpack.c.b16 %v719, %v715
    %v852 = vpack.c.b16 %v720, %v716
    %v853 = vpack.c.b16 %v721, %v717
    %v854 = vpack.c.b16 %v722, %v718
    %v855 = vpack.c.b16 %v727, %v723
    %v856 = vpack.c.b16 %v728, %v724
    %v857 = vpack.c.b16 %v729, %v725
    %v858 = vpack.c.b16 %v730, %v726
    %987 = vmatprep.subr.bf16.mxu0 %v760
    %988 = vmatpush1.bf16.msra.mxu0 %v759
    %989 = vmatprep.subr.bf16.mxu0 %v756
    %990 = vmatpush1.bf16.msra.mxu0 %v755
    %991 = vmatprep.subr.bf16.mxu0 %v752
    %992 = vmatpush1.bf16.msra.mxu0 %v751
    %993 = vmatprep.subr.bf16.mxu0 %v748
    %994 = vmatpush1.bf16.msra.mxu0 %v747
    %995 = vmatprep.subr.bf16.mxu0 %v744
    %996 = vmatpush1.bf16.msra.mxu0 %v743
    %997 = vmatprep.subr.bf16.mxu0 %v740
    %998 = vmatpush1.bf16.msra.mxu0 %v739
    %999 = vmatprep.subr.bf16.mxu0 %v736
    %1000 = vmatpush1.bf16.msra.mxu0 %v735
    %1001 = vmatprep.subr.bf16.mxu0 %v732
    %1002 = vmatpush1.bf16.msra.mxu0 %v731
    %1003 = vmatprep.subr.bf16.mxu0 %v792
    %1004 = vmatpush2.bf16.msra.mxu0 %v791
    %1005 = vmatprep.subr.bf16.mxu0 %v788
    %1006 = vmatpush2.bf16.msra.mxu0 %v787
    %1007 = vmatprep.subr.bf16.mxu0 %v784
    %1008 = vmatpush2.bf16.msra.mxu0 %v783
    %1009 = vmatprep.subr.bf16.mxu0 %v780
    %1010 = vmatpush2.bf16.msra.mxu0 %v779
    %1011 = vmatprep.subr.bf16.mxu0 %v776
    %1012 = vmatpush2.bf16.msra.mxu0 %v775
    %1013 = vmatprep.subr.bf16.mxu0 %v772
    %1014 = vmatpush2.bf16.msra.mxu0 %v771
    %1015 = vmatprep.subr.bf16.mxu0 %v768
    %1016 = vmatpush2.bf16.msra.mxu0 %v767
    %1017 = vmatprep.subr.bf16.mxu0 %v764
    %1018 = vmatpush2.bf16.msra.mxu0 %v763
    %1019 = vmatprep.mubr.bf16.mxu0 %v340
    %1020 = vmatmul.mubr.bf16.gmra.mxu0 %v339
    %v1021 = vpop.f32.mrf.mxu0
    %v1022 = vadd.f32 0.0, %v1021
    %v1023 = vpop.f32.mrf.mxu0
    %v1024 = vadd.f32 0.0, %v1023
    %v1025 = vpop.f32.mrf.mxu0
    %v1026 = vadd.f32 0.0, %v1025
    %v1027 = vpop.f32.mrf.mxu0
    %v1028 = vadd.f32 0.0, %v1027
    %1029 = vmatprep.mubr.bf16.mxu0 %v344
    %1030 = vmatmul.mubr.bf16.gmra.mxu0 %v343
    %v1031 = vpop.f32.mrf.mxu0
    %v1032 = vadd.f32 0.0, %v1031
    %v1033 = vpop.f32.mrf.mxu0
    %v1034 = vadd.f32 0.0, %v1033
    %v1035 = vpop.f32.mrf.mxu0
    %v1036 = vadd.f32 0.0, %v1035
    %v1037 = vpop.f32.mrf.mxu0
    %v1038 = vadd.f32 0.0, %v1037
    %1039 = vdwg.mxu0
    %1040 = vmatprep.subr.bf16.mxu0 %v824
    %1041 = vmatpush1.bf16.msra.mxu0 %v823
    %1042 = vmatprep.subr.bf16.mxu0 %v820
    %1043 = vmatpush1.bf16.msra.mxu0 %v819
    %1044 = vmatprep.subr.bf16.mxu0 %v816
    %1045 = vmatpush1.bf16.msra.mxu0 %v815
    %1046 = vmatprep.subr.bf16.mxu0 %v812
    %1047 = vmatpush1.bf16.msra.mxu0 %v811
    %1048 = vmatprep.subr.bf16.mxu0 %v808
    %1049 = vmatpush1.bf16.msra.mxu0 %v807
    %1050 = vmatprep.subr.bf16.mxu0 %v804
    %1051 = vmatpush1.bf16.msra.mxu0 %v803
    %1052 = vmatprep.subr.bf16.mxu0 %v800
    %1053 = vmatpush1.bf16.msra.mxu0 %v799
    %1054 = vmatprep.subr.bf16.mxu0 %v796
    %1055 = vmatpush1.bf16.msra.mxu0 %v795
    %1056 = vmatprep.subr.bf16.mxu0 %v856
    %1057 = vmatpush2.bf16.msra.mxu0 %v855
    %1058 = vmatprep.subr.bf16.mxu0 %v852
    %1059 = vmatpush2.bf16.msra.mxu0 %v851
    %1060 = vmatprep.subr.bf16.mxu0 %v848
    %1061 = vmatpush2.bf16.msra.mxu0 %v847
    %1062 = vmatprep.subr.bf16.mxu0 %v844
    %1063 = vmatpush2.bf16.msra.mxu0 %v843
    %1064 = vmatprep.subr.bf16.mxu0 %v840
    %1065 = vmatpush2.bf16.msra.mxu0 %v839
    %1066 = vmatprep.subr.bf16.mxu0 %v836
    %1067 = vmatpush2.bf16.msra.mxu0 %v835
    %1068 = vmatprep.subr.bf16.mxu0 %v832
    %1069 = vmatpush2.bf16.msra.mxu0 %v831
    %1070 = vmatprep.subr.bf16.mxu0 %v828
    %1071 = vmatpush2.bf16.msra.mxu0 %v827
    %1072 = vmatprep.mubr.bf16.mxu0 %v342
    %1073 = vmatmul.mubr.bf16.gmra.mxu0 %v341
    %v1074 = vpop.f32.mrf.mxu0
    %v1075 = vadd.f32 %v1022, %v1074
    %v1076 = vpop.f32.mrf.mxu0
    %v1077 = vadd.f32 %v1024, %v1076
    %v1078 = vpop.f32.mrf.mxu0
    %v1079 = vadd.f32 %v1026, %v1078
    %v1080 = vpop.f32.mrf.mxu0
    %v1081 = vadd.f32 %v1028, %v1080
    %1082 = vmatprep.mubr.bf16.mxu0 %v346
    %1083 = vmatmul.mubr.bf16.gmra.mxu0 %v345
    %v1084 = vpop.f32.mrf.mxu0
    %v1085 = vadd.f32 %v1032, %v1084
    %v1086 = vpop.f32.mrf.mxu0
    %v1087 = vadd.f32 %v1034, %v1086
    %v1088 = vpop.f32.mrf.mxu0
    %v1089 = vadd.f32 %v1036, %v1088
    %v1090 = vpop.f32.mrf.mxu0
    %v1091 = vadd.f32 %v1038, %v1090
    %1092 = vdwg.mxu0
    %1093 = vmatprep.subr.bf16.mxu0 %v762
    %1094 = vmatpush1.bf16.msra.mxu0 %v761
    %1095 = vmatprep.subr.bf16.mxu0 %v758
    %1096 = vmatpush1.bf16.msra.mxu0 %v757
    %1097 = vmatprep.subr.bf16.mxu0 %v754
    %1098 = vmatpush1.bf16.msra.mxu0 %v753
    %1099 = vmatprep.subr.bf16.mxu0 %v750
    %1100 = vmatpush1.bf16.msra.mxu0 %v749
    %1101 = vmatprep.subr.bf16.mxu0 %v746
    %1102 = vmatpush1.bf16.msra.mxu0 %v745
    %1103 = vmatprep.subr.bf16.mxu0 %v742
    %1104 = vmatpush1.bf16.msra.mxu0 %v741
    %1105 = vmatprep.subr.bf16.mxu0 %v738
    %1106 = vmatpush1.bf16.msra.mxu0 %v737
    %1107 = vmatprep.subr.bf16.mxu0 %v734
    %1108 = vmatpush1.bf16.msra.mxu0 %v733
    %1109 = vmatprep.subr.bf16.mxu0 %v794
    %1110 = vmatpush2.bf16.msra.mxu0 %v793
    %1111 = vmatprep.subr.bf16.mxu0 %v790
    %1112 = vmatpush2.bf16.msra.mxu0 %v789
    %1113 = vmatprep.subr.bf16.mxu0 %v786
    %1114 = vmatpush2.bf16.msra.mxu0 %v785
    %1115 = vmatprep.subr.bf16.mxu0 %v782
    %1116 = vmatpush2.bf16.msra.mxu0 %v781
    %1117 = vmatprep.subr.bf16.mxu0 %v778
    %1118 = vmatpush2.bf16.msra.mxu0 %v777
    %1119 = vmatprep.subr.bf16.mxu0 %v774
    %1120 = vmatpush2.bf16.msra.mxu0 %v773
    %1121 = vmatprep.subr.bf16.mxu0 %v770
    %1122 = vmatpush2.bf16.msra.mxu0 %v769
    %1123 = vmatprep.subr.bf16.mxu0 %v766
    %1124 = vmatpush2.bf16.msra.mxu0 %v765
    %1125 = vmatprep.mubr.bf16.mxu0 %v340
    %1126 = vmatmul.mubr.bf16.gmra.mxu0 %v339
    %v1127 = vpop.f32.mrf.mxu0
    %v1128 = vadd.f32 0.0, %v1127
    %v1129 = vpop.f32.mrf.mxu0
    %v1130 = vadd.f32 0.0, %v1129
    %v1131 = vpop.f32.mrf.mxu0
    %v1132 = vadd.f32 0.0, %v1131
    %v1133 = vpop.f32.mrf.mxu0
    %v1134 = vadd.f32 0.0, %v1133
    %1135 = vmatprep.mubr.bf16.mxu0 %v344
    %1136 = vmatmul.mubr.bf16.gmra.mxu0 %v343
    %v1137 = vpop.f32.mrf.mxu0
    %v1138 = vadd.f32 0.0, %v1137
    %v1139 = vpop.f32.mrf.mxu0
    %v1140 = vadd.f32 0.0, %v1139
    %v1141 = vpop.f32.mrf.mxu0
    %v1142 = vadd.f32 0.0, %v1141
    %v1143 = vpop.f32.mrf.mxu0
    %v1144 = vadd.f32 0.0, %v1143
    %1145 = vdwg.mxu0
    %1146 = vmatprep.subr.bf16.mxu0 %v826
    %1147 = vmatpush1.bf16.msra.mxu0 %v825
    %1148 = vmatprep.subr.bf16.mxu0 %v822
    %1149 = vmatpush1.bf16.msra.mxu0 %v821
    %1150 = vmatprep.subr.bf16.mxu0 %v818
    %1151 = vmatpush1.bf16.msra.mxu0 %v817
    %1152 = vmatprep.subr.bf16.mxu0 %v814
    %1153 = vmatpush1.bf16.msra.mxu0 %v813
    %1154 = vmatprep.subr.bf16.mxu0 %v810
    %1155 = vmatpush1.bf16.msra.mxu0 %v809
    %1156 = vmatprep.subr.bf16.mxu0 %v806
    %1157 = vmatpush1.bf16.msra.mxu0 %v805
    %1158 = vmatprep.subr.bf16.mxu0 %v802
    %1159 = vmatpush1.bf16.msra.mxu0 %v801
    %1160 = vmatprep.subr.bf16.mxu0 %v798
    %1161 = vmatpush1.bf16.msra.mxu0 %v797
    %1162 = vmatprep.subr.bf16.mxu0 %v858
    %1163 = vmatpush2.bf16.msra.mxu0 %v857
    %1164 = vmatprep.subr.bf16.mxu0 %v854
    %1165 = vmatpush2.bf16.msra.mxu0 %v853
    %1166 = vmatprep.subr.bf16.mxu0 %v850
    %1167 = vmatpush2.bf16.msra.mxu0 %v849
    %1168 = vmatprep.subr.bf16.mxu0 %v846
    %1169 = vmatpush2.bf16.msra.mxu0 %v845
    %1170 = vmatprep.subr.bf16.mxu0 %v842
    %1171 = vmatpush2.bf16.msra.mxu0 %v841
    %1172 = vmatprep.subr.bf16.mxu0 %v838
    %1173 = vmatpush2.bf16.msra.mxu0 %v837
    %1174 = vmatprep.subr.bf16.mxu0 %v834
    %1175 = vmatpush2.bf16.msra.mxu0 %v833
    %1176 = vmatprep.subr.bf16.mxu0 %v830
    %1177 = vmatpush2.bf16.msra.mxu0 %v829
    %1178 = vmatprep.mubr.bf16.mxu0 %v342
    %1179 = vmatmul.mubr.bf16.gmra.mxu0 %v341
    %v1180 = vpop.f32.mrf.mxu0
    %v1181 = vadd.f32 %v1128, %v1180
    %v1182 = vpop.f32.mrf.mxu0
    %v1183 = vadd.f32 %v1130, %v1182
    %v1184 = vpop.f32.mrf.mxu0
    %v1185 = vadd.f32 %v1132, %v1184
    %v1186 = vpop.f32.mrf.mxu0
    %v1187 = vadd.f32 %v1134, %v1186
    %1188 = vmatprep.mubr.bf16.mxu0 %v346
    %1189 = vmatmul.mubr.bf16.gmra.mxu0 %v345
    %v1190 = vpop.f32.mrf.mxu0
    %v1191 = vadd.f32 %v1138, %v1190
    %v1192 = vpop.f32.mrf.mxu0
    %v1193 = vadd.f32 %v1140, %v1192
    %v1194 = vpop.f32.mrf.mxu0
    %v1195 = vadd.f32 %v1142, %v1194
    %v1196 = vpop.f32.mrf.mxu0
    %v1197 = vadd.f32 %v1144, %v1196
    %1198 = vdwg.mxu0
    %v1199 = vld [vmem:[#allocation14] sm:$0xf]
    %v1200 = vld [vmem:[#allocation15] sm:$0xf]
    %v1201 = vadd.f32 %v1075, %v1079
    %v1202 = vrot.slane %v1201, 4
    %v1203 = vadd.f32 %v1201, %v1202
    %v1204 = vrot.slane %v1203, 2
    %v1205 = vadd.f32 %v1203, %v1204
    %v1206 = vrot.slane %v1205, 1
    %v1207 = vadd.f32 %v1205, %v1206
    %v1208 = vadd.f32 %v1077, %v1081
    %v1209 = vrot.slane %v1208, 4
    %v1210 = vadd.f32 %v1208, %v1209
    %v1211 = vrot.slane %v1210, 2
    %v1212 = vadd.f32 %v1210, %v1211
    %v1213 = vrot.slane %v1212, 1
    %v1214 = vadd.f32 %v1212, %v1213
    %v1215 = vadd.f32 %v1181, %v1185
    %v1216 = vrot.slane %v1215, 4
    %v1217 = vadd.f32 %v1215, %v1216
    %v1218 = vrot.slane %v1217, 2
    %v1219 = vadd.f32 %v1217, %v1218
    %v1220 = vrot.slane %v1219, 1
    %v1221 = vadd.f32 %v1219, %v1220
    %v1222 = vadd.f32 %v1183, %v1187
    %v1223 = vrot.slane %v1222, 4
    %v1224 = vadd.f32 %v1222, %v1223
    %v1225 = vrot.slane %v1224, 2
    %v1226 = vadd.f32 %v1224, %v1225
    %v1227 = vrot.slane %v1226, 1
    %v1228 = vadd.f32 %v1226, %v1227
    %v1229 = vrcp.pop 16.0
    %v1230 = vmul.f32 %v1207, %v1229
    %v1231 = vmul.f32 %v1214, %v1229
    %v1232 = vmul.f32 %v1221, %v1229
    %v1233 = vmul.f32 %v1228, %v1229
    %v1234 = vsub.f32 %v1075, %v1230
    %v1235 = vsub.f32 %v1077, %v1231
    %v1236 = vsub.f32 %v1181, %v1232
    %v1237 = vsub.f32 %v1183, %v1233
    %v1238 = vsub.f32 %v1079, %v1230
    %v1239 = vsub.f32 %v1081, %v1231
    %v1240 = vsub.f32 %v1185, %v1232
    %v1241 = vsub.f32 %v1187, %v1233
    %v1242 = vmul.f32 %v1234, %v1234
    %v1243 = vmul.f32 %v1235, %v1235
    %v1244 = vmul.f32 %v1236, %v1236
    %v1245 = vmul.f32 %v1237, %v1237
    %v1246 = vmul.f32 %v1238, %v1238
    %v1247 = vmul.f32 %v1239, %v1239
    %v1248 = vmul.f32 %v1240, %v1240
    %v1249 = vmul.f32 %v1241, %v1241
    %v1250 = vadd.f32 %v1242, %v1246
    %v1251 = vrot.slane %v1250, 4
    %v1252 = vadd.f32 %v1250, %v1251
    %v1253 = vrot.slane %v1252, 2
    %v1254 = vadd.f32 %v1252, %v1253
    %v1255 = vrot.slane %v1254, 1
    %v1256 = vadd.f32 %v1254, %v1255
    %v1257 = vadd.f32 %v1243, %v1247
    %v1258 = vrot.slane %v1257, 4
    %v1259 = vadd.f32 %v1257, %v1258
    %v1260 = vrot.slane %v1259, 2
    %v1261 = vadd.f32 %v1259, %v1260
    %v1262 = vrot.slane %v1261, 1
    %v1263 = vadd.f32 %v1261, %v1262
    %v1264 = vadd.f32 %v1244, %v1248
    %v1265 = vrot.slane %v1264, 4
    %v1266 = vadd.f32 %v1264, %v1265
    %v1267 = vrot.slane %v1266, 2
    %v1268 = vadd.f32 %v1266, %v1267
    %v1269 = vrot.slane %v1268, 1
    %v1270 = vadd.f32 %v1268, %v1269
    %v1271 = vadd.f32 %v1245, %v1249
    %v1272 = vrot.slane %v1271, 4
    %v1273 = vadd.f32 %v1271, %v1272
    %v1274 = vrot.slane %v1273, 2
    %v1275 = vadd.f32 %v1273, %v1274
    %v1276 = vrot.slane %v1275, 1
    %v1277 = vadd.f32 %v1275, %v1276
    %v1278 = vmul.f32 %v1256, %v1229
    %v1279 = vmul.f32 %v1263, %v1229
    %v1280 = vmul.f32 %v1270, %v1229
    %v1281 = vmul.f32 %v1277, %v1229
    %v1282 = vadd.f32 %v1278, 1e-05
    %v1283 = vadd.f32 %v1279, 1e-05
    %v1284 = vadd.f32 %v1280, 1e-05
    %v1285 = vadd.f32 %v1281, 1e-05
    %v1286 = vrsqrt.pop %v1282
    %v1287 = vrsqrt.pop %v1283
    %v1288 = vrsqrt.pop %v1284
    %v1289 = vrsqrt.pop %v1285
    %v1290 = vmul.f32 %v1234, %v1286
    %v1291 = vmul.f32 %v1235, %v1287
    %v1292 = vmul.f32 %v1236, %v1288
    %v1293 = vmul.f32 %v1237, %v1289
    %v1294 = vmul.f32 %v1238, %v1286
    %v1295 = vmul.f32 %v1239, %v1287
    %v1296 = vmul.f32 %v1240, %v1288
    %v1297 = vmul.f32 %v1241, %v1289
    %v1298 = vadd.f32 %v1085, %v1089
    %v1299 = vrot.slane %v1298, 4
    %v1300 = vadd.f32 %v1298, %v1299
    %v1301 = vrot.slane %v1300, 2
    %v1302 = vadd.f32 %v1300, %v1301
    %v1303 = vrot.slane %v1302, 1
    %v1304 = vadd.f32 %v1302, %v1303
    %v1305 = vadd.f32 %v1087, %v1091
    %v1306 = vrot.slane %v1305, 4
    %v1307 = vadd.f32 %v1305, %v1306
    %v1308 = vrot.slane %v1307, 2
    %v1309 = vadd.f32 %v1307, %v1308
    %v1310 = vrot.slane %v1309, 1
    %v1311 = vadd.f32 %v1309, %v1310
    %v1312 = vadd.f32 %v1191, %v1195
    %v1313 = vrot.slane %v1312, 4
    %v1314 = vadd.f32 %v1312, %v1313
    %v1315 = vrot.slane %v1314, 2
    %v1316 = vadd.f32 %v1314, %v1315
    %v1317 = vrot.slane %v1316, 1
    %v1318 = vadd.f32 %v1316, %v1317
    %v1319 = vadd.f32 %v1193, %v1197
    %v1320 = vrot.slane %v1319, 4
    %v1321 = vadd.f32 %v1319, %v1320
    %v1322 = vrot.slane %v1321, 2
    %v1323 = vadd.f32 %v1321, %v1322
    %v1324 = vrot.slane %v1323, 1
    %v1325 = vadd.f32 %v1323, %v1324
    %v1326 = vmul.f32 %v1304, %v1229
    %v1327 = vmul.f32 %v1311, %v1229
    %v1328 = vmul.f32 %v1318, %v1229
    %v1329 = vmul.f32 %v1325, %v1229
    %v1330 = vsub.f32 %v1085, %v1326
    %v1331 = vsub.f32 %v1087, %v1327
    %v1332 = vsub.f32 %v1191, %v1328
    %v1333 = vsub.f32 %v1193, %v1329
    %v1334 = vsub.f32 %v1089, %v1326
    %v1335 = vsub.f32 %v1091, %v1327
    %v1336 = vsub.f32 %v1195, %v1328
    %v1337 = vsub.f32 %v1197, %v1329
    %v1338 = vmul.f32 %v1330, %v1330
    %v1339 = vmul.f32 %v1331, %v1331
    %v1340 = vmul.f32 %v1332, %v1332
    %v1341 = vmul.f32 %v1333, %v1333
    %v1342 = vmul.f32 %v1334, %v1334
    %v1343 = vmul.f32 %v1335, %v1335
    %v1344 = vmul.f32 %v1336, %v1336
    %v1345 = vmul.f32 %v1337, %v1337
    %v1346 = vadd.f32 %v1338, %v1342
    %v1347 = vrot.slane %v1346, 4
    %v1348 = vadd.f32 %v1346, %v1347
    %v1349 = vrot.slane %v1348, 2
    %v1350 = vadd.f32 %v1348, %v1349
    %v1351 = vrot.slane %v1350, 1
    %v1352 = vadd.f32 %v1350, %v1351
    %v1353 = vadd.f32 %v1339, %v1343
    %v1354 = vrot.slane %v1353, 4
    %v1355 = vadd.f32 %v1353, %v1354
    %v1356 = vrot.slane %v1355, 2
    %v1357 = vadd.f32 %v1355, %v1356
    %v1358 = vrot.slane %v1357, 1
    %v1359 = vadd.f32 %v1357, %v1358
    %v1360 = vadd.f32 %v1340, %v1344
    %v1361 = vrot.slane %v1360, 4
    %v1362 = vadd.f32 %v1360, %v1361
    %v1363 = vrot.slane %v1362, 2
    %v1364 = vadd.f32 %v1362, %v1363
    %v1365 = vrot.slane %v1364, 1
    %v1366 = vadd.f32 %v1364, %v1365
    %v1367 = vadd.f32 %v1341, %v1345
    %v1368 = vrot.slane %v1367, 4
    %v1369 = vadd.f32 %v1367, %v1368
    %v1370 = vrot.slane %v1369, 2
    %v1371 = vadd.f32 %v1369, %v1370
    %v1372 = vrot.slane %v1371, 1
    %v1373 = vadd.f32 %v1371, %v1372
    %v1374 = vmul.f32 %v1352, %v1229
    %v1375 = vmul.f32 %v1359, %v1229
    %v1376 = vmul.f32 %v1366, %v1229
    %v1377 = vmul.f32 %v1373, %v1229
    %v1378 = vadd.f32 %v1374, 1e-05
    %v1379 = vadd.f32 %v1375, 1e-05
    %v1380 = vadd.f32 %v1376, 1e-05
    %v1381 = vadd.f32 %v1377, 1e-05
    %v1382 = vrsqrt.pop %v1378
    %v1383 = vrsqrt.pop %v1379
    %v1384 = vrsqrt.pop %v1380
    %v1385 = vrsqrt.pop %v1381
    %v1386 = vmul.f32 %v1330, %v1382
    %v1387 = vmul.f32 %v1331, %v1383
    %v1388 = vmul.f32 %v1332, %v1384
    %v1389 = vmul.f32 %v1333, %v1385
    %v1390 = vmul.f32 %v1334, %v1382
    %v1391 = vmul.f32 %v1335, %v1383
    %v1392 = vmul.f32 %v1336, %v1384
    %v1393 = vmul.f32 %v1337, %v1385
    %v1395 = vlaneseq
    %v1396 = vshrl.u32 %v1395, 7
    %v1397 = vsub.s32 0, %v1396
    %v1398 = vrot.slane %v1199, %v1397
    %v1399 = vlaneseq
    %v1400 = vshrl.u32 %v1399, 7
    %v1401 = vsub.s32 1, %v1400
    %v1402 = vrot.slane %v1199, %v1401
    %v1403 = vlaneseq
    %v1404 = vshrl.u32 %v1403, 7
    %v1405 = vsub.s32 2, %v1404
    %v1406 = vrot.slane %v1199, %v1405
    %v1407 = vlaneseq
    %v1408 = vshrl.u32 %v1407, 7
    %v1409 = vsub.s32 3, %v1408
    %v1410 = vrot.slane %v1199, %v1409
    %v1415 = vmul.f32 %v1290, %v1398
    %v1416 = vmul.f32 %v1291, %v1402
    %v1417 = vmul.f32 %v1292, %v1406
    %v1418 = vmul.f32 %v1293, %v1410
    %v1419 = vmul.f32 %v1294, %v1398
    %v1420 = vmul.f32 %v1295, %v1402
    %v1421 = vmul.f32 %v1296, %v1406
    %v1422 = vmul.f32 %v1297, %v1410
    %v1423 = vmul.f32 %v1386, %v1398
    %v1424 = vmul.f32 %v1387, %v1402
    %v1425 = vmul.f32 %v1388, %v1406
    %v1426 = vmul.f32 %v1389, %v1410
    %v1427 = vmul.f32 %v1390, %v1398
    %v1428 = vmul.f32 %v1391, %v1402
    %v1429 = vmul.f32 %v1392, %v1406
    %v1430 = vmul.f32 %v1393, %v1410
    %v1432 = vlaneseq
    %v1433 = vshrl.u32 %v1432, 7
    %v1434 = vsub.s32 0, %v1433
    %v1435 = vrot.slane %v1200, %v1434
    %v1436 = vlaneseq
    %v1437 = vshrl.u32 %v1436, 7
    %v1438 = vsub.s32 1, %v1437
    %v1439 = vrot.slane %v1200, %v1438
    %v1440 = vlaneseq
    %v1441 = vshrl.u32 %v1440, 7
    %v1442 = vsub.s32 2, %v1441
    %v1443 = vrot.slane %v1200, %v1442
    %v1444 = vlaneseq
    %v1445 = vshrl.u32 %v1444, 7
    %v1446 = vsub.s32 3, %v1445
    %v1447 = vrot.slane %v1200, %v1446
    %v1452 = vadd.f32 %v1415, %v1435
    %v1453 = vadd.f32 %v1416, %v1439
    %v1454 = vadd.f32 %v1417, %v1443
    %v1455 = vadd.f32 %v1418, %v1447
    %v1456 = vadd.f32 %v1419, %v1435
    %v1457 = vadd.f32 %v1420, %v1439
    %v1458 = vadd.f32 %v1421, %v1443
    %v1459 = vadd.f32 %v1422, %v1447
    %v1460 = vadd.f32 %v1423, %v1435
    %v1461 = vadd.f32 %v1424, %v1439
    %v1462 = vadd.f32 %v1425, %v1443
    %v1463 = vadd.f32 %v1426, %v1447
    %v1464 = vadd.f32 %v1427, %v1435
    %v1465 = vadd.f32 %v1428, %v1439
    %v1466 = vadd.f32 %v1429, %v1443
    %v1467 = vadd.f32 %v1430, %v1447
    %s1468 = sld [smem:[#allocation2]]
    %vm1469 = vcmp.ge.f32.partialorder %v1452, 0.0
    %vm1470 = vcmp.ge.f32.partialorder %v1453, 0.0
    %vm1471 = vcmp.ge.f32.partialorder %v1454, 0.0
    %vm1472 = vcmp.ge.f32.partialorder %v1455, 0.0
    %vm1473 = vcmp.ge.f32.partialorder %v1456, 0.0
    %vm1474 = vcmp.ge.f32.partialorder %v1457, 0.0
    %vm1475 = vcmp.ge.f32.partialorder %v1458, 0.0
    %vm1476 = vcmp.ge.f32.partialorder %v1459, 0.0
    %vm1477 = vcmp.ge.f32.partialorder %v1460, 0.0
    %vm1478 = vcmp.ge.f32.partialorder %v1461, 0.0
    %vm1479 = vcmp.ge.f32.partialorder %v1462, 0.0
    %vm1480 = vcmp.ge.f32.partialorder %v1463, 0.0
    %vm1481 = vcmp.ge.f32.partialorder %v1464, 0.0
    %vm1482 = vcmp.ge.f32.partialorder %v1465, 0.0
    %vm1483 = vcmp.ge.f32.partialorder %v1466, 0.0
    %vm1484 = vcmp.ge.f32.partialorder %v1467, 0.0
    %v1485 = vstv %s1468
    %v1486 = vmul.f32 %v1485, %v1452
    %v1487 = vmul.f32 %v1485, %v1453
    %v1488 = vmul.f32 %v1485, %v1454
    %v1489 = vmul.f32 %v1485, %v1455
    %v1490 = vmul.f32 %v1485, %v1456
    %v1491 = vmul.f32 %v1485, %v1457
    %v1492 = vmul.f32 %v1485, %v1458
    %v1493 = vmul.f32 %v1485, %v1459
    %v1494 = vmul.f32 %v1485, %v1460
    %v1495 = vmul.f32 %v1485, %v1461
    %v1496 = vmul.f32 %v1485, %v1462
    %v1497 = vmul.f32 %v1485, %v1463
    %v1498 = vmul.f32 %v1485, %v1464
    %v1499 = vmul.f32 %v1485, %v1465
    %v1500 = vmul.f32 %v1485, %v1466
    %v1501 = vmul.f32 %v1485, %v1467
    %v1502 = vsel %vm1469, %v1452, %v1486
    %v1503 = vsel %vm1470, %v1453, %v1487
    %v1504 = vsel %vm1471, %v1454, %v1488
    %v1505 = vsel %vm1472, %v1455, %v1489
    %v1506 = vsel %vm1473, %v1456, %v1490
    %v1507 = vsel %vm1474, %v1457, %v1491
    %v1508 = vsel %vm1475, %v1458, %v1492
    %v1509 = vsel %vm1476, %v1459, %v1493
    %v1510 = vsel %vm1477, %v1460, %v1494
    %v1511 = vsel %vm1478, %v1461, %v1495
    %v1512 = vsel %vm1479, %v1462, %v1496
    %v1513 = vsel %vm1480, %v1463, %v1497
    %v1514 = vsel %vm1481, %v1464, %v1498
    %v1515 = vsel %vm1482, %v1465, %v1499
    %v1516 = vsel %vm1483, %v1466, %v1500
    %v1517 = vsel %vm1484, %v1467, %v1501
    %s1518 = scalar_lea.vmem [#allocation11], 1024
    %v1519 = vld [vmem:[%s1518] sm:$0xff]
    %v1520 = vld [vmem:[%s1518 + $0x8] sm:$0xff]
    %v1521 = vld [vmem:[%s1518 + $0x10] sm:$0xff]
    %v1522 = vld [vmem:[%s1518 + $0x18] sm:$0xff]
    %v1523 = vld [vmem:[%s1518 + $0x20] sm:$0xff]
    %v1524 = vld [vmem:[%s1518 + $0x28] sm:$0xff]
    %v1525 = vld [vmem:[%s1518 + $0x30] sm:$0xff]
    %v1526 = vld [vmem:[%s1518 + $0x38] sm:$0xff]
    %v1527 = vld [vmem:[%s1518 + $0x40] sm:$0xff]
    %v1528 = vld [vmem:[%s1518 + $0x48] sm:$0xff]
    %v1529 = vld [vmem:[%s1518 + $0x50] sm:$0xff]
    %v1530 = vld [vmem:[%s1518 + $0x58] sm:$0xff]
    %v1531 = vld [vmem:[%s1518 + $0x60] sm:$0xff]
    %v1532 = vld [vmem:[%s1518 + $0x68] sm:$0xff]
    %v1533 = vld [vmem:[%s1518 + $0x70] sm:$0xff]
    %v1534 = vld [vmem:[%s1518 + $0x78] sm:$0xff]
    %v1535 = vld [vmem:[%s1518 + $0x80] sm:$0xff]
    %v1536 = vld [vmem:[%s1518 + $0x88] sm:$0xff]
    %v1537 = vld [vmem:[%s1518 + $0x90] sm:$0xff]
    %v1538 = vld [vmem:[%s1518 + $0x98] sm:$0xff]
    %v1539 = vld [vmem:[%s1518 + $0xa0] sm:$0xff]
    %v1540 = vld [vmem:[%s1518 + $0xa8] sm:$0xff]
    %v1541 = vld [vmem:[%s1518 + $0xb0] sm:$0xff]
    %v1542 = vld [vmem:[%s1518 + $0xb8] sm:$0xff]
    %v1543 = vld [vmem:[%s1518 + $0xc0] sm:$0xff]
    %v1544 = vld [vmem:[%s1518 + $0xc8] sm:$0xff]
    %v1545 = vld [vmem:[%s1518 + $0xd0] sm:$0xff]
    %v1546 = vld [vmem:[%s1518 + $0xd8] sm:$0xff]
    %v1547 = vld [vmem:[%s1518 + $0xe0] sm:$0xff]
    %v1548 = vld [vmem:[%s1518 + $0xe8] sm:$0xff]
    %v1549 = vld [vmem:[%s1518 + $0xf0] sm:$0xff]
    %v1550 = vld [vmem:[%s1518 + $0xf8] sm:$0xff]
    %v1551 = vld [vmem:[%s1518 + $0x100] sm:$0xff]
    %v1552 = vld [vmem:[%s1518 + $0x108] sm:$0xff]
    %v1553 = vld [vmem:[%s1518 + $0x110] sm:$0xff]
    %v1554 = vld [vmem:[%s1518 + $0x118] sm:$0xff]
    %v1555 = vld [vmem:[%s1518 + $0x120] sm:$0xff]
    %v1556 = vld [vmem:[%s1518 + $0x128] sm:$0xff]
    %v1557 = vld [vmem:[%s1518 + $0x130] sm:$0xff]
    %v1558 = vld [vmem:[%s1518 + $0x138] sm:$0xff]
    %v1559 = vld [vmem:[%s1518 + $0x140] sm:$0xff]
    %v1560 = vld [vmem:[%s1518 + $0x148] sm:$0xff]
    %v1561 = vld [vmem:[%s1518 + $0x150] sm:$0xff]
    %v1562 = vld [vmem:[%s1518 + $0x158] sm:$0xff]
    %v1563 = vld [vmem:[%s1518 + $0x160] sm:$0xff]
    %v1564 = vld [vmem:[%s1518 + $0x168] sm:$0xff]
    %v1565 = vld [vmem:[%s1518 + $0x170] sm:$0xff]
    %v1566 = vld [vmem:[%s1518 + $0x178] sm:$0xff]
    %v1567 = vld [vmem:[%s1518 + $0x180] sm:$0xff]
    %v1568 = vld [vmem:[%s1518 + $0x188] sm:$0xff]
    %v1569 = vld [vmem:[%s1518 + $0x190] sm:$0xff]
    %v1570 = vld [vmem:[%s1518 + $0x198] sm:$0xff]
    %v1571 = vld [vmem:[%s1518 + $0x1a0] sm:$0xff]
    %v1572 = vld [vmem:[%s1518 + $0x1a8] sm:$0xff]
    %v1573 = vld [vmem:[%s1518 + $0x1b0] sm:$0xff]
    %v1574 = vld [vmem:[%s1518 + $0x1b8] sm:$0xff]
    %v1575 = vld [vmem:[%s1518 + $0x1c0] sm:$0xff]
    %v1576 = vld [vmem:[%s1518 + $0x1c8] sm:$0xff]
    %v1577 = vld [vmem:[%s1518 + $0x1d0] sm:$0xff]
    %v1578 = vld [vmem:[%s1518 + $0x1d8] sm:$0xff]
    %v1579 = vld [vmem:[%s1518 + $0x1e0] sm:$0xff]
    %v1580 = vld [vmem:[%s1518 + $0x1e8] sm:$0xff]
    %v1581 = vld [vmem:[%s1518 + $0x1f0] sm:$0xff]
    %v1582 = vld [vmem:[%s1518 + $0x1f8] sm:$0xff]
    %v1583 = vld [vmem:[%s1518 + $0x200] sm:$0xff]
    %v1584 = vld [vmem:[%s1518 + $0x208] sm:$0xff]
    %v1585 = vld [vmem:[%s1518 + $0x210] sm:$0xff]
    %v1586 = vld [vmem:[%s1518 + $0x218] sm:$0xff]
    %v1587 = vld [vmem:[%s1518 + $0x220] sm:$0xff]
    %v1588 = vld [vmem:[%s1518 + $0x228] sm:$0xff]
    %v1589 = vld [vmem:[%s1518 + $0x230] sm:$0xff]
    %v1590 = vld [vmem:[%s1518 + $0x238] sm:$0xff]
    %v1591 = vld [vmem:[%s1518 + $0x240] sm:$0xff]
    %v1592 = vld [vmem:[%s1518 + $0x248] sm:$0xff]
    %v1593 = vld [vmem:[%s1518 + $0x250] sm:$0xff]
    %v1594 = vld [vmem:[%s1518 + $0x258] sm:$0xff]
    %v1595 = vld [vmem:[%s1518 + $0x260] sm:$0xff]
    %v1596 = vld [vmem:[%s1518 + $0x268] sm:$0xff]
    %v1597 = vld [vmem:[%s1518 + $0x270] sm:$0xff]
    %v1598 = vld [vmem:[%s1518 + $0x278] sm:$0xff]
    %v1599 = vld [vmem:[%s1518 + $0x280] sm:$0xff]
    %v1600 = vld [vmem:[%s1518 + $0x288] sm:$0xff]
    %v1601 = vld [vmem:[%s1518 + $0x290] sm:$0xff]
    %v1602 = vld [vmem:[%s1518 + $0x298] sm:$0xff]
    %v1603 = vld [vmem:[%s1518 + $0x2a0] sm:$0xff]
    %v1604 = vld [vmem:[%s1518 + $0x2a8] sm:$0xff]
    %v1605 = vld [vmem:[%s1518 + $0x2b0] sm:$0xff]
    %v1606 = vld [vmem:[%s1518 + $0x2b8] sm:$0xff]
    %v1607 = vld [vmem:[%s1518 + $0x2c0] sm:$0xff]
    %v1608 = vld [vmem:[%s1518 + $0x2c8] sm:$0xff]
    %v1609 = vld [vmem:[%s1518 + $0x2d0] sm:$0xff]
    %v1610 = vld [vmem:[%s1518 + $0x2d8] sm:$0xff]
    %v1611 = vld [vmem:[%s1518 + $0x2e0] sm:$0xff]
    %v1612 = vld [vmem:[%s1518 + $0x2e8] sm:$0xff]
    %v1613 = vld [vmem:[%s1518 + $0x2f0] sm:$0xff]
    %v1614 = vld [vmem:[%s1518 + $0x2f8] sm:$0xff]
    %v1615 = vld [vmem:[%s1518 + $0x300] sm:$0xff]
    %v1616 = vld [vmem:[%s1518 + $0x308] sm:$0xff]
    %v1617 = vld [vmem:[%s1518 + $0x310] sm:$0xff]
    %v1618 = vld [vmem:[%s1518 + $0x318] sm:$0xff]
    %v1619 = vld [vmem:[%s1518 + $0x320] sm:$0xff]
    %v1620 = vld [vmem:[%s1518 + $0x328] sm:$0xff]
    %v1621 = vld [vmem:[%s1518 + $0x330] sm:$0xff]
    %v1622 = vld [vmem:[%s1518 + $0x338] sm:$0xff]
    %v1623 = vld [vmem:[%s1518 + $0x340] sm:$0xff]
    %v1624 = vld [vmem:[%s1518 + $0x348] sm:$0xff]
    %v1625 = vld [vmem:[%s1518 + $0x350] sm:$0xff]
    %v1626 = vld [vmem:[%s1518 + $0x358] sm:$0xff]
    %v1627 = vld [vmem:[%s1518 + $0x360] sm:$0xff]
    %v1628 = vld [vmem:[%s1518 + $0x368] sm:$0xff]
    %v1629 = vld [vmem:[%s1518 + $0x370] sm:$0xff]
    %v1630 = vld [vmem:[%s1518 + $0x378] sm:$0xff]
    %v1631 = vld [vmem:[%s1518 + $0x380] sm:$0xff]
    %v1632 = vld [vmem:[%s1518 + $0x388] sm:$0xff]
    %v1633 = vld [vmem:[%s1518 + $0x390] sm:$0xff]
    %v1634 = vld [vmem:[%s1518 + $0x398] sm:$0xff]
    %v1635 = vld [vmem:[%s1518 + $0x3a0] sm:$0xff]
    %v1636 = vld [vmem:[%s1518 + $0x3a8] sm:$0xff]
    %v1637 = vld [vmem:[%s1518 + $0x3b0] sm:$0xff]
    %v1638 = vld [vmem:[%s1518 + $0x3b8] sm:$0xff]
    %v1639 = vld [vmem:[%s1518 + $0x3c0] sm:$0xff]
    %v1640 = vld [vmem:[%s1518 + $0x3c8] sm:$0xff]
    %v1641 = vld [vmem:[%s1518 + $0x3d0] sm:$0xff]
    %v1642 = vld [vmem:[%s1518 + $0x3d8] sm:$0xff]
    %v1643 = vld [vmem:[%s1518 + $0x3e0] sm:$0xff]
    %v1644 = vld [vmem:[%s1518 + $0x3e8] sm:$0xff]
    %v1645 = vld [vmem:[%s1518 + $0x3f0] sm:$0xff]
    %v1646 = vld [vmem:[%s1518 + $0x3f8] sm:$0xff]
    %v1647 = vpack.c.bf16 %v1506, %v1502
    %v1648 = vpack.c.bf16 %v1507, %v1503
    %v1649 = vpack.c.bf16 %v1508, %v1504
    %v1650 = vpack.c.bf16 %v1509, %v1505
    %v1651 = vpack.c.bf16 %v1514, %v1510
    %v1652 = vpack.c.bf16 %v1515, %v1511
    %v1653 = vpack.c.bf16 %v1516, %v1512
    %v1654 = vpack.c.bf16 %v1517, %v1513
    %v1783 = vunpack.c.l.b16 %v1519
    %v1784 = vunpack.c.h.b16 %v1519
    %v1785 = vunpack.c.l.b16 %v1520
    %v1786 = vunpack.c.h.b16 %v1520
    %v1787 = vunpack.c.l.b16 %v1521
    %v1788 = vunpack.c.h.b16 %v1521
    %v1789 = vunpack.c.l.b16 %v1522
    %v1790 = vunpack.c.h.b16 %v1522
    %v1791 = vunpack.c.l.b16 %v1523
    %v1792 = vunpack.c.h.b16 %v1523
    %v1793 = vunpack.c.l.b16 %v1524
    %v1794 = vunpack.c.h.b16 %v1524
    %v1795 = vunpack.c.l.b16 %v1525
    %v1796 = vunpack.c.h.b16 %v1525
    %v1797 = vunpack.c.l.b16 %v1526
    %v1798 = vunpack.c.h.b16 %v1526
    %v1799 = vunpack.c.l.b16 %v1527
    %v1800 = vunpack.c.h.b16 %v1527
    %v1801 = vunpack.c.l.b16 %v1528
    %v1802 = vunpack.c.h.b16 %v1528
    %v1803 = vunpack.c.l.b16 %v1529
    %v1804 = vunpack.c.h.b16 %v1529
    %v1805 = vunpack.c.l.b16 %v1530
    %v1806 = vunpack.c.h.b16 %v1530
    %v1807 = vunpack.c.l.b16 %v1531
    %v1808 = vunpack.c.h.b16 %v1531
    %v1809 = vunpack.c.l.b16 %v1532
    %v1810 = vunpack.c.h.b16 %v1532
    %v1811 = vunpack.c.l.b16 %v1533
    %v1812 = vunpack.c.h.b16 %v1533
    %v1813 = vunpack.c.l.b16 %v1534
    %v1814 = vunpack.c.h.b16 %v1534
    %v1815 = vunpack.c.l.b16 %v1535
    %v1816 = vunpack.c.h.b16 %v1535
    %v1817 = vunpack.c.l.b16 %v1536
    %v1818 = vunpack.c.h.b16 %v1536
    %v1819 = vunpack.c.l.b16 %v1537
    %v1820 = vunpack.c.h.b16 %v1537
    %v1821 = vunpack.c.l.b16 %v1538
    %v1822 = vunpack.c.h.b16 %v1538
    %v1823 = vunpack.c.l.b16 %v1539
    %v1824 = vunpack.c.h.b16 %v1539
    %v1825 = vunpack.c.l.b16 %v1540
    %v1826 = vunpack.c.h.b16 %v1540
    %v1827 = vunpack.c.l.b16 %v1541
    %v1828 = vunpack.c.h.b16 %v1541
    %v1829 = vunpack.c.l.b16 %v1542
    %v1830 = vunpack.c.h.b16 %v1542
    %v1831 = vunpack.c.l.b16 %v1543
    %v1832 = vunpack.c.h.b16 %v1543
    %v1833 = vunpack.c.l.b16 %v1544
    %v1834 = vunpack.c.h.b16 %v1544
    %v1835 = vunpack.c.l.b16 %v1545
    %v1836 = vunpack.c.h.b16 %v1545
    %v1837 = vunpack.c.l.b16 %v1546
    %v1838 = vunpack.c.h.b16 %v1546
    %v1839 = vunpack.c.l.b16 %v1547
    %v1840 = vunpack.c.h.b16 %v1547
    %v1841 = vunpack.c.l.b16 %v1548
    %v1842 = vunpack.c.h.b16 %v1548
    %v1843 = vunpack.c.l.b16 %v1549
    %v1844 = vunpack.c.h.b16 %v1549
    %v1845 = vunpack.c.l.b16 %v1550
    %v1846 = vunpack.c.h.b16 %v1550
    %v1847 = vunpack.c.l.b16 %v1551
    %v1848 = vunpack.c.h.b16 %v1551
    %v1849 = vunpack.c.l.b16 %v1552
    %v1850 = vunpack.c.h.b16 %v1552
    %v1851 = vunpack.c.l.b16 %v1553
    %v1852 = vunpack.c.h.b16 %v1553
    %v1853 = vunpack.c.l.b16 %v1554
    %v1854 = vunpack.c.h.b16 %v1554
    %v1855 = vunpack.c.l.b16 %v1555
    %v1856 = vunpack.c.h.b16 %v1555
    %v1857 = vunpack.c.l.b16 %v1556
    %v1858 = vunpack.c.h.b16 %v1556
    %v1859 = vunpack.c.l.b16 %v1557
    %v1860 = vunpack.c.h.b16 %v1557
    %v1861 = vunpack.c.l.b16 %v1558
    %v1862 = vunpack.c.h.b16 %v1558
    %v1863 = vunpack.c.l.b16 %v1559
    %v1864 = vunpack.c.h.b16 %v1559
    %v1865 = vunpack.c.l.b16 %v1560
    %v1866 = vunpack.c.h.b16 %v1560
    %v1867 = vunpack.c.l.b16 %v1561
    %v1868 = vunpack.c.h.b16 %v1561
    %v1869 = vunpack.c.l.b16 %v1562
    %v1870 = vunpack.c.h.b16 %v1562
    %v1871 = vunpack.c.l.b16 %v1563
    %v1872 = vunpack.c.h.b16 %v1563
    %v1873 = vunpack.c.l.b16 %v1564
    %v1874 = vunpack.c.h.b16 %v1564
    %v1875 = vunpack.c.l.b16 %v1565
    %v1876 = vunpack.c.h.b16 %v1565
    %v1877 = vunpack.c.l.b16 %v1566
    %v1878 = vunpack.c.h.b16 %v1566
    %v1879 = vunpack.c.l.b16 %v1567
    %v1880 = vunpack.c.h.b16 %v1567
    %v1881 = vunpack.c.l.b16 %v1568
    %v1882 = vunpack.c.h.b16 %v1568
    %v1883 = vunpack.c.l.b16 %v1569
    %v1884 = vunpack.c.h.b16 %v1569
    %v1885 = vunpack.c.l.b16 %v1570
    %v1886 = vunpack.c.h.b16 %v1570
    %v1887 = vunpack.c.l.b16 %v1571
    %v1888 = vunpack.c.h.b16 %v1571
    %v1889 = vunpack.c.l.b16 %v1572
    %v1890 = vunpack.c.h.b16 %v1572
    %v1891 = vunpack.c.l.b16 %v1573
    %v1892 = vunpack.c.h.b16 %v1573
    %v1893 = vunpack.c.l.b16 %v1574
    %v1894 = vunpack.c.h.b16 %v1574
    %v1895 = vunpack.c.l.b16 %v1575
    %v1896 = vunpack.c.h.b16 %v1575
    %v1897 = vunpack.c.l.b16 %v1576
    %v1898 = vunpack.c.h.b16 %v1576
    %v1899 = vunpack.c.l.b16 %v1577
    %v1900 = vunpack.c.h.b16 %v1577
    %v1901 = vunpack.c.l.b16 %v1578
    %v1902 = vunpack.c.h.b16 %v1578
    %v1903 = vunpack.c.l.b16 %v1579
    %v1904 = vunpack.c.h.b16 %v1579
    %v1905 = vunpack.c.l.b16 %v1580
    %v1906 = vunpack.c.h.b16 %v1580
    %v1907 = vunpack.c.l.b16 %v1581
    %v1908 = vunpack.c.h.b16 %v1581
    %v1909 = vunpack.c.l.b16 %v1582
    %v1910 = vunpack.c.h.b16 %v1582
    %v1911 = vunpack.c.l.b16 %v1583
    %v1912 = vunpack.c.h.b16 %v1583
    %v1913 = vunpack.c.l.b16 %v1584
    %v1914 = vunpack.c.h.b16 %v1584
    %v1915 = vunpack.c.l.b16 %v1585
    %v1916 = vunpack.c.h.b16 %v1585
    %v1917 = vunpack.c.l.b16 %v1586
    %v1918 = vunpack.c.h.b16 %v1586
    %v1919 = vunpack.c.l.b16 %v1587
    %v1920 = vunpack.c.h.b16 %v1587
    %v1921 = vunpack.c.l.b16 %v1588
    %v1922 = vunpack.c.h.b16 %v1588
    %v1923 = vunpack.c.l.b16 %v1589
    %v1924 = vunpack.c.h.b16 %v1589
    %v1925 = vunpack.c.l.b16 %v1590
    %v1926 = vunpack.c.h.b16 %v1590
    %v1927 = vunpack.c.l.b16 %v1591
    %v1928 = vunpack.c.h.b16 %v1591
    %v1929 = vunpack.c.l.b16 %v1592
    %v1930 = vunpack.c.h.b16 %v1592
    %v1931 = vunpack.c.l.b16 %v1593
    %v1932 = vunpack.c.h.b16 %v1593
    %v1933 = vunpack.c.l.b16 %v1594
    %v1934 = vunpack.c.h.b16 %v1594
    %v1935 = vunpack.c.l.b16 %v1595
    %v1936 = vunpack.c.h.b16 %v1595
    %v1937 = vunpack.c.l.b16 %v1596
    %v1938 = vunpack.c.h.b16 %v1596
    %v1939 = vunpack.c.l.b16 %v1597
    %v1940 = vunpack.c.h.b16 %v1597
    %v1941 = vunpack.c.l.b16 %v1598
    %v1942 = vunpack.c.h.b16 %v1598
    %v1943 = vunpack.c.l.b16 %v1599
    %v1944 = vunpack.c.h.b16 %v1599
    %v1945 = vunpack.c.l.b16 %v1600
    %v1946 = vunpack.c.h.b16 %v1600
    %v1947 = vunpack.c.l.b16 %v1601
    %v1948 = vunpack.c.h.b16 %v1601
    %v1949 = vunpack.c.l.b16 %v1602
    %v1950 = vunpack.c.h.b16 %v1602
    %v1951 = vunpack.c.l.b16 %v1603
    %v1952 = vunpack.c.h.b16 %v1603
    %v1953 = vunpack.c.l.b16 %v1604
    %v1954 = vunpack.c.h.b16 %v1604
    %v1955 = vunpack.c.l.b16 %v1605
    %v1956 = vunpack.c.h.b16 %v1605
    %v1957 = vunpack.c.l.b16 %v1606
    %v1958 = vunpack.c.h.b16 %v1606
    %v1959 = vunpack.c.l.b16 %v1607
    %v1960 = vunpack.c.h.b16 %v1607
    %v1961 = vunpack.c.l.b16 %v1608
    %v1962 = vunpack.c.h.b16 %v1608
    %v1963 = vunpack.c.l.b16 %v1609
    %v1964 = vunpack.c.h.b16 %v1609
    %v1965 = vunpack.c.l.b16 %v1610
    %v1966 = vunpack.c.h.b16 %v1610
    %v1967 = vunpack.c.l.b16 %v1611
    %v1968 = vunpack.c.h.b16 %v1611
    %v1969 = vunpack.c.l.b16 %v1612
    %v1970 = vunpack.c.h.b16 %v1612
    %v1971 = vunpack.c.l.b16 %v1613
    %v1972 = vunpack.c.h.b16 %v1613
    %v1973 = vunpack.c.l.b16 %v1614
    %v1974 = vunpack.c.h.b16 %v1614
    %v1975 = vunpack.c.l.b16 %v1615
    %v1976 = vunpack.c.h.b16 %v1615
    %v1977 = vunpack.c.l.b16 %v1616
    %v1978 = vunpack.c.h.b16 %v1616
    %v1979 = vunpack.c.l.b16 %v1617
    %v1980 = vunpack.c.h.b16 %v1617
    %v1981 = vunpack.c.l.b16 %v1618
    %v1982 = vunpack.c.h.b16 %v1618
    %v1983 = vunpack.c.l.b16 %v1619
    %v1984 = vunpack.c.h.b16 %v1619
    %v1985 = vunpack.c.l.b16 %v1620
    %v1986 = vunpack.c.h.b16 %v1620
    %v1987 = vunpack.c.l.b16 %v1621
    %v1988 = vunpack.c.h.b16 %v1621
    %v1989 = vunpack.c.l.b16 %v1622
    %v1990 = vunpack.c.h.b16 %v1622
    %v1991 = vunpack.c.l.b16 %v1623
    %v1992 = vunpack.c.h.b16 %v1623
    %v1993 = vunpack.c.l.b16 %v1624
    %v1994 = vunpack.c.h.b16 %v1624
    %v1995 = vunpack.c.l.b16 %v1625
    %v1996 = vunpack.c.h.b16 %v1625
    %v1997 = vunpack.c.l.b16 %v1626
    %v1998 = vunpack.c.h.b16 %v1626
    %v1999 = vunpack.c.l.b16 %v1627
    %v2000 = vunpack.c.h.b16 %v1627
    %v2001 = vunpack.c.l.b16 %v1628
    %v2002 = vunpack.c.h.b16 %v1628
    %v2003 = vunpack.c.l.b16 %v1629
    %v2004 = vunpack.c.h.b16 %v1629
    %v2005 = vunpack.c.l.b16 %v1630
    %v2006 = vunpack.c.h.b16 %v1630
    %v2007 = vunpack.c.l.b16 %v1631
    %v2008 = vunpack.c.h.b16 %v1631
    %v2009 = vunpack.c.l.b16 %v1632
    %v2010 = vunpack.c.h.b16 %v1632
    %v2011 = vunpack.c.l.b16 %v1633
    %v2012 = vunpack.c.h.b16 %v1633
    %v2013 = vunpack.c.l.b16 %v1634
    %v2014 = vunpack.c.h.b16 %v1634
    %v2015 = vunpack.c.l.b16 %v1635
    %v2016 = vunpack.c.h.b16 %v1635
    %v2017 = vunpack.c.l.b16 %v1636
    %v2018 = vunpack.c.h.b16 %v1636
    %v2019 = vunpack.c.l.b16 %v1637
    %v2020 = vunpack.c.h.b16 %v1637
    %v2021 = vunpack.c.l.b16 %v1638
    %v2022 = vunpack.c.h.b16 %v1638
    %v2023 = vunpack.c.l.b16 %v1639
    %v2024 = vunpack.c.h.b16 %v1639
    %v2025 = vunpack.c.l.b16 %v1640
    %v2026 = vunpack.c.h.b16 %v1640
    %v2027 = vunpack.c.l.b16 %v1641
    %v2028 = vunpack.c.h.b16 %v1641
    %v2029 = vunpack.c.l.b16 %v1642
    %v2030 = vunpack.c.h.b16 %v1642
    %v2031 = vunpack.c.l.b16 %v1643
    %v2032 = vunpack.c.h.b16 %v1643
    %v2033 = vunpack.c.l.b16 %v1644
    %v2034 = vunpack.c.h.b16 %v1644
    %v2035 = vunpack.c.l.b16 %v1645
    %v2036 = vunpack.c.h.b16 %v1645
    %v2037 = vunpack.c.l.b16 %v1646
    %v2038 = vunpack.c.h.b16 %v1646
    %v2039 = vpack.c.b16 %v1787, %v1783
    %v2040 = vpack.c.b16 %v1788, %v1784
    %v2041 = vpack.c.b16 %v1789, %v1785
    %v2042 = vpack.c.b16 %v1790, %v1786
    %v2043 = vpack.c.b16 %v1795, %v1791
    %v2044 = vpack.c.b16 %v1796, %v1792
    %v2045 = vpack.c.b16 %v1797, %v1793
    %v2046 = vpack.c.b16 %v1798, %v1794
    %v2047 = vpack.c.b16 %v1803, %v1799
    %v2048 = vpack.c.b16 %v1804, %v1800
    %v2049 = vpack.c.b16 %v1805, %v1801
    %v2050 = vpack.c.b16 %v1806, %v1802
    %v2051 = vpack.c.b16 %v1811, %v1807
    %v2052 = vpack.c.b16 %v1812, %v1808
    %v2053 = vpack.c.b16 %v1813, %v1809
    %v2054 = vpack.c.b16 %v1814, %v1810
    %v2055 = vpack.c.b16 %v1819, %v1815
    %v2056 = vpack.c.b16 %v1820, %v1816
    %v2057 = vpack.c.b16 %v1821, %v1817
    %v2058 = vpack.c.b16 %v1822, %v1818
    %v2059 = vpack.c.b16 %v1827, %v1823
    %v2060 = vpack.c.b16 %v1828, %v1824
    %v2061 = vpack.c.b16 %v1829, %v1825
    %v2062 = vpack.c.b16 %v1830, %v1826
    %v2063 = vpack.c.b16 %v1835, %v1831
    %v2064 = vpack.c.b16 %v1836, %v1832
    %v2065 = vpack.c.b16 %v1837, %v1833
    %v2066 = vpack.c.b16 %v1838, %v1834
    %v2067 = vpack.c.b16 %v1843, %v1839
    %v2068 = vpack.c.b16 %v1844, %v1840
    %v2069 = vpack.c.b16 %v1845, %v1841
    %v2070 = vpack.c.b16 %v1846, %v1842
    %v2071 = vpack.c.b16 %v1851, %v1847
    %v2072 = vpack.c.b16 %v1852, %v1848
    %v2073 = vpack.c.b16 %v1853, %v1849
    %v2074 = vpack.c.b16 %v1854, %v1850
    %v2075 = vpack.c.b16 %v1859, %v1855
    %v2076 = vpack.c.b16 %v1860, %v1856
    %v2077 = vpack.c.b16 %v1861, %v1857
    %v2078 = vpack.c.b16 %v1862, %v1858
    %v2079 = vpack.c.b16 %v1867, %v1863
    %v2080 = vpack.c.b16 %v1868, %v1864
    %v2081 = vpack.c.b16 %v1869, %v1865
    %v2082 = vpack.c.b16 %v1870, %v1866
    %v2083 = vpack.c.b16 %v1875, %v1871
    %v2084 = vpack.c.b16 %v1876, %v1872
    %v2085 = vpack.c.b16 %v1877, %v1873
    %v2086 = vpack.c.b16 %v1878, %v1874
    %v2087 = vpack.c.b16 %v1883, %v1879
    %v2088 = vpack.c.b16 %v1884, %v1880
    %v2089 = vpack.c.b16 %v1885, %v1881
    %v2090 = vpack.c.b16 %v1886, %v1882
    %v2091 = vpack.c.b16 %v1891, %v1887
    %v2092 = vpack.c.b16 %v1892, %v1888
    %v2093 = vpack.c.b16 %v1893, %v1889
    %v2094 = vpack.c.b16 %v1894, %v1890
    %v2095 = vpack.c.b16 %v1899, %v1895
    %v2096 = vpack.c.b16 %v1900, %v1896
    %v2097 = vpack.c.b16 %v1901, %v1897
    %v2098 = vpack.c.b16 %v1902, %v1898
    %v2099 = vpack.c.b16 %v1907, %v1903
    %v2100 = vpack.c.b16 %v1908, %v1904
    %v2101 = vpack.c.b16 %v1909, %v1905
    %v2102 = vpack.c.b16 %v1910, %v1906
    %v2103 = vpack.c.b16 %v1915, %v1911
    %v2104 = vpack.c.b16 %v1916, %v1912
    %v2105 = vpack.c.b16 %v1917, %v1913
    %v2106 = vpack.c.b16 %v1918, %v1914
    %v2107 = vpack.c.b16 %v1923, %v1919
    %v2108 = vpack.c.b16 %v1924, %v1920
    %v2109 = vpack.c.b16 %v1925, %v1921
    %v2110 = vpack.c.b16 %v1926, %v1922
    %v2111 = vpack.c.b16 %v1931, %v1927
    %v2112 = vpack.c.b16 %v1932, %v1928
    %v2113 = vpack.c.b16 %v1933, %v1929
    %v2114 = vpack.c.b16 %v1934, %v1930
    %v2115 = vpack.c.b16 %v1939, %v1935
    %v2116 = vpack.c.b16 %v1940, %v1936
    %v2117 = vpack.c.b16 %v1941, %v1937
    %v2118 = vpack.c.b16 %v1942, %v1938
    %v2119 = vpack.c.b16 %v1947, %v1943
    %v2120 = vpack.c.b16 %v1948, %v1944
    %v2121 = vpack.c.b16 %v1949, %v1945
    %v2122 = vpack.c.b16 %v1950, %v1946
    %v2123 = vpack.c.b16 %v1955, %v1951
    %v2124 = vpack.c.b16 %v1956, %v1952
    %v2125 = vpack.c.b16 %v1957, %v1953
    %v2126 = vpack.c.b16 %v1958, %v1954
    %v2127 = vpack.c.b16 %v1963, %v1959
    %v2128 = vpack.c.b16 %v1964, %v1960
    %v2129 = vpack.c.b16 %v1965, %v1961
    %v2130 = vpack.c.b16 %v1966, %v1962
    %v2131 = vpack.c.b16 %v1971, %v1967
    %v2132 = vpack.c.b16 %v1972, %v1968
    %v2133 = vpack.c.b16 %v1973, %v1969
    %v2134 = vpack.c.b16 %v1974, %v1970
    %v2135 = vpack.c.b16 %v1979, %v1975
    %v2136 = vpack.c.b16 %v1980, %v1976
    %v2137 = vpack.c.b16 %v1981, %v1977
    %v2138 = vpack.c.b16 %v1982, %v1978
    %v2139 = vpack.c.b16 %v1987, %v1983
    %v2140 = vpack.c.b16 %v1988, %v1984
    %v2141 = vpack.c.b16 %v1989, %v1985
    %v2142 = vpack.c.b16 %v1990, %v1986
    %v2143 = vpack.c.b16 %v1995, %v1991
    %v2144 = vpack.c.b16 %v1996, %v1992
    %v2145 = vpack.c.b16 %v1997, %v1993
    %v2146 = vpack.c.b16 %v1998, %v1994
    %v2147 = vpack.c.b16 %v2003, %v1999
    %v2148 = vpack.c.b16 %v2004, %v2000
    %v2149 = vpack.c.b16 %v2005, %v2001
    %v2150 = vpack.c.b16 %v2006, %v2002
    %v2151 = vpack.c.b16 %v2011, %v2007
    %v2152 = vpack.c.b16 %v2012, %v2008
    %v2153 = vpack.c.b16 %v2013, %v2009
    %v2154 = vpack.c.b16 %v2014, %v2010
    %v2155 = vpack.c.b16 %v2019, %v2015
    %v2156 = vpack.c.b16 %v2020, %v2016
    %v2157 = vpack.c.b16 %v2021, %v2017
    %v2158 = vpack.c.b16 %v2022, %v2018
    %v2159 = vpack.c.b16 %v2027, %v2023
    %v2160 = vpack.c.b16 %v2028, %v2024
    %v2161 = vpack.c.b16 %v2029, %v2025
    %v2162 = vpack.c.b16 %v2030, %v2026
    %v2163 = vpack.c.b16 %v2035, %v2031
    %v2164 = vpack.c.b16 %v2036, %v2032
    %v2165 = vpack.c.b16 %v2037, %v2033
    %v2166 = vpack.c.b16 %v2038, %v2034
    %2295 = vmatprep.subr.bf16.mxu0 %v2068
    %2296 = vmatpush1.bf16.msra.mxu0 %v2067
    %2297 = vmatprep.subr.bf16.mxu0 %v2064
    %2298 = vmatpush1.bf16.msra.mxu0 %v2063
    %2299 = vmatprep.subr.bf16.mxu0 %v2060
    %2300 = vmatpush1.bf16.msra.mxu0 %v2059
    %2301 = vmatprep.subr.bf16.mxu0 %v2056
    %2302 = vmatpush1.bf16.msra.mxu0 %v2055
    %2303 = vmatprep.subr.bf16.mxu0 %v2052
    %2304 = vmatpush1.bf16.msra.mxu0 %v2051
    %2305 = vmatprep.subr.bf16.mxu0 %v2048
    %2306 = vmatpush1.bf16.msra.mxu0 %v2047
    %2307 = vmatprep.subr.bf16.mxu0 %v2044
    %2308 = vmatpush1.bf16.msra.mxu0 %v2043
    %2309 = vmatprep.subr.bf16.mxu0 %v2040
    %2310 = vmatpush1.bf16.msra.mxu0 %v2039
    %2311 = vmatprep.subr.bf16.mxu0 %v2100
    %2312 = vmatpush2.bf16.msra.mxu0 %v2099
    %2313 = vmatprep.subr.bf16.mxu0 %v2096
    %2314 = vmatpush2.bf16.msra.mxu0 %v2095
    %2315 = vmatprep.subr.bf16.mxu0 %v2092
    %2316 = vmatpush2.bf16.msra.mxu0 %v2091
    %2317 = vmatprep.subr.bf16.mxu0 %v2088
    %2318 = vmatpush2.bf16.msra.mxu0 %v2087
    %2319 = vmatprep.subr.bf16.mxu0 %v2084
    %2320 = vmatpush2.bf16.msra.mxu0 %v2083
    %2321 = vmatprep.subr.bf16.mxu0 %v2080
    %2322 = vmatpush2.bf16.msra.mxu0 %v2079
    %2323 = vmatprep.subr.bf16.mxu0 %v2076
    %2324 = vmatpush2.bf16.msra.mxu0 %v2075
    %2325 = vmatprep.subr.bf16.mxu0 %v2072
    %2326 = vmatpush2.bf16.msra.mxu0 %v2071
    %2327 = vmatprep.mubr.bf16.mxu0 %v1648
    %2328 = vmatmul.mubr.bf16.gmra.mxu0 %v1647
    %v2329 = vpop.f32.mrf.mxu0
    %v2330 = vadd.f32 0.0, %v2329
    %v2331 = vpop.f32.mrf.mxu0
    %v2332 = vadd.f32 0.0, %v2331
    %v2333 = vpop.f32.mrf.mxu0
    %v2334 = vadd.f32 0.0, %v2333
    %v2335 = vpop.f32.mrf.mxu0
    %v2336 = vadd.f32 0.0, %v2335
    %2337 = vmatprep.mubr.bf16.mxu0 %v1652
    %2338 = vmatmul.mubr.bf16.gmra.mxu0 %v1651
    %v2339 = vpop.f32.mrf.mxu0
    %v2340 = vadd.f32 0.0, %v2339
    %v2341 = vpop.f32.mrf.mxu0
    %v2342 = vadd.f32 0.0, %v2341
    %v2343 = vpop.f32.mrf.mxu0
    %v2344 = vadd.f32 0.0, %v2343
    %v2345 = vpop.f32.mrf.mxu0
    %v2346 = vadd.f32 0.0, %v2345
    %2347 = vdwg.mxu0
    %2348 = vmatprep.subr.bf16.mxu0 %v2132
    %2349 = vmatpush1.bf16.msra.mxu0 %v2131
    %2350 = vmatprep.subr.bf16.mxu0 %v2128
    %2351 = vmatpush1.bf16.msra.mxu0 %v2127
    %2352 = vmatprep.subr.bf16.mxu0 %v2124
    %2353 = vmatpush1.bf16.msra.mxu0 %v2123
    %2354 = vmatprep.subr.bf16.mxu0 %v2120
    %2355 = vmatpush1.bf16.msra.mxu0 %v2119
    %2356 = vmatprep.subr.bf16.mxu0 %v2116
    %2357 = vmatpush1.bf16.msra.mxu0 %v2115
    %2358 = vmatprep.subr.bf16.mxu0 %v2112
    %2359 = vmatpush1.bf16.msra.mxu0 %v2111
    %2360 = vmatprep.subr.bf16.mxu0 %v2108
    %2361 = vmatpush1.bf16.msra.mxu0 %v2107
    %2362 = vmatprep.subr.bf16.mxu0 %v2104
    %2363 = vmatpush1.bf16.msra.mxu0 %v2103
    %2364 = vmatprep.subr.bf16.mxu0 %v2164
    %2365 = vmatpush2.bf16.msra.mxu0 %v2163
    %2366 = vmatprep.subr.bf16.mxu0 %v2160
    %2367 = vmatpush2.bf16.msra.mxu0 %v2159
    %2368 = vmatprep.subr.bf16.mxu0 %v2156
    %2369 = vmatpush2.bf16.msra.mxu0 %v2155
    %2370 = vmatprep.subr.bf16.mxu0 %v2152
    %2371 = vmatpush2.bf16.msra.mxu0 %v2151
    %2372 = vmatprep.subr.bf16.mxu0 %v2148
    %2373 = vmatpush2.bf16.msra.mxu0 %v2147
    %2374 = vmatprep.subr.bf16.mxu0 %v2144
    %2375 = vmatpush2.bf16.msra.mxu0 %v2143
    %2376 = vmatprep.subr.bf16.mxu0 %v2140
    %2377 = vmatpush2.bf16.msra.mxu0 %v2139
    %2378 = vmatprep.subr.bf16.mxu0 %v2136
    %2379 = vmatpush2.bf16.msra.mxu0 %v2135
    %2380 = vmatprep.mubr.bf16.mxu0 %v1650
    %2381 = vmatmul.mubr.bf16.gmra.mxu0 %v1649
    %v2382 = vpop.f32.mrf.mxu0
    %v2383 = vadd.f32 %v2330, %v2382
    %v2384 = vpop.f32.mrf.mxu0
    %v2385 = vadd.f32 %v2332, %v2384
    %v2386 = vpop.f32.mrf.mxu0
    %v2387 = vadd.f32 %v2334, %v2386
    %v2388 = vpop.f32.mrf.mxu0
    %v2389 = vadd.f32 %v2336, %v2388
    %2390 = vmatprep.mubr.bf16.mxu0 %v1654
    %2391 = vmatmul.mubr.bf16.gmra.mxu0 %v1653
    %v2392 = vpop.f32.mrf.mxu0
    %v2393 = vadd.f32 %v2340, %v2392
    %v2394 = vpop.f32.mrf.mxu0
    %v2395 = vadd.f32 %v2342, %v2394
    %v2396 = vpop.f32.mrf.mxu0
    %v2397 = vadd.f32 %v2344, %v2396
    %v2398 = vpop.f32.mrf.mxu0
    %v2399 = vadd.f32 %v2346, %v2398
    %2400 = vdwg.mxu0
    %2401 = vmatprep.subr.bf16.mxu0 %v2070
    %2402 = vmatpush1.bf16.msra.mxu0 %v2069
    %2403 = vmatprep.subr.bf16.mxu0 %v2066
    %2404 = vmatpush1.bf16.msra.mxu0 %v2065
    %2405 = vmatprep.subr.bf16.mxu0 %v2062
    %2406 = vmatpush1.bf16.msra.mxu0 %v2061
    %2407 = vmatprep.subr.bf16.mxu0 %v2058
    %2408 = vmatpush1.bf16.msra.mxu0 %v2057
    %2409 = vmatprep.subr.bf16.mxu0 %v2054
    %2410 = vmatpush1.bf16.msra.mxu0 %v2053
    %2411 = vmatprep.subr.bf16.mxu0 %v2050
    %2412 = vmatpush1.bf16.msra.mxu0 %v2049
    %2413 = vmatprep.subr.bf16.mxu0 %v2046
    %2414 = vmatpush1.bf16.msra.mxu0 %v2045
    %2415 = vmatprep.subr.bf16.mxu0 %v2042
    %2416 = vmatpush1.bf16.msra.mxu0 %v2041
    %2417 = vmatprep.subr.bf16.mxu0 %v2102
    %2418 = vmatpush2.bf16.msra.mxu0 %v2101
    %2419 = vmatprep.subr.bf16.mxu0 %v2098
    %2420 = vmatpush2.bf16.msra.mxu0 %v2097
    %2421 = vmatprep.subr.bf16.mxu0 %v2094
    %2422 = vmatpush2.bf16.msra.mxu0 %v2093
    %2423 = vmatprep.subr.bf16.mxu0 %v2090
    %2424 = vmatpush2.bf16.msra.mxu0 %v2089
    %2425 = vmatprep.subr.bf16.mxu0 %v2086
    %2426 = vmatpush2.bf16.msra.mxu0 %v2085
    %2427 = vmatprep.subr.bf16.mxu0 %v2082
    %2428 = vmatpush2.bf16.msra.mxu0 %v2081
    %2429 = vmatprep.subr.bf16.mxu0 %v2078
    %2430 = vmatpush2.bf16.msra.mxu0 %v2077
    %2431 = vmatprep.subr.bf16.mxu0 %v2074
    %2432 = vmatpush2.bf16.msra.mxu0 %v2073
    %2433 = vmatprep.mubr.bf16.mxu0 %v1648
    %2434 = vmatmul.mubr.bf16.gmra.mxu0 %v1647
    %v2435 = vpop.f32.mrf.mxu0
    %v2436 = vadd.f32 0.0, %v2435
    %v2437 = vpop.f32.mrf.mxu0
    %v2438 = vadd.f32 0.0, %v2437
    %v2439 = vpop.f32.mrf.mxu0
    %v2440 = vadd.f32 0.0, %v2439
    %v2441 = vpop.f32.mrf.mxu0
    %v2442 = vadd.f32 0.0, %v2441
    %2443 = vmatprep.mubr.bf16.mxu0 %v1652
    %2444 = vmatmul.mubr.bf16.gmra.mxu0 %v1651
    %v2445 = vpop.f32.mrf.mxu0
    %v2446 = vadd.f32 0.0, %v2445
    %v2447 = vpop.f32.mrf.mxu0
    %v2448 = vadd.f32 0.0, %v2447
    %v2449 = vpop.f32.mrf.mxu0
    %v2450 = vadd.f32 0.0, %v2449
    %v2451 = vpop.f32.mrf.mxu0
    %v2452 = vadd.f32 0.0, %v2451
    %2453 = vdwg.mxu0
    %2454 = vmatprep.subr.bf16.mxu0 %v2134
    %2455 = vmatpush1.bf16.msra.mxu0 %v2133
    %2456 = vmatprep.subr.bf16.mxu0 %v2130
    %2457 = vmatpush1.bf16.msra.mxu0 %v2129
    %2458 = vmatprep.subr.bf16.mxu0 %v2126
    %2459 = vmatpush1.bf16.msra.mxu0 %v2125
    %2460 = vmatprep.subr.bf16.mxu0 %v2122
    %2461 = vmatpush1.bf16.msra.mxu0 %v2121
    %2462 = vmatprep.subr.bf16.mxu0 %v2118
    %2463 = vmatpush1.bf16.msra.mxu0 %v2117
    %2464 = vmatprep.subr.bf16.mxu0 %v2114
    %2465 = vmatpush1.bf16.msra.mxu0 %v2113
    %2466 = vmatprep.subr.bf16.mxu0 %v2110
    %2467 = vmatpush1.bf16.msra.mxu0 %v2109
    %2468 = vmatprep.subr.bf16.mxu0 %v2106
    %2469 = vmatpush1.bf16.msra.mxu0 %v2105
    %2470 = vmatprep.subr.bf16.mxu0 %v2166
    %2471 = vmatpush2.bf16.msra.mxu0 %v2165
    %2472 = vmatprep.subr.bf16.mxu0 %v2162
    %2473 = vmatpush2.bf16.msra.mxu0 %v2161
    %2474 = vmatprep.subr.bf16.mxu0 %v2158
    %2475 = vmatpush2.bf16.msra.mxu0 %v2157
    %2476 = vmatprep.subr.bf16.mxu0 %v2154
    %2477 = vmatpush2.bf16.msra.mxu0 %v2153
    %2478 = vmatprep.subr.bf16.mxu0 %v2150
    %2479 = vmatpush2.bf16.msra.mxu0 %v2149
    %2480 = vmatprep.subr.bf16.mxu0 %v2146
    %2481 = vmatpush2.bf16.msra.mxu0 %v2145
    %2482 = vmatprep.subr.bf16.mxu0 %v2142
    %2483 = vmatpush2.bf16.msra.mxu0 %v2141
    %2484 = vmatprep.subr.bf16.mxu0 %v2138
    %2485 = vmatpush2.bf16.msra.mxu0 %v2137
    %2486 = vmatprep.mubr.bf16.mxu0 %v1650
    %2487 = vmatmul.mubr.bf16.gmra.mxu0 %v1649
    %v2488 = vpop.f32.mrf.mxu0
    %v2489 = vadd.f32 %v2436, %v2488
    %v2490 = vpop.f32.mrf.mxu0
    %v2491 = vadd.f32 %v2438, %v2490
    %v2492 = vpop.f32.mrf.mxu0
    %v2493 = vadd.f32 %v2440, %v2492
    %v2494 = vpop.f32.mrf.mxu0
    %v2495 = vadd.f32 %v2442, %v2494
    %2496 = vmatprep.mubr.bf16.mxu0 %v1654
    %2497 = vmatmul.mubr.bf16.gmra.mxu0 %v1653
    %v2498 = vpop.f32.mrf.mxu0
    %v2499 = vadd.f32 %v2446, %v2498
    %v2500 = vpop.f32.mrf.mxu0
    %v2501 = vadd.f32 %v2448, %v2500
    %v2502 = vpop.f32.mrf.mxu0
    %v2503 = vadd.f32 %v2450, %v2502
    %v2504 = vpop.f32.mrf.mxu0
    %v2505 = vadd.f32 %v2452, %v2504
    %2506 = vdwg.mxu0
    %s2507 = scalar_lea.vmem [#allocation14], 4
    %v2508 = vld [vmem:[%s2507] sm:$0xf]
    %s2509 = scalar_lea.vmem [#allocation15], 4
    %v2510 = vld [vmem:[%s2509] sm:$0xf]
    %v2511 = vadd.f32 %v2383, %v2387
    %v2512 = vrot.slane %v2511, 4
    %v2513 = vadd.f32 %v2511, %v2512
    %v2514 = vrot.slane %v2513, 2
    %v2515 = vadd.f32 %v2513, %v2514
    %v2516 = vrot.slane %v2515, 1
    %v2517 = vadd.f32 %v2515, %v2516
    %v2518 = vadd.f32 %v2385, %v2389
    %v2519 = vrot.slane %v2518, 4
    %v2520 = vadd.f32 %v2518, %v2519
    %v2521 = vrot.slane %v2520, 2
    %v2522 = vadd.f32 %v2520, %v2521
    %v2523 = vrot.slane %v2522, 1
    %v2524 = vadd.f32 %v2522, %v2523
    %v2525 = vadd.f32 %v2489, %v2493
    %v2526 = vrot.slane %v2525, 4
    %v2527 = vadd.f32 %v2525, %v2526
    %v2528 = vrot.slane %v2527, 2
    %v2529 = vadd.f32 %v2527, %v2528
    %v2530 = vrot.slane %v2529, 1
    %v2531 = vadd.f32 %v2529, %v2530
    %v2532 = vadd.f32 %v2491, %v2495
    %v2533 = vrot.slane %v2532, 4
    %v2534 = vadd.f32 %v2532, %v2533
    %v2535 = vrot.slane %v2534, 2
    %v2536 = vadd.f32 %v2534, %v2535
    %v2537 = vrot.slane %v2536, 1
    %v2538 = vadd.f32 %v2536, %v2537
    %v2539 = vmul.f32 %v2517, %v1229
    %v2540 = vmul.f32 %v2524, %v1229
    %v2541 = vmul.f32 %v2531, %v1229
    %v2542 = vmul.f32 %v2538, %v1229
    %v2543 = vsub.f32 %v2383, %v2539
    %v2544 = vsub.f32 %v2385, %v2540
    %v2545 = vsub.f32 %v2489, %v2541
    %v2546 = vsub.f32 %v2491, %v2542
    %v2547 = vsub.f32 %v2387, %v2539
    %v2548 = vsub.f32 %v2389, %v2540
    %v2549 = vsub.f32 %v2493, %v2541
    %v2550 = vsub.f32 %v2495, %v2542
    %v2551 = vmul.f32 %v2543, %v2543
    %v2552 = vmul.f32 %v2544, %v2544
    %v2553 = vmul.f32 %v2545, %v2545
    %v2554 = vmul.f32 %v2546, %v2546
    %v2555 = vmul.f32 %v2547, %v2547
    %v2556 = vmul.f32 %v2548, %v2548
    %v2557 = vmul.f32 %v2549, %v2549
    %v2558 = vmul.f32 %v2550, %v2550
    %v2559 = vadd.f32 %v2551, %v2555
    %v2560 = vrot.slane %v2559, 4
    %v2561 = vadd.f32 %v2559, %v2560
    %v2562 = vrot.slane %v2561, 2
    %v2563 = vadd.f32 %v2561, %v2562
    %v2564 = vrot.slane %v2563, 1
    %v2565 = vadd.f32 %v2563, %v2564
    %v2566 = vadd.f32 %v2552, %v2556
    %v2567 = vrot.slane %v2566, 4
    %v2568 = vadd.f32 %v2566, %v2567
    %v2569 = vrot.slane %v2568, 2
    %v2570 = vadd.f32 %v2568, %v2569
    %v2571 = vrot.slane %v2570, 1
    %v2572 = vadd.f32 %v2570, %v2571
    %v2573 = vadd.f32 %v2553, %v2557
    %v2574 = vrot.slane %v2573, 4
    %v2575 = vadd.f32 %v2573, %v2574
    %v2576 = vrot.slane %v2575, 2
    %v2577 = vadd.f32 %v2575, %v2576
    %v2578 = vrot.slane %v2577, 1
    %v2579 = vadd.f32 %v2577, %v2578
    %v2580 = vadd.f32 %v2554, %v2558
    %v2581 = vrot.slane %v2580, 4
    %v2582 = vadd.f32 %v2580, %v2581
    %v2583 = vrot.slane %v2582, 2
    %v2584 = vadd.f32 %v2582, %v2583
    %v2585 = vrot.slane %v2584, 1
    %v2586 = vadd.f32 %v2584, %v2585
    %v2587 = vmul.f32 %v2565, %v1229
    %v2588 = vmul.f32 %v2572, %v1229
    %v2589 = vmul.f32 %v2579, %v1229
    %v2590 = vmul.f32 %v2586, %v1229
    %v2591 = vadd.f32 %v2587, 1e-05
    %v2592 = vadd.f32 %v2588, 1e-05
    %v2593 = vadd.f32 %v2589, 1e-05
    %v2594 = vadd.f32 %v2590, 1e-05
    %v2595 = vrsqrt.pop %v2591
    %v2596 = vrsqrt.pop %v2592
    %v2597 = vrsqrt.pop %v2593
    %v2598 = vrsqrt.pop %v2594
    %v2599 = vmul.f32 %v2543, %v2595
    %v2600 = vmul.f32 %v2544, %v2596
    %v2601 = vmul.f32 %v2545, %v2597
    %v2602 = vmul.f32 %v2546, %v2598
    %v2603 = vmul.f32 %v2547, %v2595
    %v2604 = vmul.f32 %v2548, %v2596
    %v2605 = vmul.f32 %v2549, %v2597
    %v2606 = vmul.f32 %v2550, %v2598
    %v2607 = vadd.f32 %v2393, %v2397
    %v2608 = vrot.slane %v2607, 4
    %v2609 = vadd.f32 %v2607, %v2608
    %v2610 = vrot.slane %v2609, 2
    %v2611 = vadd.f32 %v2609, %v2610
    %v2612 = vrot.slane %v2611, 1
    %v2613 = vadd.f32 %v2611, %v2612
    %v2614 = vadd.f32 %v2395, %v2399
    %v2615 = vrot.slane %v2614, 4
    %v2616 = vadd.f32 %v2614, %v2615
    %v2617 = vrot.slane %v2616, 2
    %v2618 = vadd.f32 %v2616, %v2617
    %v2619 = vrot.slane %v2618, 1
    %v2620 = vadd.f32 %v2618, %v2619
    %v2621 = vadd.f32 %v2499, %v2503
    %v2622 = vrot.slane %v2621, 4
    %v2623 = vadd.f32 %v2621, %v2622
    %v2624 = vrot.slane %v2623, 2
    %v2625 = vadd.f32 %v2623, %v2624
    %v2626 = vrot.slane %v2625, 1
    %v2627 = vadd.f32 %v2625, %v2626
    %v2628 = vadd.f32 %v2501, %v2505
    %v2629 = vrot.slane %v2628, 4
    %v2630 = vadd.f32 %v2628, %v2629
    %v2631 = vrot.slane %v2630, 2
    %v2632 = vadd.f32 %v2630, %v2631
    %v2633 = vrot.slane %v2632, 1
    %v2634 = vadd.f32 %v2632, %v2633
    %v2635 = vmul.f32 %v2613, %v1229
    %v2636 = vmul.f32 %v2620, %v1229
    %v2637 = vmul.f32 %v2627, %v1229
    %v2638 = vmul.f32 %v2634, %v1229
    %v2639 = vsub.f32 %v2393, %v2635
    %v2640 = vsub.f32 %v2395, %v2636
    %v2641 = vsub.f32 %v2499, %v2637
    %v2642 = vsub.f32 %v2501, %v2638
    %v2643 = vsub.f32 %v2397, %v2635
    %v2644 = vsub.f32 %v2399, %v2636
    %v2645 = vsub.f32 %v2503, %v2637
    %v2646 = vsub.f32 %v2505, %v2638
    %v2647 = vmul.f32 %v2639, %v2639
    %v2648 = vmul.f32 %v2640, %v2640
    %v2649 = vmul.f32 %v2641, %v2641
    %v2650 = vmul.f32 %v2642, %v2642
    %v2651 = vmul.f32 %v2643, %v2643
    %v2652 = vmul.f32 %v2644, %v2644
    %v2653 = vmul.f32 %v2645, %v2645
    %v2654 = vmul.f32 %v2646, %v2646
    %v2655 = vadd.f32 %v2647, %v2651
    %v2656 = vrot.slane %v2655, 4
    %v2657 = vadd.f32 %v2655, %v2656
    %v2658 = vrot.slane %v2657, 2
    %v2659 = vadd.f32 %v2657, %v2658
    %v2660 = vrot.slane %v2659, 1
    %v2661 = vadd.f32 %v2659, %v2660
    %v2662 = vadd.f32 %v2648, %v2652
    %v2663 = vrot.slane %v2662, 4
    %v2664 = vadd.f32 %v2662, %v2663
    %v2665 = vrot.slane %v2664, 2
    %v2666 = vadd.f32 %v2664, %v2665
    %v2667 = vrot.slane %v2666, 1
    %v2668 = vadd.f32 %v2666, %v2667
    %v2669 = vadd.f32 %v2649, %v2653
    %v2670 = vrot.slane %v2669, 4
    %v2671 = vadd.f32 %v2669, %v2670
    %v2672 = vrot.slane %v2671, 2
    %v2673 = vadd.f32 %v2671, %v2672
    %v2674 = vrot.slane %v2673, 1
    %v2675 = vadd.f32 %v2673, %v2674
    %v2676 = vadd.f32 %v2650, %v2654
    %v2677 = vrot.slane %v2676, 4
    %v2678 = vadd.f32 %v2676, %v2677
    %v2679 = vrot.slane %v2678, 2
    %v2680 = vadd.f32 %v2678, %v2679
    %v2681 = vrot.slane %v2680, 1
    %v2682 = vadd.f32 %v2680, %v2681
    %v2683 = vmul.f32 %v2661, %v1229
    %v2684 = vmul.f32 %v2668, %v1229
    %v2685 = vmul.f32 %v2675, %v1229
    %v2686 = vmul.f32 %v2682, %v1229
    %v2687 = vadd.f32 %v2683, 1e-05
    %v2688 = vadd.f32 %v2684, 1e-05
    %v2689 = vadd.f32 %v2685, 1e-05
    %v2690 = vadd.f32 %v2686, 1e-05
    %v2691 = vrsqrt.pop %v2687
    %v2692 = vrsqrt.pop %v2688
    %v2693 = vrsqrt.pop %v2689
    %v2694 = vrsqrt.pop %v2690
    %v2695 = vmul.f32 %v2639, %v2691
    %v2696 = vmul.f32 %v2640, %v2692
    %v2697 = vmul.f32 %v2641, %v2693
    %v2698 = vmul.f32 %v2642, %v2694
    %v2699 = vmul.f32 %v2643, %v2691
    %v2700 = vmul.f32 %v2644, %v2692
    %v2701 = vmul.f32 %v2645, %v2693
    %v2702 = vmul.f32 %v2646, %v2694
    %v2704 = vlaneseq
    %v2705 = vshrl.u32 %v2704, 7
    %v2706 = vsub.s32 0, %v2705
    %v2707 = vrot.slane %v2508, %v2706
    %v2708 = vlaneseq
    %v2709 = vshrl.u32 %v2708, 7
    %v2710 = vsub.s32 1, %v2709
    %v2711 = vrot.slane %v2508, %v2710
    %v2712 = vlaneseq
    %v2713 = vshrl.u32 %v2712, 7
    %v2714 = vsub.s32 2, %v2713
    %v2715 = vrot.slane %v2508, %v2714
    %v2716 = vlaneseq
    %v2717 = vshrl.u32 %v2716, 7
    %v2718 = vsub.s32 3, %v2717
    %v2719 = vrot.slane %v2508, %v2718
    %v2724 = vmul.f32 %v2599, %v2707
    %v2725 = vmul.f32 %v2600, %v2711
    %v2726 = vmul.f32 %v2601, %v2715
    %v2727 = vmul.f32 %v2602, %v2719
    %v2728 = vmul.f32 %v2603, %v2707
    %v2729 = vmul.f32 %v2604, %v2711
    %v2730 = vmul.f32 %v2605, %v2715
    %v2731 = vmul.f32 %v2606, %v2719
    %v2732 = vmul.f32 %v2695, %v2707
    %v2733 = vmul.f32 %v2696, %v2711
    %v2734 = vmul.f32 %v2697, %v2715
    %v2735 = vmul.f32 %v2698, %v2719
    %v2736 = vmul.f32 %v2699, %v2707
    %v2737 = vmul.f32 %v2700, %v2711
    %v2738 = vmul.f32 %v2701, %v2715
    %v2739 = vmul.f32 %v2702, %v2719
    %v2741 = vlaneseq
    %v2742 = vshrl.u32 %v2741, 7
    %v2743 = vsub.s32 0, %v2742
    %v2744 = vrot.slane %v2510, %v2743
    %v2745 = vlaneseq
    %v2746 = vshrl.u32 %v2745, 7
    %v2747 = vsub.s32 1, %v2746
    %v2748 = vrot.slane %v2510, %v2747
    %v2749 = vlaneseq
    %v2750 = vshrl.u32 %v2749, 7
    %v2751 = vsub.s32 2, %v2750
    %v2752 = vrot.slane %v2510, %v2751
    %v2753 = vlaneseq
    %v2754 = vshrl.u32 %v2753, 7
    %v2755 = vsub.s32 3, %v2754
    %v2756 = vrot.slane %v2510, %v2755
    %v2761 = vadd.f32 %v2724, %v2744
    %v2762 = vadd.f32 %v2725, %v2748
    %v2763 = vadd.f32 %v2726, %v2752
    %v2764 = vadd.f32 %v2727, %v2756
    %v2765 = vadd.f32 %v2728, %v2744
    %v2766 = vadd.f32 %v2729, %v2748
    %v2767 = vadd.f32 %v2730, %v2752
    %v2768 = vadd.f32 %v2731, %v2756
    %v2769 = vadd.f32 %v2732, %v2744
    %v2770 = vadd.f32 %v2733, %v2748
    %v2771 = vadd.f32 %v2734, %v2752
    %v2772 = vadd.f32 %v2735, %v2756
    %v2773 = vadd.f32 %v2736, %v2744
    %v2774 = vadd.f32 %v2737, %v2748
    %v2775 = vadd.f32 %v2738, %v2752
    %v2776 = vadd.f32 %v2739, %v2756
    %s2777 = sld [smem:[#allocation2 + $0x1]]
    %vm2778 = vcmp.ge.f32.partialorder %v2761, 0.0
    %vm2779 = vcmp.ge.f32.partialorder %v2762, 0.0
    %vm2780 = vcmp.ge.f32.partialorder %v2763, 0.0
    %vm2781 = vcmp.ge.f32.partialorder %v2764, 0.0
    %vm2782 = vcmp.ge.f32.partialorder %v2765, 0.0
    %vm2783 = vcmp.ge.f32.partialorder %v2766, 0.0
    %vm2784 = vcmp.ge.f32.partialorder %v2767, 0.0
    %vm2785 = vcmp.ge.f32.partialorder %v2768, 0.0
    %vm2786 = vcmp.ge.f32.partialorder %v2769, 0.0
    %vm2787 = vcmp.ge.f32.partialorder %v2770, 0.0
    %vm2788 = vcmp.ge.f32.partialorder %v2771, 0.0
    %vm2789 = vcmp.ge.f32.partialorder %v2772, 0.0
    %vm2790 = vcmp.ge.f32.partialorder %v2773, 0.0
    %vm2791 = vcmp.ge.f32.partialorder %v2774, 0.0
    %vm2792 = vcmp.ge.f32.partialorder %v2775, 0.0
    %vm2793 = vcmp.ge.f32.partialorder %v2776, 0.0
    %v2794 = vstv %s2777
    %v2795 = vmul.f32 %v2794, %v2761
    %v2796 = vmul.f32 %v2794, %v2762
    %v2797 = vmul.f32 %v2794, %v2763
    %v2798 = vmul.f32 %v2794, %v2764
    %v2799 = vmul.f32 %v2794, %v2765
    %v2800 = vmul.f32 %v2794, %v2766
    %v2801 = vmul.f32 %v2794, %v2767
    %v2802 = vmul.f32 %v2794, %v2768
    %v2803 = vmul.f32 %v2794, %v2769
    %v2804 = vmul.f32 %v2794, %v2770
    %v2805 = vmul.f32 %v2794, %v2771
    %v2806 = vmul.f32 %v2794, %v2772
    %v2807 = vmul.f32 %v2794, %v2773
    %v2808 = vmul.f32 %v2794, %v2774
    %v2809 = vmul.f32 %v2794, %v2775
    %v2810 = vmul.f32 %v2794, %v2776
    %v2811 = vsel %vm2778, %v2761, %v2795
    %v2812 = vsel %vm2779, %v2762, %v2796
    %v2813 = vsel %vm2780, %v2763, %v2797
    %v2814 = vsel %vm2781, %v2764, %v2798
    %v2815 = vsel %vm2782, %v2765, %v2799
    %v2816 = vsel %vm2783, %v2766, %v2800
    %v2817 = vsel %vm2784, %v2767, %v2801
    %v2818 = vsel %vm2785, %v2768, %v2802
    %v2819 = vsel %vm2786, %v2769, %v2803
    %v2820 = vsel %vm2787, %v2770, %v2804
    %v2821 = vsel %vm2788, %v2771, %v2805
    %v2822 = vsel %vm2789, %v2772, %v2806
    %v2823 = vsel %vm2790, %v2773, %v2807
    %v2824 = vsel %vm2791, %v2774, %v2808
    %v2825 = vsel %vm2792, %v2775, %v2809
    %v2826 = vsel %vm2793, %v2776, %v2810
    %s2827 = scalar_lea.vmem [#allocation11], 2048
    %v2828 = vld [vmem:[%s2827] sm:$0xff]
    %v2829 = vld [vmem:[%s2827 + $0x8] sm:$0xff]
    %v2830 = vld [vmem:[%s2827 + $0x10] sm:$0xff]
    %v2831 = vld [vmem:[%s2827 + $0x18] sm:$0xff]
    %v2832 = vld [vmem:[%s2827 + $0x20] sm:$0xff]
    %v2833 = vld [vmem:[%s2827 + $0x28] sm:$0xff]
    %v2834 = vld [vmem:[%s2827 + $0x30] sm:$0xff]
    %v2835 = vld [vmem:[%s2827 + $0x38] sm:$0xff]
    %v2836 = vld [vmem:[%s2827 + $0x40] sm:$0xff]
    %v2837 = vld [vmem:[%s2827 + $0x48] sm:$0xff]
    %v2838 = vld [vmem:[%s2827 + $0x50] sm:$0xff]
    %v2839 = vld [vmem:[%s2827 + $0x58] sm:$0xff]
    %v2840 = vld [vmem:[%s2827 + $0x60] sm:$0xff]
    %v2841 = vld [vmem:[%s2827 + $0x68] sm:$0xff]
    %v2842 = vld [vmem:[%s2827 + $0x70] sm:$0xff]
    %v2843 = vld [vmem:[%s2827 + $0x78] sm:$0xff]
    %v2844 = vld [vmem:[%s2827 + $0x80] sm:$0xff]
    %v2845 = vld [vmem:[%s2827 + $0x88] sm:$0xff]
    %v2846 = vld [vmem:[%s2827 + $0x90] sm:$0xff]
    %v2847 = vld [vmem:[%s2827 + $0x98] sm:$0xff]
    %v2848 = vld [vmem:[%s2827 + $0xa0] sm:$0xff]
    %v2849 = vld [vmem:[%s2827 + $0xa8] sm:$0xff]
    %v2850 = vld [vmem:[%s2827 + $0xb0] sm:$0xff]
    %v2851 = vld [vmem:[%s2827 + $0xb8] sm:$0xff]
    %v2852 = vld [vmem:[%s2827 + $0xc0] sm:$0xff]
    %v2853 = vld [vmem:[%s2827 + $0xc8] sm:$0xff]
    %v2854 = vld [vmem:[%s2827 + $0xd0] sm:$0xff]
    %v2855 = vld [vmem:[%s2827 + $0xd8] sm:$0xff]
    %v2856 = vld [vmem:[%s2827 + $0xe0] sm:$0xff]
    %v2857 = vld [vmem:[%s2827 + $0xe8] sm:$0xff]
    %v2858 = vld [vmem:[%s2827 + $0xf0] sm:$0xff]
    %v2859 = vld [vmem:[%s2827 + $0xf8] sm:$0xff]
    %v2860 = vld [vmem:[%s2827 + $0x100] sm:$0xff]
    %v2861 = vld [vmem:[%s2827 + $0x108] sm:$0xff]
    %v2862 = vld [vmem:[%s2827 + $0x110] sm:$0xff]
    %v2863 = vld [vmem:[%s2827 + $0x118] sm:$0xff]
    %v2864 = vld [vmem:[%s2827 + $0x120] sm:$0xff]
    %v2865 = vld [vmem:[%s2827 + $0x128] sm:$0xff]
    %v2866 = vld [vmem:[%s2827 + $0x130] sm:$0xff]
    %v2867 = vld [vmem:[%s2827 + $0x138] sm:$0xff]
    %v2868 = vld [vmem:[%s2827 + $0x140] sm:$0xff]
    %v2869 = vld [vmem:[%s2827 + $0x148] sm:$0xff]
    %v2870 = vld [vmem:[%s2827 + $0x150] sm:$0xff]
    %v2871 = vld [vmem:[%s2827 + $0x158] sm:$0xff]
    %v2872 = vld [vmem:[%s2827 + $0x160] sm:$0xff]
    %v2873 = vld [vmem:[%s2827 + $0x168] sm:$0xff]
    %v2874 = vld [vmem:[%s2827 + $0x170] sm:$0xff]
    %v2875 = vld [vmem:[%s2827 + $0x178] sm:$0xff]
    %v2876 = vld [vmem:[%s2827 + $0x180] sm:$0xff]
    %v2877 = vld [vmem:[%s2827 + $0x188] sm:$0xff]
    %v2878 = vld [vmem:[%s2827 + $0x190] sm:$0xff]
    %v2879 = vld [vmem:[%s2827 + $0x198] sm:$0xff]
    %v2880 = vld [vmem:[%s2827 + $0x1a0] sm:$0xff]
    %v2881 = vld [vmem:[%s2827 + $0x1a8] sm:$0xff]
    %v2882 = vld [vmem:[%s2827 + $0x1b0] sm:$0xff]
    %v2883 = vld [vmem:[%s2827 + $0x1b8] sm:$0xff]
    %v2884 = vld [vmem:[%s2827 + $0x1c0] sm:$0xff]
    %v2885 = vld [vmem:[%s2827 + $0x1c8] sm:$0xff]
    %v2886 = vld [vmem:[%s2827 + $0x1d0] sm:$0xff]
    %v2887 = vld [vmem:[%s2827 + $0x1d8] sm:$0xff]
    %v2888 = vld [vmem:[%s2827 + $0x1e0] sm:$0xff]
    %v2889 = vld [vmem:[%s2827 + $0x1e8] sm:$0xff]
    %v2890 = vld [vmem:[%s2827 + $0x1f0] sm:$0xff]
    %v2891 = vld [vmem:[%s2827 + $0x1f8] sm:$0xff]
    %v2892 = vld [vmem:[%s2827 + $0x200] sm:$0xff]
    %v2893 = vld [vmem:[%s2827 + $0x208] sm:$0xff]
    %v2894 = vld [vmem:[%s2827 + $0x210] sm:$0xff]
    %v2895 = vld [vmem:[%s2827 + $0x218] sm:$0xff]
    %v2896 = vld [vmem:[%s2827 + $0x220] sm:$0xff]
    %v2897 = vld [vmem:[%s2827 + $0x228] sm:$0xff]
    %v2898 = vld [vmem:[%s2827 + $0x230] sm:$0xff]
    %v2899 = vld [vmem:[%s2827 + $0x238] sm:$0xff]
    %v2900 = vld [vmem:[%s2827 + $0x240] sm:$0xff]
    %v2901 = vld [vmem:[%s2827 + $0x248] sm:$0xff]
    %v2902 = vld [vmem:[%s2827 + $0x250] sm:$0xff]
    %v2903 = vld [vmem:[%s2827 + $0x258] sm:$0xff]
    %v2904 = vld [vmem:[%s2827 + $0x260] sm:$0xff]
    %v2905 = vld [vmem:[%s2827 + $0x268] sm:$0xff]
    %v2906 = vld [vmem:[%s2827 + $0x270] sm:$0xff]
    %v2907 = vld [vmem:[%s2827 + $0x278] sm:$0xff]
    %v2908 = vld [vmem:[%s2827 + $0x280] sm:$0xff]
    %v2909 = vld [vmem:[%s2827 + $0x288] sm:$0xff]
    %v2910 = vld [vmem:[%s2827 + $0x290] sm:$0xff]
    %v2911 = vld [vmem:[%s2827 + $0x298] sm:$0xff]
    %v2912 = vld [vmem:[%s2827 + $0x2a0] sm:$0xff]
    %v2913 = vld [vmem:[%s2827 + $0x2a8] sm:$0xff]
    %v2914 = vld [vmem:[%s2827 + $0x2b0] sm:$0xff]
    %v2915 = vld [vmem:[%s2827 + $0x2b8] sm:$0xff]
    %v2916 = vld [vmem:[%s2827 + $0x2c0] sm:$0xff]
    %v2917 = vld [vmem:[%s2827 + $0x2c8] sm:$0xff]
    %v2918 = vld [vmem:[%s2827 + $0x2d0] sm:$0xff]
    %v2919 = vld [vmem:[%s2827 + $0x2d8] sm:$0xff]
    %v2920 = vld [vmem:[%s2827 + $0x2e0] sm:$0xff]
    %v2921 = vld [vmem:[%s2827 + $0x2e8] sm:$0xff]
    %v2922 = vld [vmem:[%s2827 + $0x2f0] sm:$0xff]
    %v2923 = vld [vmem:[%s2827 + $0x2f8] sm:$0xff]
    %v2924 = vld [vmem:[%s2827 + $0x300] sm:$0xff]
    %v2925 = vld [vmem:[%s2827 + $0x308] sm:$0xff]
    %v2926 = vld [vmem:[%s2827 + $0x310] sm:$0xff]
    %v2927 = vld [vmem:[%s2827 + $0x318] sm:$0xff]
    %v2928 = vld [vmem:[%s2827 + $0x320] sm:$0xff]
    %v2929 = vld [vmem:[%s2827 + $0x328] sm:$0xff]
    %v2930 = vld [vmem:[%s2827 + $0x330] sm:$0xff]
    %v2931 = vld [vmem:[%s2827 + $0x338] sm:$0xff]
    %v2932 = vld [vmem:[%s2827 + $0x340] sm:$0xff]
    %v2933 = vld [vmem:[%s2827 + $0x348] sm:$0xff]
    %v2934 = vld [vmem:[%s2827 + $0x350] sm:$0xff]
    %v2935 = vld [vmem:[%s2827 + $0x358] sm:$0xff]
    %v2936 = vld [vmem:[%s2827 + $0x360] sm:$0xff]
    %v2937 = vld [vmem:[%s2827 + $0x368] sm:$0xff]
    %v2938 = vld [vmem:[%s2827 + $0x370] sm:$0xff]
    %v2939 = vld [vmem:[%s2827 + $0x378] sm:$0xff]
    %v2940 = vld [vmem:[%s2827 + $0x380] sm:$0xff]
    %v2941 = vld [vmem:[%s2827 + $0x388] sm:$0xff]
    %v2942 = vld [vmem:[%s2827 + $0x390] sm:$0xff]
    %v2943 = vld [vmem:[%s2827 + $0x398] sm:$0xff]
    %v2944 = vld [vmem:[%s2827 + $0x3a0] sm:$0xff]
    %v2945 = vld [vmem:[%s2827 + $0x3a8] sm:$0xff]
    %v2946 = vld [vmem:[%s2827 + $0x3b0] sm:$0xff]
    %v2947 = vld [vmem:[%s2827 + $0x3b8] sm:$0xff]
    %v2948 = vld [vmem:[%s2827 + $0x3c0] sm:$0xff]
    %v2949 = vld [vmem:[%s2827 + $0x3c8] sm:$0xff]
    %v2950 = vld [vmem:[%s2827 + $0x3d0] sm:$0xff]
    %v2951 = vld [vmem:[%s2827 + $0x3d8] sm:$0xff]
    %v2952 = vld [vmem:[%s2827 + $0x3e0] sm:$0xff]
    %v2953 = vld [vmem:[%s2827 + $0x3e8] sm:$0xff]
    %v2954 = vld [vmem:[%s2827 + $0x3f0] sm:$0xff]
    %v2955 = vld [vmem:[%s2827 + $0x3f8] sm:$0xff]
    %v2956 = vpack.c.bf16 %v2815, %v2811
    %v2957 = vpack.c.bf16 %v2816, %v2812
    %v2958 = vpack.c.bf16 %v2817, %v2813
    %v2959 = vpack.c.bf16 %v2818, %v2814
    %v2960 = vpack.c.bf16 %v2823, %v2819
    %v2961 = vpack.c.bf16 %v2824, %v2820
    %v2962 = vpack.c.bf16 %v2825, %v2821
    %v2963 = vpack.c.bf16 %v2826, %v2822
    %v2964 = vld [vmem:[#allocation12] sm:$0xf]
    %v2966 = vlaneseq
    %v2967 = vshrl.u32 %v2966, 7
    %v2968 = vsub.s32 0, %v2967
    %v2969 = vrot.slane %v2964, %v2968
    %v2970 = vlaneseq
    %v2971 = vshrl.u32 %v2970, 7
    %v2972 = vsub.s32 1, %v2971
    %v2973 = vrot.slane %v2964, %v2972
    %v2974 = vlaneseq
    %v2975 = vshrl.u32 %v2974, 7
    %v2976 = vsub.s32 2, %v2975
    %v2977 = vrot.slane %v2964, %v2976
    %v2978 = vlaneseq
    %v2979 = vshrl.u32 %v2978, 7
    %v2980 = vsub.s32 3, %v2979
    %v2981 = vrot.slane %v2964, %v2980
    %v3114 = vunpack.c.l.b16 %v2828
    %v3115 = vunpack.c.h.b16 %v2828
    %v3116 = vunpack.c.l.b16 %v2829
    %v3117 = vunpack.c.h.b16 %v2829
    %v3118 = vunpack.c.l.b16 %v2830
    %v3119 = vunpack.c.h.b16 %v2830
    %v3120 = vunpack.c.l.b16 %v2831
    %v3121 = vunpack.c.h.b16 %v2831
    %v3122 = vunpack.c.l.b16 %v2832
    %v3123 = vunpack.c.h.b16 %v2832
    %v3124 = vunpack.c.l.b16 %v2833
    %v3125 = vunpack.c.h.b16 %v2833
    %v3126 = vunpack.c.l.b16 %v2834
    %v3127 = vunpack.c.h.b16 %v2834
    %v3128 = vunpack.c.l.b16 %v2835
    %v3129 = vunpack.c.h.b16 %v2835
    %v3130 = vunpack.c.l.b16 %v2836
    %v3131 = vunpack.c.h.b16 %v2836
    %v3132 = vunpack.c.l.b16 %v2837
    %v3133 = vunpack.c.h.b16 %v2837
    %v3134 = vunpack.c.l.b16 %v2838
    %v3135 = vunpack.c.h.b16 %v2838
    %v3136 = vunpack.c.l.b16 %v2839
    %v3137 = vunpack.c.h.b16 %v2839
    %v3138 = vunpack.c.l.b16 %v2840
    %v3139 = vunpack.c.h.b16 %v2840
    %v3140 = vunpack.c.l.b16 %v2841
    %v3141 = vunpack.c.h.b16 %v2841
    %v3142 = vunpack.c.l.b16 %v2842
    %v3143 = vunpack.c.h.b16 %v2842
    %v3144 = vunpack.c.l.b16 %v2843
    %v3145 = vunpack.c.h.b16 %v2843
    %v3146 = vunpack.c.l.b16 %v2844
    %v3147 = vunpack.c.h.b16 %v2844
    %v3148 = vunpack.c.l.b16 %v2845
    %v3149 = vunpack.c.h.b16 %v2845
    %v3150 = vunpack.c.l.b16 %v2846
    %v3151 = vunpack.c.h.b16 %v2846
    %v3152 = vunpack.c.l.b16 %v2847
    %v3153 = vunpack.c.h.b16 %v2847
    %v3154 = vunpack.c.l.b16 %v2848
    %v3155 = vunpack.c.h.b16 %v2848
    %v3156 = vunpack.c.l.b16 %v2849
    %v3157 = vunpack.c.h.b16 %v2849
    %v3158 = vunpack.c.l.b16 %v2850
    %v3159 = vunpack.c.h.b16 %v2850
    %v3160 = vunpack.c.l.b16 %v2851
    %v3161 = vunpack.c.h.b16 %v2851
    %v3162 = vunpack.c.l.b16 %v2852
    %v3163 = vunpack.c.h.b16 %v2852
    %v3164 = vunpack.c.l.b16 %v2853
    %v3165 = vunpack.c.h.b16 %v2853
    %v3166 = vunpack.c.l.b16 %v2854
    %v3167 = vunpack.c.h.b16 %v2854
    %v3168 = vunpack.c.l.b16 %v2855
    %v3169 = vunpack.c.h.b16 %v2855
    %v3170 = vunpack.c.l.b16 %v2856
    %v3171 = vunpack.c.h.b16 %v2856
    %v3172 = vunpack.c.l.b16 %v2857
    %v3173 = vunpack.c.h.b16 %v2857
    %v3174 = vunpack.c.l.b16 %v2858
    %v3175 = vunpack.c.h.b16 %v2858
    %v3176 = vunpack.c.l.b16 %v2859
    %v3177 = vunpack.c.h.b16 %v2859
    %v3178 = vunpack.c.l.b16 %v2860
    %v3179 = vunpack.c.h.b16 %v2860
    %v3180 = vunpack.c.l.b16 %v2861
    %v3181 = vunpack.c.h.b16 %v2861
    %v3182 = vunpack.c.l.b16 %v2862
    %v3183 = vunpack.c.h.b16 %v2862
    %v3184 = vunpack.c.l.b16 %v2863
    %v3185 = vunpack.c.h.b16 %v2863
    %v3186 = vunpack.c.l.b16 %v2864
    %v3187 = vunpack.c.h.b16 %v2864
    %v3188 = vunpack.c.l.b16 %v2865
    %v3189 = vunpack.c.h.b16 %v2865
    %v3190 = vunpack.c.l.b16 %v2866
    %v3191 = vunpack.c.h.b16 %v2866
    %v3192 = vunpack.c.l.b16 %v2867
    %v3193 = vunpack.c.h.b16 %v2867
    %v3194 = vunpack.c.l.b16 %v2868
    %v3195 = vunpack.c.h.b16 %v2868
    %v3196 = vunpack.c.l.b16 %v2869
    %v3197 = vunpack.c.h.b16 %v2869
    %v3198 = vunpack.c.l.b16 %v2870
    %v3199 = vunpack.c.h.b16 %v2870
    %v3200 = vunpack.c.l.b16 %v2871
    %v3201 = vunpack.c.h.b16 %v2871
    %v3202 = vunpack.c.l.b16 %v2872
    %v3203 = vunpack.c.h.b16 %v2872
    %v3204 = vunpack.c.l.b16 %v2873
    %v3205 = vunpack.c.h.b16 %v2873
    %v3206 = vunpack.c.l.b16 %v2874
    %v3207 = vunpack.c.h.b16 %v2874
    %v3208 = vunpack.c.l.b16 %v2875
    %v3209 = vunpack.c.h.b16 %v2875
    %v3210 = vunpack.c.l.b16 %v2876
    %v3211 = vunpack.c.h.b16 %v2876
    %v3212 = vunpack.c.l.b16 %v2877
    %v3213 = vunpack.c.h.b16 %v2877
    %v3214 = vunpack.c.l.b16 %v2878
    %v3215 = vunpack.c.h.b16 %v2878
    %v3216 = vunpack.c.l.b16 %v2879
    %v3217 = vunpack.c.h.b16 %v2879
    %v3218 = vunpack.c.l.b16 %v2880
    %v3219 = vunpack.c.h.b16 %v2880
    %v3220 = vunpack.c.l.b16 %v2881
    %v3221 = vunpack.c.h.b16 %v2881
    %v3222 = vunpack.c.l.b16 %v2882
    %v3223 = vunpack.c.h.b16 %v2882
    %v3224 = vunpack.c.l.b16 %v2883
    %v3225 = vunpack.c.h.b16 %v2883
    %v3226 = vunpack.c.l.b16 %v2884
    %v3227 = vunpack.c.h.b16 %v2884
    %v3228 = vunpack.c.l.b16 %v2885
    %v3229 = vunpack.c.h.b16 %v2885
    %v3230 = vunpack.c.l.b16 %v2886
    %v3231 = vunpack.c.h.b16 %v2886
    %v3232 = vunpack.c.l.b16 %v2887
    %v3233 = vunpack.c.h.b16 %v2887
    %v3234 = vunpack.c.l.b16 %v2888
    %v3235 = vunpack.c.h.b16 %v2888
    %v3236 = vunpack.c.l.b16 %v2889
    %v3237 = vunpack.c.h.b16 %v2889
    %v3238 = vunpack.c.l.b16 %v2890
    %v3239 = vunpack.c.h.b16 %v2890
    %v3240 = vunpack.c.l.b16 %v2891
    %v3241 = vunpack.c.h.b16 %v2891
    %v3242 = vunpack.c.l.b16 %v2892
    %v3243 = vunpack.c.h.b16 %v2892
    %v3244 = vunpack.c.l.b16 %v2893
    %v3245 = vunpack.c.h.b16 %v2893
    %v3246 = vunpack.c.l.b16 %v2894
    %v3247 = vunpack.c.h.b16 %v2894
    %v3248 = vunpack.c.l.b16 %v2895
    %v3249 = vunpack.c.h.b16 %v2895
    %v3250 = vunpack.c.l.b16 %v2896
    %v3251 = vunpack.c.h.b16 %v2896
    %v3252 = vunpack.c.l.b16 %v2897
    %v3253 = vunpack.c.h.b16 %v2897
    %v3254 = vunpack.c.l.b16 %v2898
    %v3255 = vunpack.c.h.b16 %v2898
    %v3256 = vunpack.c.l.b16 %v2899
    %v3257 = vunpack.c.h.b16 %v2899
    %v3258 = vunpack.c.l.b16 %v2900
    %v3259 = vunpack.c.h.b16 %v2900
    %v3260 = vunpack.c.l.b16 %v2901
    %v3261 = vunpack.c.h.b16 %v2901
    %v3262 = vunpack.c.l.b16 %v2902
    %v3263 = vunpack.c.h.b16 %v2902
    %v3264 = vunpack.c.l.b16 %v2903
    %v3265 = vunpack.c.h.b16 %v2903
    %v3266 = vunpack.c.l.b16 %v2904
    %v3267 = vunpack.c.h.b16 %v2904
    %v3268 = vunpack.c.l.b16 %v2905
    %v3269 = vunpack.c.h.b16 %v2905
    %v3270 = vunpack.c.l.b16 %v2906
    %v3271 = vunpack.c.h.b16 %v2906
    %v3272 = vunpack.c.l.b16 %v2907
    %v3273 = vunpack.c.h.b16 %v2907
    %v3274 = vunpack.c.l.b16 %v2908
    %v3275 = vunpack.c.h.b16 %v2908
    %v3276 = vunpack.c.l.b16 %v2909
    %v3277 = vunpack.c.h.b16 %v2909
    %v3278 = vunpack.c.l.b16 %v2910
    %v3279 = vunpack.c.h.b16 %v2910
    %v3280 = vunpack.c.l.b16 %v2911
    %v3281 = vunpack.c.h.b16 %v2911
    %v3282 = vunpack.c.l.b16 %v2912
    %v3283 = vunpack.c.h.b16 %v2912
    %v3284 = vunpack.c.l.b16 %v2913
    %v3285 = vunpack.c.h.b16 %v2913
    %v3286 = vunpack.c.l.b16 %v2914
    %v3287 = vunpack.c.h.b16 %v2914
    %v3288 = vunpack.c.l.b16 %v2915
    %v3289 = vunpack.c.h.b16 %v2915
    %v3290 = vunpack.c.l.b16 %v2916
    %v3291 = vunpack.c.h.b16 %v2916
    %v3292 = vunpack.c.l.b16 %v2917
    %v3293 = vunpack.c.h.b16 %v2917
    %v3294 = vunpack.c.l.b16 %v2918
    %v3295 = vunpack.c.h.b16 %v2918
    %v3296 = vunpack.c.l.b16 %v2919
    %v3297 = vunpack.c.h.b16 %v2919
    %v3298 = vunpack.c.l.b16 %v2920
    %v3299 = vunpack.c.h.b16 %v2920
    %v3300 = vunpack.c.l.b16 %v2921
    %v3301 = vunpack.c.h.b16 %v2921
    %v3302 = vunpack.c.l.b16 %v2922
    %v3303 = vunpack.c.h.b16 %v2922
    %v3304 = vunpack.c.l.b16 %v2923
    %v3305 = vunpack.c.h.b16 %v2923
    %v3306 = vunpack.c.l.b16 %v2924
    %v3307 = vunpack.c.h.b16 %v2924
    %v3308 = vunpack.c.l.b16 %v2925
    %v3309 = vunpack.c.h.b16 %v2925
    %v3310 = vunpack.c.l.b16 %v2926
    %v3311 = vunpack.c.h.b16 %v2926
    %v3312 = vunpack.c.l.b16 %v2927
    %v3313 = vunpack.c.h.b16 %v2927
    %v3314 = vunpack.c.l.b16 %v2928
    %v3315 = vunpack.c.h.b16 %v2928
    %v3316 = vunpack.c.l.b16 %v2929
    %v3317 = vunpack.c.h.b16 %v2929
    %v3318 = vunpack.c.l.b16 %v2930
    %v3319 = vunpack.c.h.b16 %v2930
    %v3320 = vunpack.c.l.b16 %v2931
    %v3321 = vunpack.c.h.b16 %v2931
    %v3322 = vunpack.c.l.b16 %v2932
    %v3323 = vunpack.c.h.b16 %v2932
    %v3324 = vunpack.c.l.b16 %v2933
    %v3325 = vunpack.c.h.b16 %v2933
    %v3326 = vunpack.c.l.b16 %v2934
    %v3327 = vunpack.c.h.b16 %v2934
    %v3328 = vunpack.c.l.b16 %v2935
    %v3329 = vunpack.c.h.b16 %v2935
    %v3330 = vunpack.c.l.b16 %v2936
    %v3331 = vunpack.c.h.b16 %v2936
    %v3332 = vunpack.c.l.b16 %v2937
    %v3333 = vunpack.c.h.b16 %v2937
    %v3334 = vunpack.c.l.b16 %v2938
    %v3335 = vunpack.c.h.b16 %v2938
    %v3336 = vunpack.c.l.b16 %v2939
    %v3337 = vunpack.c.h.b16 %v2939
    %v3338 = vunpack.c.l.b16 %v2940
    %v3339 = vunpack.c.h.b16 %v2940
    %v3340 = vunpack.c.l.b16 %v2941
    %v3341 = vunpack.c.h.b16 %v2941
    %v3342 = vunpack.c.l.b16 %v2942
    %v3343 = vunpack.c.h.b16 %v2942
    %v3344 = vunpack.c.l.b16 %v2943
    %v3345 = vunpack.c.h.b16 %v2943
    %v3346 = vunpack.c.l.b16 %v2944
    %v3347 = vunpack.c.h.b16 %v2944
    %v3348 = vunpack.c.l.b16 %v2945
    %v3349 = vunpack.c.h.b16 %v2945
    %v3350 = vunpack.c.l.b16 %v2946
    %v3351 = vunpack.c.h.b16 %v2946
    %v3352 = vunpack.c.l.b16 %v2947
    %v3353 = vunpack.c.h.b16 %v2947
    %v3354 = vunpack.c.l.b16 %v2948
    %v3355 = vunpack.c.h.b16 %v2948
    %v3356 = vunpack.c.l.b16 %v2949
    %v3357 = vunpack.c.h.b16 %v2949
    %v3358 = vunpack.c.l.b16 %v2950
    %v3359 = vunpack.c.h.b16 %v2950
    %v3360 = vunpack.c.l.b16 %v2951
    %v3361 = vunpack.c.h.b16 %v2951
    %v3362 = vunpack.c.l.b16 %v2952
    %v3363 = vunpack.c.h.b16 %v2952
    %v3364 = vunpack.c.l.b16 %v2953
    %v3365 = vunpack.c.h.b16 %v2953
    %v3366 = vunpack.c.l.b16 %v2954
    %v3367 = vunpack.c.h.b16 %v2954
    %v3368 = vunpack.c.l.b16 %v2955
    %v3369 = vunpack.c.h.b16 %v2955
    %v3370 = vpack.c.b16 %v3118, %v3114
    %v3371 = vpack.c.b16 %v3119, %v3115
    %v3372 = vpack.c.b16 %v3120, %v3116
    %v3373 = vpack.c.b16 %v3121, %v3117
    %v3374 = vpack.c.b16 %v3126, %v3122
    %v3375 = vpack.c.b16 %v3127, %v3123
    %v3376 = vpack.c.b16 %v3128, %v3124
    %v3377 = vpack.c.b16 %v3129, %v3125
    %v3378 = vpack.c.b16 %v3134, %v3130
    %v3379 = vpack.c.b16 %v3135, %v3131
    %v3380 = vpack.c.b16 %v3136, %v3132
    %v3381 = vpack.c.b16 %v3137, %v3133
    %v3382 = vpack.c.b16 %v3142, %v3138
    %v3383 = vpack.c.b16 %v3143, %v3139
    %v3384 = vpack.c.b16 %v3144, %v3140
    %v3385 = vpack.c.b16 %v3145, %v3141
    %v3386 = vpack.c.b16 %v3150, %v3146
    %v3387 = vpack.c.b16 %v3151, %v3147
    %v3388 = vpack.c.b16 %v3152, %v3148
    %v3389 = vpack.c.b16 %v3153, %v3149
    %v3390 = vpack.c.b16 %v3158, %v3154
    %v3391 = vpack.c.b16 %v3159, %v3155
    %v3392 = vpack.c.b16 %v3160, %v3156
    %v3393 = vpack.c.b16 %v3161, %v3157
    %v3394 = vpack.c.b16 %v3166, %v3162
    %v3395 = vpack.c.b16 %v3167, %v3163
    %v3396 = vpack.c.b16 %v3168, %v3164
    %v3397 = vpack.c.b16 %v3169, %v3165
    %v3398 = vpack.c.b16 %v3174, %v3170
    %v3399 = vpack.c.b16 %v3175, %v3171
    %v3400 = vpack.c.b16 %v3176, %v3172
    %v3401 = vpack.c.b16 %v3177, %v3173
    %v3402 = vpack.c.b16 %v3182, %v3178
    %v3403 = vpack.c.b16 %v3183, %v3179
    %v3404 = vpack.c.b16 %v3184, %v3180
    %v3405 = vpack.c.b16 %v3185, %v3181
    %v3406 = vpack.c.b16 %v3190, %v3186
    %v3407 = vpack.c.b16 %v3191, %v3187
    %v3408 = vpack.c.b16 %v3192, %v3188
    %v3409 = vpack.c.b16 %v3193, %v3189
    %v3410 = vpack.c.b16 %v3198, %v3194
    %v3411 = vpack.c.b16 %v3199, %v3195
    %v3412 = vpack.c.b16 %v3200, %v3196
    %v3413 = vpack.c.b16 %v3201, %v3197
    %v3414 = vpack.c.b16 %v3206, %v3202
    %v3415 = vpack.c.b16 %v3207, %v3203
    %v3416 = vpack.c.b16 %v3208, %v3204
    %v3417 = vpack.c.b16 %v3209, %v3205
    %v3418 = vpack.c.b16 %v3214, %v3210
    %v3419 = vpack.c.b16 %v3215, %v3211
    %v3420 = vpack.c.b16 %v3216, %v3212
    %v3421 = vpack.c.b16 %v3217, %v3213
    %v3422 = vpack.c.b16 %v3222, %v3218
    %v3423 = vpack.c.b16 %v3223, %v3219
    %v3424 = vpack.c.b16 %v3224, %v3220
    %v3425 = vpack.c.b16 %v3225, %v3221
    %v3426 = vpack.c.b16 %v3230, %v3226
    %v3427 = vpack.c.b16 %v3231, %v3227
    %v3428 = vpack.c.b16 %v3232, %v3228
    %v3429 = vpack.c.b16 %v3233, %v3229
    %v3430 = vpack.c.b16 %v3238, %v3234
    %v3431 = vpack.c.b16 %v3239, %v3235
    %v3432 = vpack.c.b16 %v3240, %v3236
    %v3433 = vpack.c.b16 %v3241, %v3237
    %v3434 = vpack.c.b16 %v3246, %v3242
    %v3435 = vpack.c.b16 %v3247, %v3243
    %v3436 = vpack.c.b16 %v3248, %v3244
    %v3437 = vpack.c.b16 %v3249, %v3245
    %v3438 = vpack.c.b16 %v3254, %v3250
    %v3439 = vpack.c.b16 %v3255, %v3251
    %v3440 = vpack.c.b16 %v3256, %v3252
    %v3441 = vpack.c.b16 %v3257, %v3253
    %v3442 = vpack.c.b16 %v3262, %v3258
    %v3443 = vpack.c.b16 %v3263, %v3259
    %v3444 = vpack.c.b16 %v3264, %v3260
    %v3445 = vpack.c.b16 %v3265, %v3261
    %v3446 = vpack.c.b16 %v3270, %v3266
    %v3447 = vpack.c.b16 %v3271, %v3267
    %v3448 = vpack.c.b16 %v3272, %v3268
    %v3449 = vpack.c.b16 %v3273, %v3269
    %v3450 = vpack.c.b16 %v3278, %v3274
    %v3451 = vpack.c.b16 %v3279, %v3275
    %v3452 = vpack.c.b16 %v3280, %v3276
    %v3453 = vpack.c.b16 %v3281, %v3277
    %v3454 = vpack.c.b16 %v3286, %v3282
    %v3455 = vpack.c.b16 %v3287, %v3283
    %v3456 = vpack.c.b16 %v3288, %v3284
    %v3457 = vpack.c.b16 %v3289, %v3285
    %v3458 = vpack.c.b16 %v3294, %v3290
    %v3459 = vpack.c.b16 %v3295, %v3291
    %v3460 = vpack.c.b16 %v3296, %v3292
    %v3461 = vpack.c.b16 %v3297, %v3293
    %v3462 = vpack.c.b16 %v3302, %v3298
    %v3463 = vpack.c.b16 %v3303, %v3299
    %v3464 = vpack.c.b16 %v3304, %v3300
    %v3465 = vpack.c.b16 %v3305, %v3301
    %v3466 = vpack.c.b16 %v3310, %v3306
    %v3467 = vpack.c.b16 %v3311, %v3307
    %v3468 = vpack.c.b16 %v3312, %v3308
    %v3469 = vpack.c.b16 %v3313, %v3309
    %v3470 = vpack.c.b16 %v3318, %v3314
    %v3471 = vpack.c.b16 %v3319, %v3315
    %v3472 = vpack.c.b16 %v3320, %v3316
    %v3473 = vpack.c.b16 %v3321, %v3317
    %v3474 = vpack.c.b16 %v3326, %v3322
    %v3475 = vpack.c.b16 %v3327, %v3323
    %v3476 = vpack.c.b16 %v3328, %v3324
    %v3477 = vpack.c.b16 %v3329, %v3325
    %v3478 = vpack.c.b16 %v3334, %v3330
    %v3479 = vpack.c.b16 %v3335, %v3331
    %v3480 = vpack.c.b16 %v3336, %v3332
    %v3481 = vpack.c.b16 %v3337, %v3333
    %v3482 = vpack.c.b16 %v3342, %v3338
    %v3483 = vpack.c.b16 %v3343, %v3339
    %v3484 = vpack.c.b16 %v3344, %v3340
    %v3485 = vpack.c.b16 %v3345, %v3341
    %v3486 = vpack.c.b16 %v3350, %v3346
    %v3487 = vpack.c.b16 %v3351, %v3347
    %v3488 = vpack.c.b16 %v3352, %v3348
    %v3489 = vpack.c.b16 %v3353, %v3349
    %v3490 = vpack.c.b16 %v3358, %v3354
    %v3491 = vpack.c.b16 %v3359, %v3355
    %v3492 = vpack.c.b16 %v3360, %v3356
    %v3493 = vpack.c.b16 %v3361, %v3357
    %v3494 = vpack.c.b16 %v3366, %v3362
    %v3495 = vpack.c.b16 %v3367, %v3363
    %v3496 = vpack.c.b16 %v3368, %v3364
    %v3497 = vpack.c.b16 %v3369, %v3365
    %3626 = vmatprep.subr.bf16.mxu0 %v3399
    %3627 = vmatpush1.bf16.msra.mxu0 %v3398
    %3628 = vmatprep.subr.bf16.mxu0 %v3395
    %3629 = vmatpush1.bf16.msra.mxu0 %v3394
    %3630 = vmatprep.subr.bf16.mxu0 %v3391
    %3631 = vmatpush1.bf16.msra.mxu0 %v3390
    %3632 = vmatprep.subr.bf16.mxu0 %v3387
    %3633 = vmatpush1.bf16.msra.mxu0 %v3386
    %3634 = vmatprep.subr.bf16.mxu0 %v3383
    %3635 = vmatpush1.bf16.msra.mxu0 %v3382
    %3636 = vmatprep.subr.bf16.mxu0 %v3379
    %3637 = vmatpush1.bf16.msra.mxu0 %v3378
    %3638 = vmatprep.subr.bf16.mxu0 %v3375
    %3639 = vmatpush1.bf16.msra.mxu0 %v3374
    %3640 = vmatprep.subr.bf16.mxu0 %v3371
    %3641 = vmatpush1.bf16.msra.mxu0 %v3370
    %3642 = vmatprep.subr.bf16.mxu0 %v3431
    %3643 = vmatpush2.bf16.msra.mxu0 %v3430
    %3644 = vmatprep.subr.bf16.mxu0 %v3427
    %3645 = vmatpush2.bf16.msra.mxu0 %v3426
    %3646 = vmatprep.subr.bf16.mxu0 %v3423
    %3647 = vmatpush2.bf16.msra.mxu0 %v3422
    %3648 = vmatprep.subr.bf16.mxu0 %v3419
    %3649 = vmatpush2.bf16.msra.mxu0 %v3418
    %3650 = vmatprep.subr.bf16.mxu0 %v3415
    %3651 = vmatpush2.bf16.msra.mxu0 %v3414
    %3652 = vmatprep.subr.bf16.mxu0 %v3411
    %3653 = vmatpush2.bf16.msra.mxu0 %v3410
    %3654 = vmatprep.subr.bf16.mxu0 %v3407
    %3655 = vmatpush2.bf16.msra.mxu0 %v3406
    %3656 = vmatprep.subr.bf16.mxu0 %v3403
    %3657 = vmatpush2.bf16.msra.mxu0 %v3402
    %3658 = vmatprep.mubr.bf16.mxu0 %v2957
    %3659 = vmatmul.mubr.bf16.gmra.mxu0 %v2956
    %v3660 = vpop.f32.mrf.mxu0
    %v3661 = vadd.f32 %v2969, %v3660
    %v3662 = vpop.f32.mrf.mxu0
    %v3663 = vadd.f32 %v2973, %v3662
    %v3664 = vpop.f32.mrf.mxu0
    %v3665 = vadd.f32 %v2969, %v3664
    %v3666 = vpop.f32.mrf.mxu0
    %v3667 = vadd.f32 %v2973, %v3666
    %3668 = vmatprep.mubr.bf16.mxu0 %v2961
    %3669 = vmatmul.mubr.bf16.gmra.mxu0 %v2960
    %v3670 = vpop.f32.mrf.mxu0
    %v3671 = vadd.f32 %v2969, %v3670
    %v3672 = vpop.f32.mrf.mxu0
    %v3673 = vadd.f32 %v2973, %v3672
    %v3674 = vpop.f32.mrf.mxu0
    %v3675 = vadd.f32 %v2969, %v3674
    %v3676 = vpop.f32.mrf.mxu0
    %v3677 = vadd.f32 %v2973, %v3676
    %3678 = vdwg.mxu0
    %3679 = vmatprep.subr.bf16.mxu0 %v3463
    %3680 = vmatpush1.bf16.msra.mxu0 %v3462
    %3681 = vmatprep.subr.bf16.mxu0 %v3459
    %3682 = vmatpush1.bf16.msra.mxu0 %v3458
    %3683 = vmatprep.subr.bf16.mxu0 %v3455
    %3684 = vmatpush1.bf16.msra.mxu0 %v3454
    %3685 = vmatprep.subr.bf16.mxu0 %v3451
    %3686 = vmatpush1.bf16.msra.mxu0 %v3450
    %3687 = vmatprep.subr.bf16.mxu0 %v3447
    %3688 = vmatpush1.bf16.msra.mxu0 %v3446
    %3689 = vmatprep.subr.bf16.mxu0 %v3443
    %3690 = vmatpush1.bf16.msra.mxu0 %v3442
    %3691 = vmatprep.subr.bf16.mxu0 %v3439
    %3692 = vmatpush1.bf16.msra.mxu0 %v3438
    %3693 = vmatprep.subr.bf16.mxu0 %v3435
    %3694 = vmatpush1.bf16.msra.mxu0 %v3434
    %3695 = vmatprep.subr.bf16.mxu0 %v3495
    %3696 = vmatpush2.bf16.msra.mxu0 %v3494
    %3697 = vmatprep.subr.bf16.mxu0 %v3491
    %3698 = vmatpush2.bf16.msra.mxu0 %v3490
    %3699 = vmatprep.subr.bf16.mxu0 %v3487
    %3700 = vmatpush2.bf16.msra.mxu0 %v3486
    %3701 = vmatprep.subr.bf16.mxu0 %v3483
    %3702 = vmatpush2.bf16.msra.mxu0 %v3482
    %3703 = vmatprep.subr.bf16.mxu0 %v3479
    %3704 = vmatpush2.bf16.msra.mxu0 %v3478
    %3705 = vmatprep.subr.bf16.mxu0 %v3475
    %3706 = vmatpush2.bf16.msra.mxu0 %v3474
    %3707 = vmatprep.subr.bf16.mxu0 %v3471
    %3708 = vmatpush2.bf16.msra.mxu0 %v3470
    %3709 = vmatprep.subr.bf16.mxu0 %v3467
    %3710 = vmatpush2.bf16.msra.mxu0 %v3466
    %3711 = vmatprep.mubr.bf16.mxu0 %v2959
    %3712 = vmatmul.mubr.bf16.gmra.mxu0 %v2958
    %v3713 = vpop.f32.mrf.mxu0
    %v3714 = vadd.f32 %v3661, %v3713
    %v3715 = vpop.f32.mrf.mxu0
    %v3716 = vadd.f32 %v3663, %v3715
    %v3717 = vpop.f32.mrf.mxu0
    %v3718 = vadd.f32 %v3665, %v3717
    %v3719 = vpop.f32.mrf.mxu0
    %v3720 = vadd.f32 %v3667, %v3719
    %3721 = vmatprep.mubr.bf16.mxu0 %v2963
    %3722 = vmatmul.mubr.bf16.gmra.mxu0 %v2962
    %v3723 = vpop.f32.mrf.mxu0
    %v3724 = vadd.f32 %v3671, %v3723
    %v3725 = vpop.f32.mrf.mxu0
    %v3726 = vadd.f32 %v3673, %v3725
    %v3727 = vpop.f32.mrf.mxu0
    %v3728 = vadd.f32 %v3675, %v3727
    %v3729 = vpop.f32.mrf.mxu0
    %v3730 = vadd.f32 %v3677, %v3729
    %3731 = vdwg.mxu0
    %3732 = vmatprep.subr.bf16.mxu0 %v3401
    %3733 = vmatpush1.bf16.msra.mxu0 %v3400
    %3734 = vmatprep.subr.bf16.mxu0 %v3397
    %3735 = vmatpush1.bf16.msra.mxu0 %v3396
    %3736 = vmatprep.subr.bf16.mxu0 %v3393
    %3737 = vmatpush1.bf16.msra.mxu0 %v3392
    %3738 = vmatprep.subr.bf16.mxu0 %v3389
    %3739 = vmatpush1.bf16.msra.mxu0 %v3388
    %3740 = vmatprep.subr.bf16.mxu0 %v3385
    %3741 = vmatpush1.bf16.msra.mxu0 %v3384
    %3742 = vmatprep.subr.bf16.mxu0 %v3381
    %3743 = vmatpush1.bf16.msra.mxu0 %v3380
    %3744 = vmatprep.subr.bf16.mxu0 %v3377
    %3745 = vmatpush1.bf16.msra.mxu0 %v3376
    %3746 = vmatprep.subr.bf16.mxu0 %v3373
    %3747 = vmatpush1.bf16.msra.mxu0 %v3372
    %3748 = vmatprep.subr.bf16.mxu0 %v3433
    %3749 = vmatpush2.bf16.msra.mxu0 %v3432
    %3750 = vmatprep.subr.bf16.mxu0 %v3429
    %3751 = vmatpush2.bf16.msra.mxu0 %v3428
    %3752 = vmatprep.subr.bf16.mxu0 %v3425
    %3753 = vmatpush2.bf16.msra.mxu0 %v3424
    %3754 = vmatprep.subr.bf16.mxu0 %v3421
    %3755 = vmatpush2.bf16.msra.mxu0 %v3420
    %3756 = vmatprep.subr.bf16.mxu0 %v3417
    %3757 = vmatpush2.bf16.msra.mxu0 %v3416
    %3758 = vmatprep.subr.bf16.mxu0 %v3413
    %3759 = vmatpush2.bf16.msra.mxu0 %v3412
    %3760 = vmatprep.subr.bf16.mxu0 %v3409
    %3761 = vmatpush2.bf16.msra.mxu0 %v3408
    %3762 = vmatprep.subr.bf16.mxu0 %v3405
    %3763 = vmatpush2.bf16.msra.mxu0 %v3404
    %3764 = vmatprep.mubr.bf16.mxu0 %v2957
    %3765 = vmatmul.mubr.bf16.gmra.mxu0 %v2956
    %v3766 = vpop.f32.mrf.mxu0
    %v3767 = vadd.f32 %v2977, %v3766
    %v3768 = vpop.f32.mrf.mxu0
    %v3769 = vadd.f32 %v2981, %v3768
    %v3770 = vpop.f32.mrf.mxu0
    %v3771 = vadd.f32 %v2977, %v3770
    %v3772 = vpop.f32.mrf.mxu0
    %v3773 = vadd.f32 %v2981, %v3772
    %3774 = vmatprep.mubr.bf16.mxu0 %v2961
    %3775 = vmatmul.mubr.bf16.gmra.mxu0 %v2960
    %v3776 = vpop.f32.mrf.mxu0
    %v3777 = vadd.f32 %v2977, %v3776
    %v3778 = vpop.f32.mrf.mxu0
    %v3779 = vadd.f32 %v2981, %v3778
    %v3780 = vpop.f32.mrf.mxu0
    %v3781 = vadd.f32 %v2977, %v3780
    %v3782 = vpop.f32.mrf.mxu0
    %v3783 = vadd.f32 %v2981, %v3782
    %3784 = vdwg.mxu0
    %3785 = vmatprep.subr.bf16.mxu0 %v3465
    %3786 = vmatpush1.bf16.msra.mxu0 %v3464
    %3787 = vmatprep.subr.bf16.mxu0 %v3461
    %3788 = vmatpush1.bf16.msra.mxu0 %v3460
    %3789 = vmatprep.subr.bf16.mxu0 %v3457
    %3790 = vmatpush1.bf16.msra.mxu0 %v3456
    %3791 = vmatprep.subr.bf16.mxu0 %v3453
    %3792 = vmatpush1.bf16.msra.mxu0 %v3452
    %3793 = vmatprep.subr.bf16.mxu0 %v3449
    %3794 = vmatpush1.bf16.msra.mxu0 %v3448
    %3795 = vmatprep.subr.bf16.mxu0 %v3445
    %3796 = vmatpush1.bf16.msra.mxu0 %v3444
    %3797 = vmatprep.subr.bf16.mxu0 %v3441
    %3798 = vmatpush1.bf16.msra.mxu0 %v3440
    %3799 = vmatprep.subr.bf16.mxu0 %v3437
    %3800 = vmatpush1.bf16.msra.mxu0 %v3436
    %3801 = vmatprep.subr.bf16.mxu0 %v3497
    %3802 = vmatpush2.bf16.msra.mxu0 %v3496
    %3803 = vmatprep.subr.bf16.mxu0 %v3493
    %3804 = vmatpush2.bf16.msra.mxu0 %v3492
    %3805 = vmatprep.subr.bf16.mxu0 %v3489
    %3806 = vmatpush2.bf16.msra.mxu0 %v3488
    %3807 = vmatprep.subr.bf16.mxu0 %v3485
    %3808 = vmatpush2.bf16.msra.mxu0 %v3484
    %3809 = vmatprep.subr.bf16.mxu0 %v3481
    %3810 = vmatpush2.bf16.msra.mxu0 %v3480
    %3811 = vmatprep.subr.bf16.mxu0 %v3477
    %3812 = vmatpush2.bf16.msra.mxu0 %v3476
    %3813 = vmatprep.subr.bf16.mxu0 %v3473
    %3814 = vmatpush2.bf16.msra.mxu0 %v3472
    %3815 = vmatprep.subr.bf16.mxu0 %v3469
    %3816 = vmatpush2.bf16.msra.mxu0 %v3468
    %3817 = vmatprep.mubr.bf16.mxu0 %v2959
    %3818 = vmatmul.mubr.bf16.gmra.mxu0 %v2958
    %v3819 = vpop.f32.mrf.mxu0
    %v3820 = vadd.f32 %v3767, %v3819
    %v3821 = vpop.f32.mrf.mxu0
    %v3822 = vadd.f32 %v3769, %v3821
    %v3823 = vpop.f32.mrf.mxu0
    %v3824 = vadd.f32 %v3771, %v3823
    %v3825 = vpop.f32.mrf.mxu0
    %v3826 = vadd.f32 %v3773, %v3825
    %3827 = vmatprep.mubr.bf16.mxu0 %v2963
    %3828 = vmatmul.mubr.bf16.gmra.mxu0 %v2962
    %v3829 = vpop.f32.mrf.mxu0
    %v3830 = vadd.f32 %v3777, %v3829
    %v3831 = vpop.f32.mrf.mxu0
    %v3832 = vadd.f32 %v3779, %v3831
    %v3833 = vpop.f32.mrf.mxu0
    %v3834 = vadd.f32 %v3781, %v3833
    %v3835 = vpop.f32.mrf.mxu0
    %v3836 = vadd.f32 %v3783, %v3835
    %3837 = vdwg.mxu0
    %v3838 = vmax.f32 %v3714, %v3724
    %v3839 = vmax.f32 %v3716, %v3726
    %v3840 = vmax.f32 %v3820, %v3830
    %v3841 = vmax.f32 %v3822, %v3832
    %v3842 = vmax.f32 %v3718, %v3728
    %v3843 = vmax.f32 %v3720, %v3730
    %v3844 = vmax.f32 %v3824, %v3834
    %v3845 = vmax.f32 %v3826, %v3836
    %v3846 = vld [vmem:[#allocation17] sm:$0xff]
    %v3847 = vld [vmem:[#allocation17 + $0x8] sm:$0xff]
    %v3848 = vld [vmem:[#allocation17 + $0x10] sm:$0xff]
    %v3849 = vld [vmem:[#allocation17 + $0x18] sm:$0xff]
    %v3850 = vld [vmem:[#allocation17 + $0x20] sm:$0xff]
    %v3851 = vld [vmem:[#allocation17 + $0x28] sm:$0xff]
    %v3852 = vld [vmem:[#allocation17 + $0x30] sm:$0xff]
    %v3853 = vld [vmem:[#allocation17 + $0x38] sm:$0xff]
    %v3854 = vld [vmem:[#allocation17 + $0x40] sm:$0xff]
    %v3855 = vld [vmem:[#allocation17 + $0x48] sm:$0xff]
    %v3856 = vld [vmem:[#allocation17 + $0x50] sm:$0xff]
    %v3857 = vld [vmem:[#allocation17 + $0x58] sm:$0xff]
    %v3858 = vld [vmem:[#allocation17 + $0x60] sm:$0xff]
    %v3859 = vld [vmem:[#allocation17 + $0x68] sm:$0xff]
    %v3860 = vld [vmem:[#allocation17 + $0x70] sm:$0xff]
    %v3861 = vld [vmem:[#allocation17 + $0x78] sm:$0xff]
    %v3862 = vld [vmem:[#allocation17 + $0x80] sm:$0xff]
    %v3863 = vld [vmem:[#allocation17 + $0x88] sm:$0xff]
    %v3864 = vld [vmem:[#allocation17 + $0x90] sm:$0xff]
    %v3865 = vld [vmem:[#allocation17 + $0x98] sm:$0xff]
    %v3866 = vld [vmem:[#allocation17 + $0xa0] sm:$0xff]
    %v3867 = vld [vmem:[#allocation17 + $0xa8] sm:$0xff]
    %v3868 = vld [vmem:[#allocation17 + $0xb0] sm:$0xff]
    %v3869 = vld [vmem:[#allocation17 + $0xb8] sm:$0xff]
    %v3870 = vld [vmem:[#allocation17 + $0xc0] sm:$0xff]
    %v3871 = vld [vmem:[#allocation17 + $0xc8] sm:$0xff]
    %v3872 = vld [vmem:[#allocation17 + $0xd0] sm:$0xff]
    %v3873 = vld [vmem:[#allocation17 + $0xd8] sm:$0xff]
    %v3874 = vld [vmem:[#allocation17 + $0xe0] sm:$0xff]
    %v3875 = vld [vmem:[#allocation17 + $0xe8] sm:$0xff]
    %v3876 = vld [vmem:[#allocation17 + $0xf0] sm:$0xff]
    %v3877 = vld [vmem:[#allocation17 + $0xf8] sm:$0xff]
    %v3878 = vld [vmem:[#allocation17 + $0x100] sm:$0xff]
    %v3879 = vld [vmem:[#allocation17 + $0x108] sm:$0xff]
    %v3880 = vld [vmem:[#allocation17 + $0x110] sm:$0xff]
    %v3881 = vld [vmem:[#allocation17 + $0x118] sm:$0xff]
    %v3882 = vld [vmem:[#allocation17 + $0x120] sm:$0xff]
    %v3883 = vld [vmem:[#allocation17 + $0x128] sm:$0xff]
    %v3884 = vld [vmem:[#allocation17 + $0x130] sm:$0xff]
    %v3885 = vld [vmem:[#allocation17 + $0x138] sm:$0xff]
    %v3886 = vld [vmem:[#allocation17 + $0x140] sm:$0xff]
    %v3887 = vld [vmem:[#allocation17 + $0x148] sm:$0xff]
    %v3888 = vld [vmem:[#allocation17 + $0x150] sm:$0xff]
    %v3889 = vld [vmem:[#allocation17 + $0x158] sm:$0xff]
    %v3890 = vld [vmem:[#allocation17 + $0x160] sm:$0xff]
    %v3891 = vld [vmem:[#allocation17 + $0x168] sm:$0xff]
    %v3892 = vld [vmem:[#allocation17 + $0x170] sm:$0xff]
    %v3893 = vld [vmem:[#allocation17 + $0x178] sm:$0xff]
    %v3894 = vld [vmem:[#allocation17 + $0x180] sm:$0xff]
    %v3895 = vld [vmem:[#allocation17 + $0x188] sm:$0xff]
    %v3896 = vld [vmem:[#allocation17 + $0x190] sm:$0xff]
    %v3897 = vld [vmem:[#allocation17 + $0x198] sm:$0xff]
    %v3898 = vld [vmem:[#allocation17 + $0x1a0] sm:$0xff]
    %v3899 = vld [vmem:[#allocation17 + $0x1a8] sm:$0xff]
    %v3900 = vld [vmem:[#allocation17 + $0x1b0] sm:$0xff]
    %v3901 = vld [vmem:[#allocation17 + $0x1b8] sm:$0xff]
    %v3902 = vld [vmem:[#allocation17 + $0x1c0] sm:$0xff]
    %v3903 = vld [vmem:[#allocation17 + $0x1c8] sm:$0xff]
    %v3904 = vld [vmem:[#allocation17 + $0x1d0] sm:$0xff]
    %v3905 = vld [vmem:[#allocation17 + $0x1d8] sm:$0xff]
    %v3906 = vld [vmem:[#allocation17 + $0x1e0] sm:$0xff]
    %v3907 = vld [vmem:[#allocation17 + $0x1e8] sm:$0xff]
    %v3908 = vld [vmem:[#allocation17 + $0x1f0] sm:$0xff]
    %v3909 = vld [vmem:[#allocation17 + $0x1f8] sm:$0xff]
    %v3910 = vld [vmem:[#allocation17 + $0x200] sm:$0xff]
    %v3911 = vld [vmem:[#allocation17 + $0x208] sm:$0xff]
    %v3912 = vld [vmem:[#allocation17 + $0x210] sm:$0xff]
    %v3913 = vld [vmem:[#allocation17 + $0x218] sm:$0xff]
    %v3914 = vld [vmem:[#allocation17 + $0x220] sm:$0xff]
    %v3915 = vld [vmem:[#allocation17 + $0x228] sm:$0xff]
    %v3916 = vld [vmem:[#allocation17 + $0x230] sm:$0xff]
    %v3917 = vld [vmem:[#allocation17 + $0x238] sm:$0xff]
    %v3918 = vld [vmem:[#allocation17 + $0x240] sm:$0xff]
    %v3919 = vld [vmem:[#allocation17 + $0x248] sm:$0xff]
    %v3920 = vld [vmem:[#allocation17 + $0x250] sm:$0xff]
    %v3921 = vld [vmem:[#allocation17 + $0x258] sm:$0xff]
    %v3922 = vld [vmem:[#allocation17 + $0x260] sm:$0xff]
    %v3923 = vld [vmem:[#allocation17 + $0x268] sm:$0xff]
    %v3924 = vld [vmem:[#allocation17 + $0x270] sm:$0xff]
    %v3925 = vld [vmem:[#allocation17 + $0x278] sm:$0xff]
    %v3926 = vld [vmem:[#allocation17 + $0x280] sm:$0xff]
    %v3927 = vld [vmem:[#allocation17 + $0x288] sm:$0xff]
    %v3928 = vld [vmem:[#allocation17 + $0x290] sm:$0xff]
    %v3929 = vld [vmem:[#allocation17 + $0x298] sm:$0xff]
    %v3930 = vld [vmem:[#allocation17 + $0x2a0] sm:$0xff]
    %v3931 = vld [vmem:[#allocation17 + $0x2a8] sm:$0xff]
    %v3932 = vld [vmem:[#allocation17 + $0x2b0] sm:$0xff]
    %v3933 = vld [vmem:[#allocation17 + $0x2b8] sm:$0xff]
    %v3934 = vld [vmem:[#allocation17 + $0x2c0] sm:$0xff]
    %v3935 = vld [vmem:[#allocation17 + $0x2c8] sm:$0xff]
    %v3936 = vld [vmem:[#allocation17 + $0x2d0] sm:$0xff]
    %v3937 = vld [vmem:[#allocation17 + $0x2d8] sm:$0xff]
    %v3938 = vld [vmem:[#allocation17 + $0x2e0] sm:$0xff]
    %v3939 = vld [vmem:[#allocation17 + $0x2e8] sm:$0xff]
    %v3940 = vld [vmem:[#allocation17 + $0x2f0] sm:$0xff]
    %v3941 = vld [vmem:[#allocation17 + $0x2f8] sm:$0xff]
    %v3942 = vld [vmem:[#allocation17 + $0x300] sm:$0xff]
    %v3943 = vld [vmem:[#allocation17 + $0x308] sm:$0xff]
    %v3944 = vld [vmem:[#allocation17 + $0x310] sm:$0xff]
    %v3945 = vld [vmem:[#allocation17 + $0x318] sm:$0xff]
    %v3946 = vld [vmem:[#allocation17 + $0x320] sm:$0xff]
    %v3947 = vld [vmem:[#allocation17 + $0x328] sm:$0xff]
    %v3948 = vld [vmem:[#allocation17 + $0x330] sm:$0xff]
    %v3949 = vld [vmem:[#allocation17 + $0x338] sm:$0xff]
    %v3950 = vld [vmem:[#allocation17 + $0x340] sm:$0xff]
    %v3951 = vld [vmem:[#allocation17 + $0x348] sm:$0xff]
    %v3952 = vld [vmem:[#allocation17 + $0x350] sm:$0xff]
    %v3953 = vld [vmem:[#allocation17 + $0x358] sm:$0xff]
    %v3954 = vld [vmem:[#allocation17 + $0x360] sm:$0xff]
    %v3955 = vld [vmem:[#allocation17 + $0x368] sm:$0xff]
    %v3956 = vld [vmem:[#allocation17 + $0x370] sm:$0xff]
    %v3957 = vld [vmem:[#allocation17 + $0x378] sm:$0xff]
    %v3958 = vld [vmem:[#allocation17 + $0x380] sm:$0xff]
    %v3959 = vld [vmem:[#allocation17 + $0x388] sm:$0xff]
    %v3960 = vld [vmem:[#allocation17 + $0x390] sm:$0xff]
    %v3961 = vld [vmem:[#allocation17 + $0x398] sm:$0xff]
    %v3962 = vld [vmem:[#allocation17 + $0x3a0] sm:$0xff]
    %v3963 = vld [vmem:[#allocation17 + $0x3a8] sm:$0xff]
    %v3964 = vld [vmem:[#allocation17 + $0x3b0] sm:$0xff]
    %v3965 = vld [vmem:[#allocation17 + $0x3b8] sm:$0xff]
    %v3966 = vld [vmem:[#allocation17 + $0x3c0] sm:$0xff]
    %v3967 = vld [vmem:[#allocation17 + $0x3c8] sm:$0xff]
    %v3968 = vld [vmem:[#allocation17 + $0x3d0] sm:$0xff]
    %v3969 = vld [vmem:[#allocation17 + $0x3d8] sm:$0xff]
    %v3970 = vld [vmem:[#allocation17 + $0x3e0] sm:$0xff]
    %v3971 = vld [vmem:[#allocation17 + $0x3e8] sm:$0xff]
    %v3972 = vld [vmem:[#allocation17 + $0x3f0] sm:$0xff]
    %v3973 = vld [vmem:[#allocation17 + $0x3f8] sm:$0xff]
    %v3974 = vpack.c.bf16 %v3842, %v3838
    %v3975 = vpack.c.bf16 %v3843, %v3839
    %v3976 = vpack.c.bf16 %v3844, %v3840
    %v3977 = vpack.c.bf16 %v3845, %v3841
    %v4106 = vunpack.c.l.b16 %v3846
    %v4107 = vunpack.c.h.b16 %v3846
    %v4108 = vunpack.c.l.b16 %v3847
    %v4109 = vunpack.c.h.b16 %v3847
    %v4110 = vunpack.c.l.b16 %v3848
    %v4111 = vunpack.c.h.b16 %v3848
    %v4112 = vunpack.c.l.b16 %v3849
    %v4113 = vunpack.c.h.b16 %v3849
    %v4114 = vunpack.c.l.b16 %v3850
    %v4115 = vunpack.c.h.b16 %v3850
    %v4116 = vunpack.c.l.b16 %v3851
    %v4117 = vunpack.c.h.b16 %v3851
    %v4118 = vunpack.c.l.b16 %v3852
    %v4119 = vunpack.c.h.b16 %v3852
    %v4120 = vunpack.c.l.b16 %v3853
    %v4121 = vunpack.c.h.b16 %v3853
    %v4122 = vunpack.c.l.b16 %v3854
    %v4123 = vunpack.c.h.b16 %v3854
    %v4124 = vunpack.c.l.b16 %v3855
    %v4125 = vunpack.c.h.b16 %v3855
    %v4126 = vunpack.c.l.b16 %v3856
    %v4127 = vunpack.c.h.b16 %v3856
    %v4128 = vunpack.c.l.b16 %v3857
    %v4129 = vunpack.c.h.b16 %v3857
    %v4130 = vunpack.c.l.b16 %v3858
    %v4131 = vunpack.c.h.b16 %v3858
    %v4132 = vunpack.c.l.b16 %v3859
    %v4133 = vunpack.c.h.b16 %v3859
    %v4134 = vunpack.c.l.b16 %v3860
    %v4135 = vunpack.c.h.b16 %v3860
    %v4136 = vunpack.c.l.b16 %v3861
    %v4137 = vunpack.c.h.b16 %v3861
    %v4138 = vunpack.c.l.b16 %v3862
    %v4139 = vunpack.c.h.b16 %v3862
    %v4140 = vunpack.c.l.b16 %v3863
    %v4141 = vunpack.c.h.b16 %v3863
    %v4142 = vunpack.c.l.b16 %v3864
    %v4143 = vunpack.c.h.b16 %v3864
    %v4144 = vunpack.c.l.b16 %v3865
    %v4145 = vunpack.c.h.b16 %v3865
    %v4146 = vunpack.c.l.b16 %v3866
    %v4147 = vunpack.c.h.b16 %v3866
    %v4148 = vunpack.c.l.b16 %v3867
    %v4149 = vunpack.c.h.b16 %v3867
    %v4150 = vunpack.c.l.b16 %v3868
    %v4151 = vunpack.c.h.b16 %v3868
    %v4152 = vunpack.c.l.b16 %v3869
    %v4153 = vunpack.c.h.b16 %v3869
    %v4154 = vunpack.c.l.b16 %v3870
    %v4155 = vunpack.c.h.b16 %v3870
    %v4156 = vunpack.c.l.b16 %v3871
    %v4157 = vunpack.c.h.b16 %v3871
    %v4158 = vunpack.c.l.b16 %v3872
    %v4159 = vunpack.c.h.b16 %v3872
    %v4160 = vunpack.c.l.b16 %v3873
    %v4161 = vunpack.c.h.b16 %v3873
    %v4162 = vunpack.c.l.b16 %v3874
    %v4163 = vunpack.c.h.b16 %v3874
    %v4164 = vunpack.c.l.b16 %v3875
    %v4165 = vunpack.c.h.b16 %v3875
    %v4166 = vunpack.c.l.b16 %v3876
    %v4167 = vunpack.c.h.b16 %v3876
    %v4168 = vunpack.c.l.b16 %v3877
    %v4169 = vunpack.c.h.b16 %v3877
    %v4170 = vunpack.c.l.b16 %v3878
    %v4171 = vunpack.c.h.b16 %v3878
    %v4172 = vunpack.c.l.b16 %v3879
    %v4173 = vunpack.c.h.b16 %v3879
    %v4174 = vunpack.c.l.b16 %v3880
    %v4175 = vunpack.c.h.b16 %v3880
    %v4176 = vunpack.c.l.b16 %v3881
    %v4177 = vunpack.c.h.b16 %v3881
    %v4178 = vunpack.c.l.b16 %v3882
    %v4179 = vunpack.c.h.b16 %v3882
    %v4180 = vunpack.c.l.b16 %v3883
    %v4181 = vunpack.c.h.b16 %v3883
    %v4182 = vunpack.c.l.b16 %v3884
    %v4183 = vunpack.c.h.b16 %v3884
    %v4184 = vunpack.c.l.b16 %v3885
    %v4185 = vunpack.c.h.b16 %v3885
    %v4186 = vunpack.c.l.b16 %v3886
    %v4187 = vunpack.c.h.b16 %v3886
    %v4188 = vunpack.c.l.b16 %v3887
    %v4189 = vunpack.c.h.b16 %v3887
    %v4190 = vunpack.c.l.b16 %v3888
    %v4191 = vunpack.c.h.b16 %v3888
    %v4192 = vunpack.c.l.b16 %v3889
    %v4193 = vunpack.c.h.b16 %v3889
    %v4194 = vunpack.c.l.b16 %v3890
    %v4195 = vunpack.c.h.b16 %v3890
    %v4196 = vunpack.c.l.b16 %v3891
    %v4197 = vunpack.c.h.b16 %v3891
    %v4198 = vunpack.c.l.b16 %v3892
    %v4199 = vunpack.c.h.b16 %v3892
    %v4200 = vunpack.c.l.b16 %v3893
    %v4201 = vunpack.c.h.b16 %v3893
    %v4202 = vunpack.c.l.b16 %v3894
    %v4203 = vunpack.c.h.b16 %v3894
    %v4204 = vunpack.c.l.b16 %v3895
    %v4205 = vunpack.c.h.b16 %v3895
    %v4206 = vunpack.c.l.b16 %v3896
    %v4207 = vunpack.c.h.b16 %v3896
    %v4208 = vunpack.c.l.b16 %v3897
    %v4209 = vunpack.c.h.b16 %v3897
    %v4210 = vunpack.c.l.b16 %v3898
    %v4211 = vunpack.c.h.b16 %v3898
    %v4212 = vunpack.c.l.b16 %v3899
    %v4213 = vunpack.c.h.b16 %v3899
    %v4214 = vunpack.c.l.b16 %v3900
    %v4215 = vunpack.c.h.b16 %v3900
    %v4216 = vunpack.c.l.b16 %v3901
    %v4217 = vunpack.c.h.b16 %v3901
    %v4218 = vunpack.c.l.b16 %v3902
    %v4219 = vunpack.c.h.b16 %v3902
    %v4220 = vunpack.c.l.b16 %v3903
    %v4221 = vunpack.c.h.b16 %v3903
    %v4222 = vunpack.c.l.b16 %v3904
    %v4223 = vunpack.c.h.b16 %v3904
    %v4224 = vunpack.c.l.b16 %v3905
    %v4225 = vunpack.c.h.b16 %v3905
    %v4226 = vunpack.c.l.b16 %v3906
    %v4227 = vunpack.c.h.b16 %v3906
    %v4228 = vunpack.c.l.b16 %v3907
    %v4229 = vunpack.c.h.b16 %v3907
    %v4230 = vunpack.c.l.b16 %v3908
    %v4231 = vunpack.c.h.b16 %v3908
    %v4232 = vunpack.c.l.b16 %v3909
    %v4233 = vunpack.c.h.b16 %v3909
    %v4234 = vunpack.c.l.b16 %v3910
    %v4235 = vunpack.c.h.b16 %v3910
    %v4236 = vunpack.c.l.b16 %v3911
    %v4237 = vunpack.c.h.b16 %v3911
    %v4238 = vunpack.c.l.b16 %v3912
    %v4239 = vunpack.c.h.b16 %v3912
    %v4240 = vunpack.c.l.b16 %v3913
    %v4241 = vunpack.c.h.b16 %v3913
    %v4242 = vunpack.c.l.b16 %v3914
    %v4243 = vunpack.c.h.b16 %v3914
    %v4244 = vunpack.c.l.b16 %v3915
    %v4245 = vunpack.c.h.b16 %v3915
    %v4246 = vunpack.c.l.b16 %v3916
    %v4247 = vunpack.c.h.b16 %v3916
    %v4248 = vunpack.c.l.b16 %v3917
    %v4249 = vunpack.c.h.b16 %v3917
    %v4250 = vunpack.c.l.b16 %v3918
    %v4251 = vunpack.c.h.b16 %v3918
    %v4252 = vunpack.c.l.b16 %v3919
    %v4253 = vunpack.c.h.b16 %v3919
    %v4254 = vunpack.c.l.b16 %v3920
    %v4255 = vunpack.c.h.b16 %v3920
    %v4256 = vunpack.c.l.b16 %v3921
    %v4257 = vunpack.c.h.b16 %v3921
    %v4258 = vunpack.c.l.b16 %v3922
    %v4259 = vunpack.c.h.b16 %v3922
    %v4260 = vunpack.c.l.b16 %v3923
    %v4261 = vunpack.c.h.b16 %v3923
    %v4262 = vunpack.c.l.b16 %v3924
    %v4263 = vunpack.c.h.b16 %v3924
    %v4264 = vunpack.c.l.b16 %v3925
    %v4265 = vunpack.c.h.b16 %v3925
    %v4266 = vunpack.c.l.b16 %v3926
    %v4267 = vunpack.c.h.b16 %v3926
    %v4268 = vunpack.c.l.b16 %v3927
    %v4269 = vunpack.c.h.b16 %v3927
    %v4270 = vunpack.c.l.b16 %v3928
    %v4271 = vunpack.c.h.b16 %v3928
    %v4272 = vunpack.c.l.b16 %v3929
    %v4273 = vunpack.c.h.b16 %v3929
    %v4274 = vunpack.c.l.b16 %v3930
    %v4275 = vunpack.c.h.b16 %v3930
    %v4276 = vunpack.c.l.b16 %v3931
    %v4277 = vunpack.c.h.b16 %v3931
    %v4278 = vunpack.c.l.b16 %v3932
    %v4279 = vunpack.c.h.b16 %v3932
    %v4280 = vunpack.c.l.b16 %v3933
    %v4281 = vunpack.c.h.b16 %v3933
    %v4282 = vunpack.c.l.b16 %v3934
    %v4283 = vunpack.c.h.b16 %v3934
    %v4284 = vunpack.c.l.b16 %v3935
    %v4285 = vunpack.c.h.b16 %v3935
    %v4286 = vunpack.c.l.b16 %v3936
    %v4287 = vunpack.c.h.b16 %v3936
    %v4288 = vunpack.c.l.b16 %v3937
    %v4289 = vunpack.c.h.b16 %v3937
    %v4290 = vunpack.c.l.b16 %v3938
    %v4291 = vunpack.c.h.b16 %v3938
    %v4292 = vunpack.c.l.b16 %v3939
    %v4293 = vunpack.c.h.b16 %v3939
    %v4294 = vunpack.c.l.b16 %v3940
    %v4295 = vunpack.c.h.b16 %v3940
    %v4296 = vunpack.c.l.b16 %v3941
    %v4297 = vunpack.c.h.b16 %v3941
    %v4298 = vunpack.c.l.b16 %v3942
    %v4299 = vunpack.c.h.b16 %v3942
    %v4300 = vunpack.c.l.b16 %v3943
    %v4301 = vunpack.c.h.b16 %v3943
    %v4302 = vunpack.c.l.b16 %v3944
    %v4303 = vunpack.c.h.b16 %v3944
    %v4304 = vunpack.c.l.b16 %v3945
    %v4305 = vunpack.c.h.b16 %v3945
    %v4306 = vunpack.c.l.b16 %v3946
    %v4307 = vunpack.c.h.b16 %v3946
    %v4308 = vunpack.c.l.b16 %v3947
    %v4309 = vunpack.c.h.b16 %v3947
    %v4310 = vunpack.c.l.b16 %v3948
    %v4311 = vunpack.c.h.b16 %v3948
    %v4312 = vunpack.c.l.b16 %v3949
    %v4313 = vunpack.c.h.b16 %v3949
    %v4314 = vunpack.c.l.b16 %v3950
    %v4315 = vunpack.c.h.b16 %v3950
    %v4316 = vunpack.c.l.b16 %v3951
    %v4317 = vunpack.c.h.b16 %v3951
    %v4318 = vunpack.c.l.b16 %v3952
    %v4319 = vunpack.c.h.b16 %v3952
    %v4320 = vunpack.c.l.b16 %v3953
    %v4321 = vunpack.c.h.b16 %v3953
    %v4322 = vunpack.c.l.b16 %v3954
    %v4323 = vunpack.c.h.b16 %v3954
    %v4324 = vunpack.c.l.b16 %v3955
    %v4325 = vunpack.c.h.b16 %v3955
    %v4326 = vunpack.c.l.b16 %v3956
    %v4327 = vunpack.c.h.b16 %v3956
    %v4328 = vunpack.c.l.b16 %v3957
    %v4329 = vunpack.c.h.b16 %v3957
    %v4330 = vunpack.c.l.b16 %v3958
    %v4331 = vunpack.c.h.b16 %v3958
    %v4332 = vunpack.c.l.b16 %v3959
    %v4333 = vunpack.c.h.b16 %v3959
    %v4334 = vunpack.c.l.b16 %v3960
    %v4335 = vunpack.c.h.b16 %v3960
    %v4336 = vunpack.c.l.b16 %v3961
    %v4337 = vunpack.c.h.b16 %v3961
    %v4338 = vunpack.c.l.b16 %v3962
    %v4339 = vunpack.c.h.b16 %v3962
    %v4340 = vunpack.c.l.b16 %v3963
    %v4341 = vunpack.c.h.b16 %v3963
    %v4342 = vunpack.c.l.b16 %v3964
    %v4343 = vunpack.c.h.b16 %v3964
    %v4344 = vunpack.c.l.b16 %v3965
    %v4345 = vunpack.c.h.b16 %v3965
    %v4346 = vunpack.c.l.b16 %v3966
    %v4347 = vunpack.c.h.b16 %v3966
    %v4348 = vunpack.c.l.b16 %v3967
    %v4349 = vunpack.c.h.b16 %v3967
    %v4350 = vunpack.c.l.b16 %v3968
    %v4351 = vunpack.c.h.b16 %v3968
    %v4352 = vunpack.c.l.b16 %v3969
    %v4353 = vunpack.c.h.b16 %v3969
    %v4354 = vunpack.c.l.b16 %v3970
    %v4355 = vunpack.c.h.b16 %v3970
    %v4356 = vunpack.c.l.b16 %v3971
    %v4357 = vunpack.c.h.b16 %v3971
    %v4358 = vunpack.c.l.b16 %v3972
    %v4359 = vunpack.c.h.b16 %v3972
    %v4360 = vunpack.c.l.b16 %v3973
    %v4361 = vunpack.c.h.b16 %v3973
    %v4362 = vpack.c.b16 %v4110, %v4106
    %v4363 = vpack.c.b16 %v4111, %v4107
    %v4364 = vpack.c.b16 %v4112, %v4108
    %v4365 = vpack.c.b16 %v4113, %v4109
    %v4366 = vpack.c.b16 %v4118, %v4114
    %v4367 = vpack.c.b16 %v4119, %v4115
    %v4368 = vpack.c.b16 %v4120, %v4116
    %v4369 = vpack.c.b16 %v4121, %v4117
    %v4370 = vpack.c.b16 %v4126, %v4122
    %v4371 = vpack.c.b16 %v4127, %v4123
    %v4372 = vpack.c.b16 %v4128, %v4124
    %v4373 = vpack.c.b16 %v4129, %v4125
    %v4374 = vpack.c.b16 %v4134, %v4130
    %v4375 = vpack.c.b16 %v4135, %v4131
    %v4376 = vpack.c.b16 %v4136, %v4132
    %v4377 = vpack.c.b16 %v4137, %v4133
    %v4378 = vpack.c.b16 %v4142, %v4138
    %v4379 = vpack.c.b16 %v4143, %v4139
    %v4380 = vpack.c.b16 %v4144, %v4140
    %v4381 = vpack.c.b16 %v4145, %v4141
    %v4382 = vpack.c.b16 %v4150, %v4146
    %v4383 = vpack.c.b16 %v4151, %v4147
    %v4384 = vpack.c.b16 %v4152, %v4148
    %v4385 = vpack.c.b16 %v4153, %v4149
    %v4386 = vpack.c.b16 %v4158, %v4154
    %v4387 = vpack.c.b16 %v4159, %v4155
    %v4388 = vpack.c.b16 %v4160, %v4156
    %v4389 = vpack.c.b16 %v4161, %v4157
    %v4390 = vpack.c.b16 %v4166, %v4162
    %v4391 = vpack.c.b16 %v4167, %v4163
    %v4392 = vpack.c.b16 %v4168, %v4164
    %v4393 = vpack.c.b16 %v4169, %v4165
    %v4394 = vpack.c.b16 %v4174, %v4170
    %v4395 = vpack.c.b16 %v4175, %v4171
    %v4396 = vpack.c.b16 %v4176, %v4172
    %v4397 = vpack.c.b16 %v4177, %v4173
    %v4398 = vpack.c.b16 %v4182, %v4178
    %v4399 = vpack.c.b16 %v4183, %v4179
    %v4400 = vpack.c.b16 %v4184, %v4180
    %v4401 = vpack.c.b16 %v4185, %v4181
    %v4402 = vpack.c.b16 %v4190, %v4186
    %v4403 = vpack.c.b16 %v4191, %v4187
    %v4404 = vpack.c.b16 %v4192, %v4188
    %v4405 = vpack.c.b16 %v4193, %v4189
    %v4406 = vpack.c.b16 %v4198, %v4194
    %v4407 = vpack.c.b16 %v4199, %v4195
    %v4408 = vpack.c.b16 %v4200, %v4196
    %v4409 = vpack.c.b16 %v4201, %v4197
    %v4410 = vpack.c.b16 %v4206, %v4202
    %v4411 = vpack.c.b16 %v4207, %v4203
    %v4412 = vpack.c.b16 %v4208, %v4204
    %v4413 = vpack.c.b16 %v4209, %v4205
    %v4414 = vpack.c.b16 %v4214, %v4210
    %v4415 = vpack.c.b16 %v4215, %v4211
    %v4416 = vpack.c.b16 %v4216, %v4212
    %v4417 = vpack.c.b16 %v4217, %v4213
    %v4418 = vpack.c.b16 %v4222, %v4218
    %v4419 = vpack.c.b16 %v4223, %v4219
    %v4420 = vpack.c.b16 %v4224, %v4220
    %v4421 = vpack.c.b16 %v4225, %v4221
    %v4422 = vpack.c.b16 %v4230, %v4226
    %v4423 = vpack.c.b16 %v4231, %v4227
    %v4424 = vpack.c.b16 %v4232, %v4228
    %v4425 = vpack.c.b16 %v4233, %v4229
    %v4426 = vpack.c.b16 %v4238, %v4234
    %v4427 = vpack.c.b16 %v4239, %v4235
    %v4428 = vpack.c.b16 %v4240, %v4236
    %v4429 = vpack.c.b16 %v4241, %v4237
    %v4430 = vpack.c.b16 %v4246, %v4242
    %v4431 = vpack.c.b16 %v4247, %v4243
    %v4432 = vpack.c.b16 %v4248, %v4244
    %v4433 = vpack.c.b16 %v4249, %v4245
    %v4434 = vpack.c.b16 %v4254, %v4250
    %v4435 = vpack.c.b16 %v4255, %v4251
    %v4436 = vpack.c.b16 %v4256, %v4252
    %v4437 = vpack.c.b16 %v4257, %v4253
    %v4438 = vpack.c.b16 %v4262, %v4258
    %v4439 = vpack.c.b16 %v4263, %v4259
    %v4440 = vpack.c.b16 %v4264, %v4260
    %v4441 = vpack.c.b16 %v4265, %v4261
    %v4442 = vpack.c.b16 %v4270, %v4266
    %v4443 = vpack.c.b16 %v4271, %v4267
    %v4444 = vpack.c.b16 %v4272, %v4268
    %v4445 = vpack.c.b16 %v4273, %v4269
    %v4446 = vpack.c.b16 %v4278, %v4274
    %v4447 = vpack.c.b16 %v4279, %v4275
    %v4448 = vpack.c.b16 %v4280, %v4276
    %v4449 = vpack.c.b16 %v4281, %v4277
    %v4450 = vpack.c.b16 %v4286, %v4282
    %v4451 = vpack.c.b16 %v4287, %v4283
    %v4452 = vpack.c.b16 %v4288, %v4284
    %v4453 = vpack.c.b16 %v4289, %v4285
    %v4454 = vpack.c.b16 %v4294, %v4290
    %v4455 = vpack.c.b16 %v4295, %v4291
    %v4456 = vpack.c.b16 %v4296, %v4292
    %v4457 = vpack.c.b16 %v4297, %v4293
    %v4458 = vpack.c.b16 %v4302, %v4298
    %v4459 = vpack.c.b16 %v4303, %v4299
    %v4460 = vpack.c.b16 %v4304, %v4300
    %v4461 = vpack.c.b16 %v4305, %v4301
    %v4462 = vpack.c.b16 %v4310, %v4306
    %v4463 = vpack.c.b16 %v4311, %v4307
    %v4464 = vpack.c.b16 %v4312, %v4308
    %v4465 = vpack.c.b16 %v4313, %v4309
    %v4466 = vpack.c.b16 %v4318, %v4314
    %v4467 = vpack.c.b16 %v4319, %v4315
    %v4468 = vpack.c.b16 %v4320, %v4316
    %v4469 = vpack.c.b16 %v4321, %v4317
    %v4470 = vpack.c.b16 %v4326, %v4322
    %v4471 = vpack.c.b16 %v4327, %v4323
    %v4472 = vpack.c.b16 %v4328, %v4324
    %v4473 = vpack.c.b16 %v4329, %v4325
    %v4474 = vpack.c.b16 %v4334, %v4330
    %v4475 = vpack.c.b16 %v4335, %v4331
    %v4476 = vpack.c.b16 %v4336, %v4332
    %v4477 = vpack.c.b16 %v4337, %v4333
    %v4478 = vpack.c.b16 %v4342, %v4338
    %v4479 = vpack.c.b16 %v4343, %v4339
    %v4480 = vpack.c.b16 %v4344, %v4340
    %v4481 = vpack.c.b16 %v4345, %v4341
    %v4482 = vpack.c.b16 %v4350, %v4346
    %v4483 = vpack.c.b16 %v4351, %v4347
    %v4484 = vpack.c.b16 %v4352, %v4348
    %v4485 = vpack.c.b16 %v4353, %v4349
    %v4486 = vpack.c.b16 %v4358, %v4354
    %v4487 = vpack.c.b16 %v4359, %v4355
    %v4488 = vpack.c.b16 %v4360, %v4356
    %v4489 = vpack.c.b16 %v4361, %v4357
    %4618 = vmatprep.subr.bf16.mxu0 %v4391
    %4619 = vmatpush1.bf16.msra.mxu0 %v4390
    %4620 = vmatprep.subr.bf16.mxu0 %v4387
    %4621 = vmatpush1.bf16.msra.mxu0 %v4386
    %4622 = vmatprep.subr.bf16.mxu0 %v4383
    %4623 = vmatpush1.bf16.msra.mxu0 %v4382
    %4624 = vmatprep.subr.bf16.mxu0 %v4379
    %4625 = vmatpush1.bf16.msra.mxu0 %v4378
    %4626 = vmatprep.subr.bf16.mxu0 %v4375
    %4627 = vmatpush1.bf16.msra.mxu0 %v4374
    %4628 = vmatprep.subr.bf16.mxu0 %v4371
    %4629 = vmatpush1.bf16.msra.mxu0 %v4370
    %4630 = vmatprep.subr.bf16.mxu0 %v4367
    %4631 = vmatpush1.bf16.msra.mxu0 %v4366
    %4632 = vmatprep.subr.bf16.mxu0 %v4363
    %4633 = vmatpush1.bf16.msra.mxu0 %v4362
    %4634 = vmatprep.subr.bf16.mxu0 %v4423
    %4635 = vmatpush2.bf16.msra.mxu0 %v4422
    %4636 = vmatprep.subr.bf16.mxu0 %v4419
    %4637 = vmatpush2.bf16.msra.mxu0 %v4418
    %4638 = vmatprep.subr.bf16.mxu0 %v4415
    %4639 = vmatpush2.bf16.msra.mxu0 %v4414
    %4640 = vmatprep.subr.bf16.mxu0 %v4411
    %4641 = vmatpush2.bf16.msra.mxu0 %v4410
    %4642 = vmatprep.subr.bf16.mxu0 %v4407
    %4643 = vmatpush2.bf16.msra.mxu0 %v4406
    %4644 = vmatprep.subr.bf16.mxu0 %v4403
    %4645 = vmatpush2.bf16.msra.mxu0 %v4402
    %4646 = vmatprep.subr.bf16.mxu0 %v4399
    %4647 = vmatpush2.bf16.msra.mxu0 %v4398
    %4648 = vmatprep.subr.bf16.mxu0 %v4395
    %4649 = vmatpush2.bf16.msra.mxu0 %v4394
    %4650 = vmatprep.mubr.bf16.mxu0 %v3975
    %4651 = vmatmul.mubr.bf16.gmra.mxu0 %v3974
    %v4652 = vpop.f32.mrf.mxu0
    %v4653 = vadd.f32 0.0, %v4652
    %v4654 = vpop.f32.mrf.mxu0
    %v4655 = vadd.f32 0.0, %v4654
    %v4656 = vpop.f32.mrf.mxu0
    %v4657 = vadd.f32 0.0, %v4656
    %v4658 = vpop.f32.mrf.mxu0
    %v4659 = vadd.f32 0.0, %v4658
    %4660 = vdwg.mxu0
    %4661 = vmatprep.subr.bf16.mxu0 %v4455
    %4662 = vmatpush1.bf16.msra.mxu0 %v4454
    %4663 = vmatprep.subr.bf16.mxu0 %v4451
    %4664 = vmatpush1.bf16.msra.mxu0 %v4450
    %4665 = vmatprep.subr.bf16.mxu0 %v4447
    %4666 = vmatpush1.bf16.msra.mxu0 %v4446
    %4667 = vmatprep.subr.bf16.mxu0 %v4443
    %4668 = vmatpush1.bf16.msra.mxu0 %v4442
    %4669 = vmatprep.subr.bf16.mxu0 %v4439
    %4670 = vmatpush1.bf16.msra.mxu0 %v4438
    %4671 = vmatprep.subr.bf16.mxu0 %v4435
    %4672 = vmatpush1.bf16.msra.mxu0 %v4434
    %4673 = vmatprep.subr.bf16.mxu0 %v4431
    %4674 = vmatpush1.bf16.msra.mxu0 %v4430
    %4675 = vmatprep.subr.bf16.mxu0 %v4427
    %4676 = vmatpush1.bf16.msra.mxu0 %v4426
    %4677 = vmatprep.subr.bf16.mxu0 %v4487
    %4678 = vmatpush2.bf16.msra.mxu0 %v4486
    %4679 = vmatprep.subr.bf16.mxu0 %v4483
    %4680 = vmatpush2.bf16.msra.mxu0 %v4482
    %4681 = vmatprep.subr.bf16.mxu0 %v4479
    %4682 = vmatpush2.bf16.msra.mxu0 %v4478
    %4683 = vmatprep.subr.bf16.mxu0 %v4475
    %4684 = vmatpush2.bf16.msra.mxu0 %v4474
    %4685 = vmatprep.subr.bf16.mxu0 %v4471
    %4686 = vmatpush2.bf16.msra.mxu0 %v4470
    %4687 = vmatprep.subr.bf16.mxu0 %v4467
    %4688 = vmatpush2.bf16.msra.mxu0 %v4466
    %4689 = vmatprep.subr.bf16.mxu0 %v4463
    %4690 = vmatpush2.bf16.msra.mxu0 %v4462
    %4691 = vmatprep.subr.bf16.mxu0 %v4459
    %4692 = vmatpush2.bf16.msra.mxu0 %v4458
    %4693 = vmatprep.mubr.bf16.mxu0 %v3977
    %4694 = vmatmul.mubr.bf16.gmra.mxu0 %v3976
    %v4695 = vpop.f32.mrf.mxu0
    %v4696 = vadd.f32 %v4653, %v4695
    %v4697 = vpop.f32.mrf.mxu0
    %v4698 = vadd.f32 %v4655, %v4697
    %v4699 = vpop.f32.mrf.mxu0
    %v4700 = vadd.f32 %v4657, %v4699
    %v4701 = vpop.f32.mrf.mxu0
    %v4702 = vadd.f32 %v4659, %v4701
    %4703 = vdwg.mxu0
    %4704 = vmatprep.subr.bf16.mxu0 %v4393
    %4705 = vmatpush1.bf16.msra.mxu0 %v4392
    %4706 = vmatprep.subr.bf16.mxu0 %v4389
    %4707 = vmatpush1.bf16.msra.mxu0 %v4388
    %4708 = vmatprep.subr.bf16.mxu0 %v4385
    %4709 = vmatpush1.bf16.msra.mxu0 %v4384
    %4710 = vmatprep.subr.bf16.mxu0 %v4381
    %4711 = vmatpush1.bf16.msra.mxu0 %v4380
    %4712 = vmatprep.subr.bf16.mxu0 %v4377
    %4713 = vmatpush1.bf16.msra.mxu0 %v4376
    %4714 = vmatprep.subr.bf16.mxu0 %v4373
    %4715 = vmatpush1.bf16.msra.mxu0 %v4372
    %4716 = vmatprep.subr.bf16.mxu0 %v4369
    %4717 = vmatpush1.bf16.msra.mxu0 %v4368
    %4718 = vmatprep.subr.bf16.mxu0 %v4365
    %4719 = vmatpush1.bf16.msra.mxu0 %v4364
    %4720 = vmatprep.subr.bf16.mxu0 %v4425
    %4721 = vmatpush2.bf16.msra.mxu0 %v4424
    %4722 = vmatprep.subr.bf16.mxu0 %v4421
    %4723 = vmatpush2.bf16.msra.mxu0 %v4420
    %4724 = vmatprep.subr.bf16.mxu0 %v4417
    %4725 = vmatpush2.bf16.msra.mxu0 %v4416
    %4726 = vmatprep.subr.bf16.mxu0 %v4413
    %4727 = vmatpush2.bf16.msra.mxu0 %v4412
    %4728 = vmatprep.subr.bf16.mxu0 %v4409
    %4729 = vmatpush2.bf16.msra.mxu0 %v4408
    %4730 = vmatprep.subr.bf16.mxu0 %v4405
    %4731 = vmatpush2.bf16.msra.mxu0 %v4404
    %4732 = vmatprep.subr.bf16.mxu0 %v4401
    %4733 = vmatpush2.bf16.msra.mxu0 %v4400
    %4734 = vmatprep.subr.bf16.mxu0 %v4397
    %4735 = vmatpush2.bf16.msra.mxu0 %v4396
    %4736 = vmatprep.mubr.bf16.mxu0 %v3975
    %4737 = vmatmul.mubr.bf16.gmra.mxu0 %v3974
    %v4738 = vpop.f32.mrf.mxu0
    %v4739 = vadd.f32 0.0, %v4738
    %v4740 = vpop.f32.mrf.mxu0
    %v4741 = vadd.f32 0.0, %v4740
    %v4742 = vpop.f32.mrf.mxu0
    %v4743 = vadd.f32 0.0, %v4742
    %v4744 = vpop.f32.mrf.mxu0
    %v4745 = vadd.f32 0.0, %v4744
    %4746 = vdwg.mxu0
    %4747 = vmatprep.subr.bf16.mxu0 %v4457
    %4748 = vmatpush1.bf16.msra.mxu0 %v4456
    %4749 = vmatprep.subr.bf16.mxu0 %v4453
    %4750 = vmatpush1.bf16.msra.mxu0 %v4452
    %4751 = vmatprep.subr.bf16.mxu0 %v4449
    %4752 = vmatpush1.bf16.msra.mxu0 %v4448
    %4753 = vmatprep.subr.bf16.mxu0 %v4445
    %4754 = vmatpush1.bf16.msra.mxu0 %v4444
    %4755 = vmatprep.subr.bf16.mxu0 %v4441
    %4756 = vmatpush1.bf16.msra.mxu0 %v4440
    %4757 = vmatprep.subr.bf16.mxu0 %v4437
    %4758 = vmatpush1.bf16.msra.mxu0 %v4436
    %4759 = vmatprep.subr.bf16.mxu0 %v4433
    %4760 = vmatpush1.bf16.msra.mxu0 %v4432
    %4761 = vmatprep.subr.bf16.mxu0 %v4429
    %4762 = vmatpush1.bf16.msra.mxu0 %v4428
    %4763 = vmatprep.subr.bf16.mxu0 %v4489
    %4764 = vmatpush2.bf16.msra.mxu0 %v4488
    %4765 = vmatprep.subr.bf16.mxu0 %v4485
    %4766 = vmatpush2.bf16.msra.mxu0 %v4484
    %4767 = vmatprep.subr.bf16.mxu0 %v4481
    %4768 = vmatpush2.bf16.msra.mxu0 %v4480
    %4769 = vmatprep.subr.bf16.mxu0 %v4477
    %4770 = vmatpush2.bf16.msra.mxu0 %v4476
    %4771 = vmatprep.subr.bf16.mxu0 %v4473
    %4772 = vmatpush2.bf16.msra.mxu0 %v4472
    %4773 = vmatprep.subr.bf16.mxu0 %v4469
    %4774 = vmatpush2.bf16.msra.mxu0 %v4468
    %4775 = vmatprep.subr.bf16.mxu0 %v4465
    %4776 = vmatpush2.bf16.msra.mxu0 %v4464
    %4777 = vmatprep.subr.bf16.mxu0 %v4461
    %4778 = vmatpush2.bf16.msra.mxu0 %v4460
    %4779 = vmatprep.mubr.bf16.mxu0 %v3977
    %4780 = vmatmul.mubr.bf16.gmra.mxu0 %v3976
    %v4781 = vpop.f32.mrf.mxu0
    %v4782 = vadd.f32 %v4739, %v4781
    %v4783 = vpop.f32.mrf.mxu0
    %v4784 = vadd.f32 %v4741, %v4783
    %v4785 = vpop.f32.mrf.mxu0
    %v4786 = vadd.f32 %v4743, %v4785
    %v4787 = vpop.f32.mrf.mxu0
    %v4788 = vadd.f32 %v4745, %v4787
    %4789 = vdwg.mxu0
    %v4790 = vld [vmem:[#allocation20] sm:$0xf]
    %v4791 = vld [vmem:[#allocation21] sm:$0xf]
    %v4792 = vadd.f32 %v4696, %v4700
    %v4793 = vrot.slane %v4792, 4
    %v4794 = vadd.f32 %v4792, %v4793
    %v4795 = vrot.slane %v4794, 2
    %v4796 = vadd.f32 %v4794, %v4795
    %v4797 = vrot.slane %v4796, 1
    %v4798 = vadd.f32 %v4796, %v4797
    %v4799 = vadd.f32 %v4698, %v4702
    %v4800 = vrot.slane %v4799, 4
    %v4801 = vadd.f32 %v4799, %v4800
    %v4802 = vrot.slane %v4801, 2
    %v4803 = vadd.f32 %v4801, %v4802
    %v4804 = vrot.slane %v4803, 1
    %v4805 = vadd.f32 %v4803, %v4804
    %v4806 = vadd.f32 %v4782, %v4786
    %v4807 = vrot.slane %v4806, 4
    %v4808 = vadd.f32 %v4806, %v4807
    %v4809 = vrot.slane %v4808, 2
    %v4810 = vadd.f32 %v4808, %v4809
    %v4811 = vrot.slane %v4810, 1
    %v4812 = vadd.f32 %v4810, %v4811
    %v4813 = vadd.f32 %v4784, %v4788
    %v4814 = vrot.slane %v4813, 4
    %v4815 = vadd.f32 %v4813, %v4814
    %v4816 = vrot.slane %v4815, 2
    %v4817 = vadd.f32 %v4815, %v4816
    %v4818 = vrot.slane %v4817, 1
    %v4819 = vadd.f32 %v4817, %v4818
    %v4820 = vmul.f32 %v4798, %v1229
    %v4821 = vmul.f32 %v4805, %v1229
    %v4822 = vmul.f32 %v4812, %v1229
    %v4823 = vmul.f32 %v4819, %v1229
    %v4824 = vsub.f32 %v4696, %v4820
    %v4825 = vsub.f32 %v4698, %v4821
    %v4826 = vsub.f32 %v4782, %v4822
    %v4827 = vsub.f32 %v4784, %v4823
    %v4828 = vsub.f32 %v4700, %v4820
    %v4829 = vsub.f32 %v4702, %v4821
    %v4830 = vsub.f32 %v4786, %v4822
    %v4831 = vsub.f32 %v4788, %v4823
    %v4832 = vmul.f32 %v4824, %v4824
    %v4833 = vmul.f32 %v4825, %v4825
    %v4834 = vmul.f32 %v4826, %v4826
    %v4835 = vmul.f32 %v4827, %v4827
    %v4836 = vmul.f32 %v4828, %v4828
    %v4837 = vmul.f32 %v4829, %v4829
    %v4838 = vmul.f32 %v4830, %v4830
    %v4839 = vmul.f32 %v4831, %v4831
    %v4840 = vadd.f32 %v4832, %v4836
    %v4841 = vrot.slane %v4840, 4
    %v4842 = vadd.f32 %v4840, %v4841
    %v4843 = vrot.slane %v4842, 2
    %v4844 = vadd.f32 %v4842, %v4843
    %v4845 = vrot.slane %v4844, 1
    %v4846 = vadd.f32 %v4844, %v4845
    %v4847 = vadd.f32 %v4833, %v4837
    %v4848 = vrot.slane %v4847, 4
    %v4849 = vadd.f32 %v4847, %v4848
    %v4850 = vrot.slane %v4849, 2
    %v4851 = vadd.f32 %v4849, %v4850
    %v4852 = vrot.slane %v4851, 1
    %v4853 = vadd.f32 %v4851, %v4852
    %v4854 = vadd.f32 %v4834, %v4838
    %v4855 = vrot.slane %v4854, 4
    %v4856 = vadd.f32 %v4854, %v4855
    %v4857 = vrot.slane %v4856, 2
    %v4858 = vadd.f32 %v4856, %v4857
    %v4859 = vrot.slane %v4858, 1
    %v4860 = vadd.f32 %v4858, %v4859
    %v4861 = vadd.f32 %v4835, %v4839
    %v4862 = vrot.slane %v4861, 4
    %v4863 = vadd.f32 %v4861, %v4862
    %v4864 = vrot.slane %v4863, 2
    %v4865 = vadd.f32 %v4863, %v4864
    %v4866 = vrot.slane %v4865, 1
    %v4867 = vadd.f32 %v4865, %v4866
    %v4868 = vmul.f32 %v4846, %v1229
    %v4869 = vmul.f32 %v4853, %v1229
    %v4870 = vmul.f32 %v4860, %v1229
    %v4871 = vmul.f32 %v4867, %v1229
    %v4872 = vadd.f32 %v4868, 1e-05
    %v4873 = vadd.f32 %v4869, 1e-05
    %v4874 = vadd.f32 %v4870, 1e-05
    %v4875 = vadd.f32 %v4871, 1e-05
    %v4876 = vrsqrt.pop %v4872
    %v4877 = vrsqrt.pop %v4873
    %v4878 = vrsqrt.pop %v4874
    %v4879 = vrsqrt.pop %v4875
    %v4880 = vmul.f32 %v4824, %v4876
    %v4881 = vmul.f32 %v4825, %v4877
    %v4882 = vmul.f32 %v4826, %v4878
    %v4883 = vmul.f32 %v4827, %v4879
    %v4884 = vmul.f32 %v4828, %v4876
    %v4885 = vmul.f32 %v4829, %v4877
    %v4886 = vmul.f32 %v4830, %v4878
    %v4887 = vmul.f32 %v4831, %v4879
    %v4889 = vlaneseq
    %v4890 = vshrl.u32 %v4889, 7
    %v4891 = vsub.s32 0, %v4890
    %v4892 = vrot.slane %v4790, %v4891
    %v4893 = vlaneseq
    %v4894 = vshrl.u32 %v4893, 7
    %v4895 = vsub.s32 1, %v4894
    %v4896 = vrot.slane %v4790, %v4895
    %v4897 = vlaneseq
    %v4898 = vshrl.u32 %v4897, 7
    %v4899 = vsub.s32 2, %v4898
    %v4900 = vrot.slane %v4790, %v4899
    %v4901 = vlaneseq
    %v4902 = vshrl.u32 %v4901, 7
    %v4903 = vsub.s32 3, %v4902
    %v4904 = vrot.slane %v4790, %v4903
    %v4909 = vmul.f32 %v4880, %v4892
    %v4910 = vmul.f32 %v4881, %v4896
    %v4911 = vmul.f32 %v4882, %v4900
    %v4912 = vmul.f32 %v4883, %v4904
    %v4913 = vmul.f32 %v4884, %v4892
    %v4914 = vmul.f32 %v4885, %v4896
    %v4915 = vmul.f32 %v4886, %v4900
    %v4916 = vmul.f32 %v4887, %v4904
    %v4918 = vlaneseq
    %v4919 = vshrl.u32 %v4918, 7
    %v4920 = vsub.s32 0, %v4919
    %v4921 = vrot.slane %v4791, %v4920
    %v4922 = vlaneseq
    %v4923 = vshrl.u32 %v4922, 7
    %v4924 = vsub.s32 1, %v4923
    %v4925 = vrot.slane %v4791, %v4924
    %v4926 = vlaneseq
    %v4927 = vshrl.u32 %v4926, 7
    %v4928 = vsub.s32 2, %v4927
    %v4929 = vrot.slane %v4791, %v4928
    %v4930 = vlaneseq
    %v4931 = vshrl.u32 %v4930, 7
    %v4932 = vsub.s32 3, %v4931
    %v4933 = vrot.slane %v4791, %v4932
    %v4938 = vadd.f32 %v4909, %v4921
    %v4939 = vadd.f32 %v4910, %v4925
    %v4940 = vadd.f32 %v4911, %v4929
    %v4941 = vadd.f32 %v4912, %v4933
    %v4942 = vadd.f32 %v4913, %v4921
    %v4943 = vadd.f32 %v4914, %v4925
    %v4944 = vadd.f32 %v4915, %v4929
    %v4945 = vadd.f32 %v4916, %v4933
    %s4946 = sld [smem:[#allocation6]]
    %vm4947 = vcmp.ge.f32.partialorder %v4938, 0.0
    %vm4948 = vcmp.ge.f32.partialorder %v4939, 0.0
    %vm4949 = vcmp.ge.f32.partialorder %v4940, 0.0
    %vm4950 = vcmp.ge.f32.partialorder %v4941, 0.0
    %vm4951 = vcmp.ge.f32.partialorder %v4942, 0.0
    %vm4952 = vcmp.ge.f32.partialorder %v4943, 0.0
    %vm4953 = vcmp.ge.f32.partialorder %v4944, 0.0
    %vm4954 = vcmp.ge.f32.partialorder %v4945, 0.0
    %v4955 = vstv %s4946
    %v4956 = vmul.f32 %v4955, %v4938
    %v4957 = vmul.f32 %v4955, %v4939
    %v4958 = vmul.f32 %v4955, %v4940
    %v4959 = vmul.f32 %v4955, %v4941
    %v4960 = vmul.f32 %v4955, %v4942
    %v4961 = vmul.f32 %v4955, %v4943
    %v4962 = vmul.f32 %v4955, %v4944
    %v4963 = vmul.f32 %v4955, %v4945
    %v4964 = vsel %vm4947, %v4938, %v4956
    %v4965 = vsel %vm4948, %v4939, %v4957
    %v4966 = vsel %vm4949, %v4940, %v4958
    %v4967 = vsel %vm4950, %v4941, %v4959
    %v4968 = vsel %vm4951, %v4942, %v4960
    %v4969 = vsel %vm4952, %v4943, %v4961
    %v4970 = vsel %vm4953, %v4944, %v4962
    %v4971 = vsel %vm4954, %v4945, %v4963
    %s4972 = scalar_lea.vmem [#allocation17], 1024
    %v4973 = vld [vmem:[%s4972] sm:$0xff]
    %v4974 = vld [vmem:[%s4972 + $0x8] sm:$0xff]
    %v4975 = vld [vmem:[%s4972 + $0x10] sm:$0xff]
    %v4976 = vld [vmem:[%s4972 + $0x18] sm:$0xff]
    %v4977 = vld [vmem:[%s4972 + $0x20] sm:$0xff]
    %v4978 = vld [vmem:[%s4972 + $0x28] sm:$0xff]
    %v4979 = vld [vmem:[%s4972 + $0x30] sm:$0xff]
    %v4980 = vld [vmem:[%s4972 + $0x38] sm:$0xff]
    %v4981 = vld [vmem:[%s4972 + $0x40] sm:$0xff]
    %v4982 = vld [vmem:[%s4972 + $0x48] sm:$0xff]
    %v4983 = vld [vmem:[%s4972 + $0x50] sm:$0xff]
    %v4984 = vld [vmem:[%s4972 + $0x58] sm:$0xff]
    %v4985 = vld [vmem:[%s4972 + $0x60] sm:$0xff]
    %v4986 = vld [vmem:[%s4972 + $0x68] sm:$0xff]
    %v4987 = vld [vmem:[%s4972 + $0x70] sm:$0xff]
    %v4988 = vld [vmem:[%s4972 + $0x78] sm:$0xff]
    %v4989 = vld [vmem:[%s4972 + $0x80] sm:$0xff]
    %v4990 = vld [vmem:[%s4972 + $0x88] sm:$0xff]
    %v4991 = vld [vmem:[%s4972 + $0x90] sm:$0xff]
    %v4992 = vld [vmem:[%s4972 + $0x98] sm:$0xff]
    %v4993 = vld [vmem:[%s4972 + $0xa0] sm:$0xff]
    %v4994 = vld [vmem:[%s4972 + $0xa8] sm:$0xff]
    %v4995 = vld [vmem:[%s4972 + $0xb0] sm:$0xff]
    %v4996 = vld [vmem:[%s4972 + $0xb8] sm:$0xff]
    %v4997 = vld [vmem:[%s4972 + $0xc0] sm:$0xff]
    %v4998 = vld [vmem:[%s4972 + $0xc8] sm:$0xff]
    %v4999 = vld [vmem:[%s4972 + $0xd0] sm:$0xff]
    %v5000 = vld [vmem:[%s4972 + $0xd8] sm:$0xff]
    %v5001 = vld [vmem:[%s4972 + $0xe0] sm:$0xff]
    %v5002 = vld [vmem:[%s4972 + $0xe8] sm:$0xff]
    %v5003 = vld [vmem:[%s4972 + $0xf0] sm:$0xff]
    %v5004 = vld [vmem:[%s4972 + $0xf8] sm:$0xff]
    %v5005 = vld [vmem:[%s4972 + $0x100] sm:$0xff]
    %v5006 = vld [vmem:[%s4972 + $0x108] sm:$0xff]
    %v5007 = vld [vmem:[%s4972 + $0x110] sm:$0xff]
    %v5008 = vld [vmem:[%s4972 + $0x118] sm:$0xff]
    %v5009 = vld [vmem:[%s4972 + $0x120] sm:$0xff]
    %v5010 = vld [vmem:[%s4972 + $0x128] sm:$0xff]
    %v5011 = vld [vmem:[%s4972 + $0x130] sm:$0xff]
    %v5012 = vld [vmem:[%s4972 + $0x138] sm:$0xff]
    %v5013 = vld [vmem:[%s4972 + $0x140] sm:$0xff]
    %v5014 = vld [vmem:[%s4972 + $0x148] sm:$0xff]
    %v5015 = vld [vmem:[%s4972 + $0x150] sm:$0xff]
    %v5016 = vld [vmem:[%s4972 + $0x158] sm:$0xff]
    %v5017 = vld [vmem:[%s4972 + $0x160] sm:$0xff]
    %v5018 = vld [vmem:[%s4972 + $0x168] sm:$0xff]
    %v5019 = vld [vmem:[%s4972 + $0x170] sm:$0xff]
    %v5020 = vld [vmem:[%s4972 + $0x178] sm:$0xff]
    %v5021 = vld [vmem:[%s4972 + $0x180] sm:$0xff]
    %v5022 = vld [vmem:[%s4972 + $0x188] sm:$0xff]
    %v5023 = vld [vmem:[%s4972 + $0x190] sm:$0xff]
    %v5024 = vld [vmem:[%s4972 + $0x198] sm:$0xff]
    %v5025 = vld [vmem:[%s4972 + $0x1a0] sm:$0xff]
    %v5026 = vld [vmem:[%s4972 + $0x1a8] sm:$0xff]
    %v5027 = vld [vmem:[%s4972 + $0x1b0] sm:$0xff]
    %v5028 = vld [vmem:[%s4972 + $0x1b8] sm:$0xff]
    %v5029 = vld [vmem:[%s4972 + $0x1c0] sm:$0xff]
    %v5030 = vld [vmem:[%s4972 + $0x1c8] sm:$0xff]
    %v5031 = vld [vmem:[%s4972 + $0x1d0] sm:$0xff]
    %v5032 = vld [vmem:[%s4972 + $0x1d8] sm:$0xff]
    %v5033 = vld [vmem:[%s4972 + $0x1e0] sm:$0xff]
    %v5034 = vld [vmem:[%s4972 + $0x1e8] sm:$0xff]
    %v5035 = vld [vmem:[%s4972 + $0x1f0] sm:$0xff]
    %v5036 = vld [vmem:[%s4972 + $0x1f8] sm:$0xff]
    %v5037 = vld [vmem:[%s4972 + $0x200] sm:$0xff]
    %v5038 = vld [vmem:[%s4972 + $0x208] sm:$0xff]
    %v5039 = vld [vmem:[%s4972 + $0x210] sm:$0xff]
    %v5040 = vld [vmem:[%s4972 + $0x218] sm:$0xff]
    %v5041 = vld [vmem:[%s4972 + $0x220] sm:$0xff]
    %v5042 = vld [vmem:[%s4972 + $0x228] sm:$0xff]
    %v5043 = vld [vmem:[%s4972 + $0x230] sm:$0xff]
    %v5044 = vld [vmem:[%s4972 + $0x238] sm:$0xff]
    %v5045 = vld [vmem:[%s4972 + $0x240] sm:$0xff]
    %v5046 = vld [vmem:[%s4972 + $0x248] sm:$0xff]
    %v5047 = vld [vmem:[%s4972 + $0x250] sm:$0xff]
    %v5048 = vld [vmem:[%s4972 + $0x258] sm:$0xff]
    %v5049 = vld [vmem:[%s4972 + $0x260] sm:$0xff]
    %v5050 = vld [vmem:[%s4972 + $0x268] sm:$0xff]
    %v5051 = vld [vmem:[%s4972 + $0x270] sm:$0xff]
    %v5052 = vld [vmem:[%s4972 + $0x278] sm:$0xff]
    %v5053 = vld [vmem:[%s4972 + $0x280] sm:$0xff]
    %v5054 = vld [vmem:[%s4972 + $0x288] sm:$0xff]
    %v5055 = vld [vmem:[%s4972 + $0x290] sm:$0xff]
    %v5056 = vld [vmem:[%s4972 + $0x298] sm:$0xff]
    %v5057 = vld [vmem:[%s4972 + $0x2a0] sm:$0xff]
    %v5058 = vld [vmem:[%s4972 + $0x2a8] sm:$0xff]
    %v5059 = vld [vmem:[%s4972 + $0x2b0] sm:$0xff]
    %v5060 = vld [vmem:[%s4972 + $0x2b8] sm:$0xff]
    %v5061 = vld [vmem:[%s4972 + $0x2c0] sm:$0xff]
    %v5062 = vld [vmem:[%s4972 + $0x2c8] sm:$0xff]
    %v5063 = vld [vmem:[%s4972 + $0x2d0] sm:$0xff]
    %v5064 = vld [vmem:[%s4972 + $0x2d8] sm:$0xff]
    %v5065 = vld [vmem:[%s4972 + $0x2e0] sm:$0xff]
    %v5066 = vld [vmem:[%s4972 + $0x2e8] sm:$0xff]
    %v5067 = vld [vmem:[%s4972 + $0x2f0] sm:$0xff]
    %v5068 = vld [vmem:[%s4972 + $0x2f8] sm:$0xff]
    %v5069 = vld [vmem:[%s4972 + $0x300] sm:$0xff]
    %v5070 = vld [vmem:[%s4972 + $0x308] sm:$0xff]
    %v5071 = vld [vmem:[%s4972 + $0x310] sm:$0xff]
    %v5072 = vld [vmem:[%s4972 + $0x318] sm:$0xff]
    %v5073 = vld [vmem:[%s4972 + $0x320] sm:$0xff]
    %v5074 = vld [vmem:[%s4972 + $0x328] sm:$0xff]
    %v5075 = vld [vmem:[%s4972 + $0x330] sm:$0xff]
    %v5076 = vld [vmem:[%s4972 + $0x338] sm:$0xff]
    %v5077 = vld [vmem:[%s4972 + $0x340] sm:$0xff]
    %v5078 = vld [vmem:[%s4972 + $0x348] sm:$0xff]
    %v5079 = vld [vmem:[%s4972 + $0x350] sm:$0xff]
    %v5080 = vld [vmem:[%s4972 + $0x358] sm:$0xff]
    %v5081 = vld [vmem:[%s4972 + $0x360] sm:$0xff]
    %v5082 = vld [vmem:[%s4972 + $0x368] sm:$0xff]
    %v5083 = vld [vmem:[%s4972 + $0x370] sm:$0xff]
    %v5084 = vld [vmem:[%s4972 + $0x378] sm:$0xff]
    %v5085 = vld [vmem:[%s4972 + $0x380] sm:$0xff]
    %v5086 = vld [vmem:[%s4972 + $0x388] sm:$0xff]
    %v5087 = vld [vmem:[%s4972 + $0x390] sm:$0xff]
    %v5088 = vld [vmem:[%s4972 + $0x398] sm:$0xff]
    %v5089 = vld [vmem:[%s4972 + $0x3a0] sm:$0xff]
    %v5090 = vld [vmem:[%s4972 + $0x3a8] sm:$0xff]
    %v5091 = vld [vmem:[%s4972 + $0x3b0] sm:$0xff]
    %v5092 = vld [vmem:[%s4972 + $0x3b8] sm:$0xff]
    %v5093 = vld [vmem:[%s4972 + $0x3c0] sm:$0xff]
    %v5094 = vld [vmem:[%s4972 + $0x3c8] sm:$0xff]
    %v5095 = vld [vmem:[%s4972 + $0x3d0] sm:$0xff]
    %v5096 = vld [vmem:[%s4972 + $0x3d8] sm:$0xff]
    %v5097 = vld [vmem:[%s4972 + $0x3e0] sm:$0xff]
    %v5098 = vld [vmem:[%s4972 + $0x3e8] sm:$0xff]
    %v5099 = vld [vmem:[%s4972 + $0x3f0] sm:$0xff]
    %v5100 = vld [vmem:[%s4972 + $0x3f8] sm:$0xff]
    %v5101 = vpack.c.bf16 %v4968, %v4964
    %v5102 = vpack.c.bf16 %v4969, %v4965
    %v5103 = vpack.c.bf16 %v4970, %v4966
    %v5104 = vpack.c.bf16 %v4971, %v4967
    %v5233 = vunpack.c.l.b16 %v4973
    %v5234 = vunpack.c.h.b16 %v4973
    %v5235 = vunpack.c.l.b16 %v4974
    %v5236 = vunpack.c.h.b16 %v4974
    %v5237 = vunpack.c.l.b16 %v4975
    %v5238 = vunpack.c.h.b16 %v4975
    %v5239 = vunpack.c.l.b16 %v4976
    %v5240 = vunpack.c.h.b16 %v4976
    %v5241 = vunpack.c.l.b16 %v4977
    %v5242 = vunpack.c.h.b16 %v4977
    %v5243 = vunpack.c.l.b16 %v4978
    %v5244 = vunpack.c.h.b16 %v4978
    %v5245 = vunpack.c.l.b16 %v4979
    %v5246 = vunpack.c.h.b16 %v4979
    %v5247 = vunpack.c.l.b16 %v4980
    %v5248 = vunpack.c.h.b16 %v4980
    %v5249 = vunpack.c.l.b16 %v4981
    %v5250 = vunpack.c.h.b16 %v4981
    %v5251 = vunpack.c.l.b16 %v4982
    %v5252 = vunpack.c.h.b16 %v4982
    %v5253 = vunpack.c.l.b16 %v4983
    %v5254 = vunpack.c.h.b16 %v4983
    %v5255 = vunpack.c.l.b16 %v4984
    %v5256 = vunpack.c.h.b16 %v4984
    %v5257 = vunpack.c.l.b16 %v4985
    %v5258 = vunpack.c.h.b16 %v4985
    %v5259 = vunpack.c.l.b16 %v4986
    %v5260 = vunpack.c.h.b16 %v4986
    %v5261 = vunpack.c.l.b16 %v4987
    %v5262 = vunpack.c.h.b16 %v4987
    %v5263 = vunpack.c.l.b16 %v4988
    %v5264 = vunpack.c.h.b16 %v4988
    %v5265 = vunpack.c.l.b16 %v4989
    %v5266 = vunpack.c.h.b16 %v4989
    %v5267 = vunpack.c.l.b16 %v4990
    %v5268 = vunpack.c.h.b16 %v4990
    %v5269 = vunpack.c.l.b16 %v4991
    %v5270 = vunpack.c.h.b16 %v4991
    %v5271 = vunpack.c.l.b16 %v4992
    %v5272 = vunpack.c.h.b16 %v4992
    %v5273 = vunpack.c.l.b16 %v4993
    %v5274 = vunpack.c.h.b16 %v4993
    %v5275 = vunpack.c.l.b16 %v4994
    %v5276 = vunpack.c.h.b16 %v4994
    %v5277 = vunpack.c.l.b16 %v4995
    %v5278 = vunpack.c.h.b16 %v4995
    %v5279 = vunpack.c.l.b16 %v4996
    %v5280 = vunpack.c.h.b16 %v4996
    %v5281 = vunpack.c.l.b16 %v4997
    %v5282 = vunpack.c.h.b16 %v4997
    %v5283 = vunpack.c.l.b16 %v4998
    %v5284 = vunpack.c.h.b16 %v4998
    %v5285 = vunpack.c.l.b16 %v4999
    %v5286 = vunpack.c.h.b16 %v4999
    %v5287 = vunpack.c.l.b16 %v5000
    %v5288 = vunpack.c.h.b16 %v5000
    %v5289 = vunpack.c.l.b16 %v5001
    %v5290 = vunpack.c.h.b16 %v5001
    %v5291 = vunpack.c.l.b16 %v5002
    %v5292 = vunpack.c.h.b16 %v5002
    %v5293 = vunpack.c.l.b16 %v5003
    %v5294 = vunpack.c.h.b16 %v5003
    %v5295 = vunpack.c.l.b16 %v5004
    %v5296 = vunpack.c.h.b16 %v5004
    %v5297 = vunpack.c.l.b16 %v5005
    %v5298 = vunpack.c.h.b16 %v5005
    %v5299 = vunpack.c.l.b16 %v5006
    %v5300 = vunpack.c.h.b16 %v5006
    %v5301 = vunpack.c.l.b16 %v5007
    %v5302 = vunpack.c.h.b16 %v5007
    %v5303 = vunpack.c.l.b16 %v5008
    %v5304 = vunpack.c.h.b16 %v5008
    %v5305 = vunpack.c.l.b16 %v5009
    %v5306 = vunpack.c.h.b16 %v5009
    %v5307 = vunpack.c.l.b16 %v5010
    %v5308 = vunpack.c.h.b16 %v5010
    %v5309 = vunpack.c.l.b16 %v5011
    %v5310 = vunpack.c.h.b16 %v5011
    %v5311 = vunpack.c.l.b16 %v5012
    %v5312 = vunpack.c.h.b16 %v5012
    %v5313 = vunpack.c.l.b16 %v5013
    %v5314 = vunpack.c.h.b16 %v5013
    %v5315 = vunpack.c.l.b16 %v5014
    %v5316 = vunpack.c.h.b16 %v5014
    %v5317 = vunpack.c.l.b16 %v5015
    %v5318 = vunpack.c.h.b16 %v5015
    %v5319 = vunpack.c.l.b16 %v5016
    %v5320 = vunpack.c.h.b16 %v5016
    %v5321 = vunpack.c.l.b16 %v5017
    %v5322 = vunpack.c.h.b16 %v5017
    %v5323 = vunpack.c.l.b16 %v5018
    %v5324 = vunpack.c.h.b16 %v5018
    %v5325 = vunpack.c.l.b16 %v5019
    %v5326 = vunpack.c.h.b16 %v5019
    %v5327 = vunpack.c.l.b16 %v5020
    %v5328 = vunpack.c.h.b16 %v5020
    %v5329 = vunpack.c.l.b16 %v5021
    %v5330 = vunpack.c.h.b16 %v5021
    %v5331 = vunpack.c.l.b16 %v5022
    %v5332 = vunpack.c.h.b16 %v5022
    %v5333 = vunpack.c.l.b16 %v5023
    %v5334 = vunpack.c.h.b16 %v5023
    %v5335 = vunpack.c.l.b16 %v5024
    %v5336 = vunpack.c.h.b16 %v5024
    %v5337 = vunpack.c.l.b16 %v5025
    %v5338 = vunpack.c.h.b16 %v5025
    %v5339 = vunpack.c.l.b16 %v5026
    %v5340 = vunpack.c.h.b16 %v5026
    %v5341 = vunpack.c.l.b16 %v5027
    %v5342 = vunpack.c.h.b16 %v5027
    %v5343 = vunpack.c.l.b16 %v5028
    %v5344 = vunpack.c.h.b16 %v5028
    %v5345 = vunpack.c.l.b16 %v5029
    %v5346 = vunpack.c.h.b16 %v5029
    %v5347 = vunpack.c.l.b16 %v5030
    %v5348 = vunpack.c.h.b16 %v5030
    %v5349 = vunpack.c.l.b16 %v5031
    %v5350 = vunpack.c.h.b16 %v5031
    %v5351 = vunpack.c.l.b16 %v5032
    %v5352 = vunpack.c.h.b16 %v5032
    %v5353 = vunpack.c.l.b16 %v5033
    %v5354 = vunpack.c.h.b16 %v5033
    %v5355 = vunpack.c.l.b16 %v5034
    %v5356 = vunpack.c.h.b16 %v5034
    %v5357 = vunpack.c.l.b16 %v5035
    %v5358 = vunpack.c.h.b16 %v5035
    %v5359 = vunpack.c.l.b16 %v5036
    %v5360 = vunpack.c.h.b16 %v5036
    %v5361 = vunpack.c.l.b16 %v5037
    %v5362 = vunpack.c.h.b16 %v5037
    %v5363 = vunpack.c.l.b16 %v5038
    %v5364 = vunpack.c.h.b16 %v5038
    %v5365 = vunpack.c.l.b16 %v5039
    %v5366 = vunpack.c.h.b16 %v5039
    %v5367 = vunpack.c.l.b16 %v5040
    %v5368 = vunpack.c.h.b16 %v5040
    %v5369 = vunpack.c.l.b16 %v5041
    %v5370 = vunpack.c.h.b16 %v5041
    %v5371 = vunpack.c.l.b16 %v5042
    %v5372 = vunpack.c.h.b16 %v5042
    %v5373 = vunpack.c.l.b16 %v5043
    %v5374 = vunpack.c.h.b16 %v5043
    %v5375 = vunpack.c.l.b16 %v5044
    %v5376 = vunpack.c.h.b16 %v5044
    %v5377 = vunpack.c.l.b16 %v5045
    %v5378 = vunpack.c.h.b16 %v5045
    %v5379 = vunpack.c.l.b16 %v5046
    %v5380 = vunpack.c.h.b16 %v5046
    %v5381 = vunpack.c.l.b16 %v5047
    %v5382 = vunpack.c.h.b16 %v5047
    %v5383 = vunpack.c.l.b16 %v5048
    %v5384 = vunpack.c.h.b16 %v5048
    %v5385 = vunpack.c.l.b16 %v5049
    %v5386 = vunpack.c.h.b16 %v5049
    %v5387 = vunpack.c.l.b16 %v5050
    %v5388 = vunpack.c.h.b16 %v5050
    %v5389 = vunpack.c.l.b16 %v5051
    %v5390 = vunpack.c.h.b16 %v5051
    %v5391 = vunpack.c.l.b16 %v5052
    %v5392 = vunpack.c.h.b16 %v5052
    %v5393 = vunpack.c.l.b16 %v5053
    %v5394 = vunpack.c.h.b16 %v5053
    %v5395 = vunpack.c.l.b16 %v5054
    %v5396 = vunpack.c.h.b16 %v5054
    %v5397 = vunpack.c.l.b16 %v5055
    %v5398 = vunpack.c.h.b16 %v5055
    %v5399 = vunpack.c.l.b16 %v5056
    %v5400 = vunpack.c.h.b16 %v5056
    %v5401 = vunpack.c.l.b16 %v5057
    %v5402 = vunpack.c.h.b16 %v5057
    %v5403 = vunpack.c.l.b16 %v5058
    %v5404 = vunpack.c.h.b16 %v5058
    %v5405 = vunpack.c.l.b16 %v5059
    %v5406 = vunpack.c.h.b16 %v5059
    %v5407 = vunpack.c.l.b16 %v5060
    %v5408 = vunpack.c.h.b16 %v5060
    %v5409 = vunpack.c.l.b16 %v5061
    %v5410 = vunpack.c.h.b16 %v5061
    %v5411 = vunpack.c.l.b16 %v5062
    %v5412 = vunpack.c.h.b16 %v5062
    %v5413 = vunpack.c.l.b16 %v5063
    %v5414 = vunpack.c.h.b16 %v5063
    %v5415 = vunpack.c.l.b16 %v5064
    %v5416 = vunpack.c.h.b16 %v5064
    %v5417 = vunpack.c.l.b16 %v5065
    %v5418 = vunpack.c.h.b16 %v5065
    %v5419 = vunpack.c.l.b16 %v5066
    %v5420 = vunpack.c.h.b16 %v5066
    %v5421 = vunpack.c.l.b16 %v5067
    %v5422 = vunpack.c.h.b16 %v5067
    %v5423 = vunpack.c.l.b16 %v5068
    %v5424 = vunpack.c.h.b16 %v5068
    %v5425 = vunpack.c.l.b16 %v5069
    %v5426 = vunpack.c.h.b16 %v5069
    %v5427 = vunpack.c.l.b16 %v5070
    %v5428 = vunpack.c.h.b16 %v5070
    %v5429 = vunpack.c.l.b16 %v5071
    %v5430 = vunpack.c.h.b16 %v5071
    %v5431 = vunpack.c.l.b16 %v5072
    %v5432 = vunpack.c.h.b16 %v5072
    %v5433 = vunpack.c.l.b16 %v5073
    %v5434 = vunpack.c.h.b16 %v5073
    %v5435 = vunpack.c.l.b16 %v5074
    %v5436 = vunpack.c.h.b16 %v5074
    %v5437 = vunpack.c.l.b16 %v5075
    %v5438 = vunpack.c.h.b16 %v5075
    %v5439 = vunpack.c.l.b16 %v5076
    %v5440 = vunpack.c.h.b16 %v5076
    %v5441 = vunpack.c.l.b16 %v5077
    %v5442 = vunpack.c.h.b16 %v5077
    %v5443 = vunpack.c.l.b16 %v5078
    %v5444 = vunpack.c.h.b16 %v5078
    %v5445 = vunpack.c.l.b16 %v5079
    %v5446 = vunpack.c.h.b16 %v5079
    %v5447 = vunpack.c.l.b16 %v5080
    %v5448 = vunpack.c.h.b16 %v5080
    %v5449 = vunpack.c.l.b16 %v5081
    %v5450 = vunpack.c.h.b16 %v5081
    %v5451 = vunpack.c.l.b16 %v5082
    %v5452 = vunpack.c.h.b16 %v5082
    %v5453 = vunpack.c.l.b16 %v5083
    %v5454 = vunpack.c.h.b16 %v5083
    %v5455 = vunpack.c.l.b16 %v5084
    %v5456 = vunpack.c.h.b16 %v5084
    %v5457 = vunpack.c.l.b16 %v5085
    %v5458 = vunpack.c.h.b16 %v5085
    %v5459 = vunpack.c.l.b16 %v5086
    %v5460 = vunpack.c.h.b16 %v5086
    %v5461 = vunpack.c.l.b16 %v5087
    %v5462 = vunpack.c.h.b16 %v5087
    %v5463 = vunpack.c.l.b16 %v5088
    %v5464 = vunpack.c.h.b16 %v5088
    %v5465 = vunpack.c.l.b16 %v5089
    %v5466 = vunpack.c.h.b16 %v5089
    %v5467 = vunpack.c.l.b16 %v5090
    %v5468 = vunpack.c.h.b16 %v5090
    %v5469 = vunpack.c.l.b16 %v5091
    %v5470 = vunpack.c.h.b16 %v5091
    %v5471 = vunpack.c.l.b16 %v5092
    %v5472 = vunpack.c.h.b16 %v5092
    %v5473 = vunpack.c.l.b16 %v5093
    %v5474 = vunpack.c.h.b16 %v5093
    %v5475 = vunpack.c.l.b16 %v5094
    %v5476 = vunpack.c.h.b16 %v5094
    %v5477 = vunpack.c.l.b16 %v5095
    %v5478 = vunpack.c.h.b16 %v5095
    %v5479 = vunpack.c.l.b16 %v5096
    %v5480 = vunpack.c.h.b16 %v5096
    %v5481 = vunpack.c.l.b16 %v5097
    %v5482 = vunpack.c.h.b16 %v5097
    %v5483 = vunpack.c.l.b16 %v5098
    %v5484 = vunpack.c.h.b16 %v5098
    %v5485 = vunpack.c.l.b16 %v5099
    %v5486 = vunpack.c.h.b16 %v5099
    %v5487 = vunpack.c.l.b16 %v5100
    %v5488 = vunpack.c.h.b16 %v5100
    %v5489 = vpack.c.b16 %v5237, %v5233
    %v5490 = vpack.c.b16 %v5238, %v5234
    %v5491 = vpack.c.b16 %v5239, %v5235
    %v5492 = vpack.c.b16 %v5240, %v5236
    %v5493 = vpack.c.b16 %v5245, %v5241
    %v5494 = vpack.c.b16 %v5246, %v5242
    %v5495 = vpack.c.b16 %v5247, %v5243
    %v5496 = vpack.c.b16 %v5248, %v5244
    %v5497 = vpack.c.b16 %v5253, %v5249
    %v5498 = vpack.c.b16 %v5254, %v5250
    %v5499 = vpack.c.b16 %v5255, %v5251
    %v5500 = vpack.c.b16 %v5256, %v5252
    %v5501 = vpack.c.b16 %v5261, %v5257
    %v5502 = vpack.c.b16 %v5262, %v5258
    %v5503 = vpack.c.b16 %v5263, %v5259
    %v5504 = vpack.c.b16 %v5264, %v5260
    %v5505 = vpack.c.b16 %v5269, %v5265
    %v5506 = vpack.c.b16 %v5270, %v5266
    %v5507 = vpack.c.b16 %v5271, %v5267
    %v5508 = vpack.c.b16 %v5272, %v5268
    %v5509 = vpack.c.b16 %v5277, %v5273
    %v5510 = vpack.c.b16 %v5278, %v5274
    %v5511 = vpack.c.b16 %v5279, %v5275
    %v5512 = vpack.c.b16 %v5280, %v5276
    %v5513 = vpack.c.b16 %v5285, %v5281
    %v5514 = vpack.c.b16 %v5286, %v5282
    %v5515 = vpack.c.b16 %v5287, %v5283
    %v5516 = vpack.c.b16 %v5288, %v5284
    %v5517 = vpack.c.b16 %v5293, %v5289
    %v5518 = vpack.c.b16 %v5294, %v5290
    %v5519 = vpack.c.b16 %v5295, %v5291
    %v5520 = vpack.c.b16 %v5296, %v5292
    %v5521 = vpack.c.b16 %v5301, %v5297
    %v5522 = vpack.c.b16 %v5302, %v5298
    %v5523 = vpack.c.b16 %v5303, %v5299
    %v5524 = vpack.c.b16 %v5304, %v5300
    %v5525 = vpack.c.b16 %v5309, %v5305
    %v5526 = vpack.c.b16 %v5310, %v5306
    %v5527 = vpack.c.b16 %v5311, %v5307
    %v5528 = vpack.c.b16 %v5312, %v5308
    %v5529 = vpack.c.b16 %v5317, %v5313
    %v5530 = vpack.c.b16 %v5318, %v5314
    %v5531 = vpack.c.b16 %v5319, %v5315
    %v5532 = vpack.c.b16 %v5320, %v5316
    %v5533 = vpack.c.b16 %v5325, %v5321
    %v5534 = vpack.c.b16 %v5326, %v5322
    %v5535 = vpack.c.b16 %v5327, %v5323
    %v5536 = vpack.c.b16 %v5328, %v5324
    %v5537 = vpack.c.b16 %v5333, %v5329
    %v5538 = vpack.c.b16 %v5334, %v5330
    %v5539 = vpack.c.b16 %v5335, %v5331
    %v5540 = vpack.c.b16 %v5336, %v5332
    %v5541 = vpack.c.b16 %v5341, %v5337
    %v5542 = vpack.c.b16 %v5342, %v5338
    %v5543 = vpack.c.b16 %v5343, %v5339
    %v5544 = vpack.c.b16 %v5344, %v5340
    %v5545 = vpack.c.b16 %v5349, %v5345
    %v5546 = vpack.c.b16 %v5350, %v5346
    %v5547 = vpack.c.b16 %v5351, %v5347
    %v5548 = vpack.c.b16 %v5352, %v5348
    %v5549 = vpack.c.b16 %v5357, %v5353
    %v5550 = vpack.c.b16 %v5358, %v5354
    %v5551 = vpack.c.b16 %v5359, %v5355
    %v5552 = vpack.c.b16 %v5360, %v5356
    %v5553 = vpack.c.b16 %v5365, %v5361
    %v5554 = vpack.c.b16 %v5366, %v5362
    %v5555 = vpack.c.b16 %v5367, %v5363
    %v5556 = vpack.c.b16 %v5368, %v5364
    %v5557 = vpack.c.b16 %v5373, %v5369
    %v5558 = vpack.c.b16 %v5374, %v5370
    %v5559 = vpack.c.b16 %v5375, %v5371
    %v5560 = vpack.c.b16 %v5376, %v5372
    %v5561 = vpack.c.b16 %v5381, %v5377
    %v5562 = vpack.c.b16 %v5382, %v5378
    %v5563 = vpack.c.b16 %v5383, %v5379
    %v5564 = vpack.c.b16 %v5384, %v5380
    %v5565 = vpack.c.b16 %v5389, %v5385
    %v5566 = vpack.c.b16 %v5390, %v5386
    %v5567 = vpack.c.b16 %v5391, %v5387
    %v5568 = vpack.c.b16 %v5392, %v5388
    %v5569 = vpack.c.b16 %v5397, %v5393
    %v5570 = vpack.c.b16 %v5398, %v5394
    %v5571 = vpack.c.b16 %v5399, %v5395
    %v5572 = vpack.c.b16 %v5400, %v5396
    %v5573 = vpack.c.b16 %v5405, %v5401
    %v5574 = vpack.c.b16 %v5406, %v5402
    %v5575 = vpack.c.b16 %v5407, %v5403
    %v5576 = vpack.c.b16 %v5408, %v5404
    %v5577 = vpack.c.b16 %v5413, %v5409
    %v5578 = vpack.c.b16 %v5414, %v5410
    %v5579 = vpack.c.b16 %v5415, %v5411
    %v5580 = vpack.c.b16 %v5416, %v5412
    %v5581 = vpack.c.b16 %v5421, %v5417
    %v5582 = vpack.c.b16 %v5422, %v5418
    %v5583 = vpack.c.b16 %v5423, %v5419
    %v5584 = vpack.c.b16 %v5424, %v5420
    %v5585 = vpack.c.b16 %v5429, %v5425
    %v5586 = vpack.c.b16 %v5430, %v5426
    %v5587 = vpack.c.b16 %v5431, %v5427
    %v5588 = vpack.c.b16 %v5432, %v5428
    %v5589 = vpack.c.b16 %v5437, %v5433
    %v5590 = vpack.c.b16 %v5438, %v5434
    %v5591 = vpack.c.b16 %v5439, %v5435
    %v5592 = vpack.c.b16 %v5440, %v5436
    %v5593 = vpack.c.b16 %v5445, %v5441
    %v5594 = vpack.c.b16 %v5446, %v5442
    %v5595 = vpack.c.b16 %v5447, %v5443
    %v5596 = vpack.c.b16 %v5448, %v5444
    %v5597 = vpack.c.b16 %v5453, %v5449
    %v5598 = vpack.c.b16 %v5454, %v5450
    %v5599 = vpack.c.b16 %v5455, %v5451
    %v5600 = vpack.c.b16 %v5456, %v5452
    %v5601 = vpack.c.b16 %v5461, %v5457
    %v5602 = vpack.c.b16 %v5462, %v5458
    %v5603 = vpack.c.b16 %v5463, %v5459
    %v5604 = vpack.c.b16 %v5464, %v5460
    %v5605 = vpack.c.b16 %v5469, %v5465
    %v5606 = vpack.c.b16 %v5470, %v5466
    %v5607 = vpack.c.b16 %v5471, %v5467
    %v5608 = vpack.c.b16 %v5472, %v5468
    %v5609 = vpack.c.b16 %v5477, %v5473
    %v5610 = vpack.c.b16 %v5478, %v5474
    %v5611 = vpack.c.b16 %v5479, %v5475
    %v5612 = vpack.c.b16 %v5480, %v5476
    %v5613 = vpack.c.b16 %v5485, %v5481
    %v5614 = vpack.c.b16 %v5486, %v5482
    %v5615 = vpack.c.b16 %v5487, %v5483
    %v5616 = vpack.c.b16 %v5488, %v5484
    %5745 = vmatprep.subr.bf16.mxu0 %v5518
    %5746 = vmatpush1.bf16.msra.mxu0 %v5517
    %5747 = vmatprep.subr.bf16.mxu0 %v5514
    %5748 = vmatpush1.bf16.msra.mxu0 %v5513
    %5749 = vmatprep.subr.bf16.mxu0 %v5510
    %5750 = vmatpush1.bf16.msra.mxu0 %v5509
    %5751 = vmatprep.subr.bf16.mxu0 %v5506
    %5752 = vmatpush1.bf16.msra.mxu0 %v5505
    %5753 = vmatprep.subr.bf16.mxu0 %v5502
    %5754 = vmatpush1.bf16.msra.mxu0 %v5501
    %5755 = vmatprep.subr.bf16.mxu0 %v5498
    %5756 = vmatpush1.bf16.msra.mxu0 %v5497
    %5757 = vmatprep.subr.bf16.mxu0 %v5494
    %5758 = vmatpush1.bf16.msra.mxu0 %v5493
    %5759 = vmatprep.subr.bf16.mxu0 %v5490
    %5760 = vmatpush1.bf16.msra.mxu0 %v5489
    %5761 = vmatprep.subr.bf16.mxu0 %v5550
    %5762 = vmatpush2.bf16.msra.mxu0 %v5549
    %5763 = vmatprep.subr.bf16.mxu0 %v5546
    %5764 = vmatpush2.bf16.msra.mxu0 %v5545
    %5765 = vmatprep.subr.bf16.mxu0 %v5542
    %5766 = vmatpush2.bf16.msra.mxu0 %v5541
    %5767 = vmatprep.subr.bf16.mxu0 %v5538
    %5768 = vmatpush2.bf16.msra.mxu0 %v5537
    %5769 = vmatprep.subr.bf16.mxu0 %v5534
    %5770 = vmatpush2.bf16.msra.mxu0 %v5533
    %5771 = vmatprep.subr.bf16.mxu0 %v5530
    %5772 = vmatpush2.bf16.msra.mxu0 %v5529
    %5773 = vmatprep.subr.bf16.mxu0 %v5526
    %5774 = vmatpush2.bf16.msra.mxu0 %v5525
    %5775 = vmatprep.subr.bf16.mxu0 %v5522
    %5776 = vmatpush2.bf16.msra.mxu0 %v5521
    %5777 = vmatprep.mubr.bf16.mxu0 %v5102
    %5778 = vmatmul.mubr.bf16.gmra.mxu0 %v5101
    %v5779 = vpop.f32.mrf.mxu0
    %v5780 = vadd.f32 0.0, %v5779
    %v5781 = vpop.f32.mrf.mxu0
    %v5782 = vadd.f32 0.0, %v5781
    %v5783 = vpop.f32.mrf.mxu0
    %v5784 = vadd.f32 0.0, %v5783
    %v5785 = vpop.f32.mrf.mxu0
    %v5786 = vadd.f32 0.0, %v5785
    %5787 = vdwg.mxu0
    %5788 = vmatprep.subr.bf16.mxu0 %v5582
    %5789 = vmatpush1.bf16.msra.mxu0 %v5581
    %5790 = vmatprep.subr.bf16.mxu0 %v5578
    %5791 = vmatpush1.bf16.msra.mxu0 %v5577
    %5792 = vmatprep.subr.bf16.mxu0 %v5574
    %5793 = vmatpush1.bf16.msra.mxu0 %v5573
    %5794 = vmatprep.subr.bf16.mxu0 %v5570
    %5795 = vmatpush1.bf16.msra.mxu0 %v5569
    %5796 = vmatprep.subr.bf16.mxu0 %v5566
    %5797 = vmatpush1.bf16.msra.mxu0 %v5565
    %5798 = vmatprep.subr.bf16.mxu0 %v5562
    %5799 = vmatpush1.bf16.msra.mxu0 %v5561
    %5800 = vmatprep.subr.bf16.mxu0 %v5558
    %5801 = vmatpush1.bf16.msra.mxu0 %v5557
    %5802 = vmatprep.subr.bf16.mxu0 %v5554
    %5803 = vmatpush1.bf16.msra.mxu0 %v5553
    %5804 = vmatprep.subr.bf16.mxu0 %v5614
    %5805 = vmatpush2.bf16.msra.mxu0 %v5613
    %5806 = vmatprep.subr.bf16.mxu0 %v5610
    %5807 = vmatpush2.bf16.msra.mxu0 %v5609
    %5808 = vmatprep.subr.bf16.mxu0 %v5606
    %5809 = vmatpush2.bf16.msra.mxu0 %v5605
    %5810 = vmatprep.subr.bf16.mxu0 %v5602
    %5811 = vmatpush2.bf16.msra.mxu0 %v5601
    %5812 = vmatprep.subr.bf16.mxu0 %v5598
    %5813 = vmatpush2.bf16.msra.mxu0 %v5597
    %5814 = vmatprep.subr.bf16.mxu0 %v5594
    %5815 = vmatpush2.bf16.msra.mxu0 %v5593
    %5816 = vmatprep.subr.bf16.mxu0 %v5590
    %5817 = vmatpush2.bf16.msra.mxu0 %v5589
    %5818 = vmatprep.subr.bf16.mxu0 %v5586
    %5819 = vmatpush2.bf16.msra.mxu0 %v5585
    %5820 = vmatprep.mubr.bf16.mxu0 %v5104
    %5821 = vmatmul.mubr.bf16.gmra.mxu0 %v5103
    %v5822 = vpop.f32.mrf.mxu0
    %v5823 = vadd.f32 %v5780, %v5822
    %v5824 = vpop.f32.mrf.mxu0
    %v5825 = vadd.f32 %v5782, %v5824
    %v5826 = vpop.f32.mrf.mxu0
    %v5827 = vadd.f32 %v5784, %v5826
    %v5828 = vpop.f32.mrf.mxu0
    %v5829 = vadd.f32 %v5786, %v5828
    %5830 = vdwg.mxu0
    %5831 = vmatprep.subr.bf16.mxu0 %v5520
    %5832 = vmatpush1.bf16.msra.mxu0 %v5519
    %5833 = vmatprep.subr.bf16.mxu0 %v5516
    %5834 = vmatpush1.bf16.msra.mxu0 %v5515
    %5835 = vmatprep.subr.bf16.mxu0 %v5512
    %5836 = vmatpush1.bf16.msra.mxu0 %v5511
    %5837 = vmatprep.subr.bf16.mxu0 %v5508
    %5838 = vmatpush1.bf16.msra.mxu0 %v5507
    %5839 = vmatprep.subr.bf16.mxu0 %v5504
    %5840 = vmatpush1.bf16.msra.mxu0 %v5503
    %5841 = vmatprep.subr.bf16.mxu0 %v5500
    %5842 = vmatpush1.bf16.msra.mxu0 %v5499
    %5843 = vmatprep.subr.bf16.mxu0 %v5496
    %5844 = vmatpush1.bf16.msra.mxu0 %v5495
    %5845 = vmatprep.subr.bf16.mxu0 %v5492
    %5846 = vmatpush1.bf16.msra.mxu0 %v5491
    %5847 = vmatprep.subr.bf16.mxu0 %v5552
    %5848 = vmatpush2.bf16.msra.mxu0 %v5551
    %5849 = vmatprep.subr.bf16.mxu0 %v5548
    %5850 = vmatpush2.bf16.msra.mxu0 %v5547
    %5851 = vmatprep.subr.bf16.mxu0 %v5544
    %5852 = vmatpush2.bf16.msra.mxu0 %v5543
    %5853 = vmatprep.subr.bf16.mxu0 %v5540
    %5854 = vmatpush2.bf16.msra.mxu0 %v5539
    %5855 = vmatprep.subr.bf16.mxu0 %v5536
    %5856 = vmatpush2.bf16.msra.mxu0 %v5535
    %5857 = vmatprep.subr.bf16.mxu0 %v5532
    %5858 = vmatpush2.bf16.msra.mxu0 %v5531
    %5859 = vmatprep.subr.bf16.mxu0 %v5528
    %5860 = vmatpush2.bf16.msra.mxu0 %v5527
    %5861 = vmatprep.subr.bf16.mxu0 %v5524
    %5862 = vmatpush2.bf16.msra.mxu0 %v5523
    %5863 = vmatprep.mubr.bf16.mxu0 %v5102
    %5864 = vmatmul.mubr.bf16.gmra.mxu0 %v5101
    %v5865 = vpop.f32.mrf.mxu0
    %v5866 = vadd.f32 0.0, %v5865
    %v5867 = vpop.f32.mrf.mxu0
    %v5868 = vadd.f32 0.0, %v5867
    %v5869 = vpop.f32.mrf.mxu0
    %v5870 = vadd.f32 0.0, %v5869
    %v5871 = vpop.f32.mrf.mxu0
    %v5872 = vadd.f32 0.0, %v5871
    %5873 = vdwg.mxu0
    %5874 = vmatprep.subr.bf16.mxu0 %v5584
    %5875 = vmatpush1.bf16.msra.mxu0 %v5583
    %5876 = vmatprep.subr.bf16.mxu0 %v5580
    %5877 = vmatpush1.bf16.msra.mxu0 %v5579
    %5878 = vmatprep.subr.bf16.mxu0 %v5576
    %5879 = vmatpush1.bf16.msra.mxu0 %v5575
    %5880 = vmatprep.subr.bf16.mxu0 %v5572
    %5881 = vmatpush1.bf16.msra.mxu0 %v5571
    %5882 = vmatprep.subr.bf16.mxu0 %v5568
    %5883 = vmatpush1.bf16.msra.mxu0 %v5567
    %5884 = vmatprep.subr.bf16.mxu0 %v5564
    %5885 = vmatpush1.bf16.msra.mxu0 %v5563
    %5886 = vmatprep.subr.bf16.mxu0 %v5560
    %5887 = vmatpush1.bf16.msra.mxu0 %v5559
    %5888 = vmatprep.subr.bf16.mxu0 %v5556
    %5889 = vmatpush1.bf16.msra.mxu0 %v5555
    %5890 = vmatprep.subr.bf16.mxu0 %v5616
    %5891 = vmatpush2.bf16.msra.mxu0 %v5615
    %5892 = vmatprep.subr.bf16.mxu0 %v5612
    %5893 = vmatpush2.bf16.msra.mxu0 %v5611
    %5894 = vmatprep.subr.bf16.mxu0 %v5608
    %5895 = vmatpush2.bf16.msra.mxu0 %v5607
    %5896 = vmatprep.subr.bf16.mxu0 %v5604
    %5897 = vmatpush2.bf16.msra.mxu0 %v5603
    %5898 = vmatprep.subr.bf16.mxu0 %v5600
    %5899 = vmatpush2.bf16.msra.mxu0 %v5599
    %5900 = vmatprep.subr.bf16.mxu0 %v5596
    %5901 = vmatpush2.bf16.msra.mxu0 %v5595
    %5902 = vmatprep.subr.bf16.mxu0 %v5592
    %5903 = vmatpush2.bf16.msra.mxu0 %v5591
    %5904 = vmatprep.subr.bf16.mxu0 %v5588
    %5905 = vmatpush2.bf16.msra.mxu0 %v5587
    %5906 = vmatprep.mubr.bf16.mxu0 %v5104
    %5907 = vmatmul.mubr.bf16.gmra.mxu0 %v5103
    %v5908 = vpop.f32.mrf.mxu0
    %v5909 = vadd.f32 %v5866, %v5908
    %v5910 = vpop.f32.mrf.mxu0
    %v5911 = vadd.f32 %v5868, %v5910
    %v5912 = vpop.f32.mrf.mxu0
    %v5913 = vadd.f32 %v5870, %v5912
    %v5914 = vpop.f32.mrf.mxu0
    %v5915 = vadd.f32 %v5872, %v5914
    %5916 = vdwg.mxu0
    %s5917 = scalar_lea.vmem [#allocation20], 4
    %v5918 = vld [vmem:[%s5917] sm:$0xf]
    %s5919 = scalar_lea.vmem [#allocation21], 4
    %v5920 = vld [vmem:[%s5919] sm:$0xf]
    %v5921 = vadd.f32 %v5823, %v5827
    %v5922 = vrot.slane %v5921, 4
    %v5923 = vadd.f32 %v5921, %v5922
    %v5924 = vrot.slane %v5923, 2
    %v5925 = vadd.f32 %v5923, %v5924
    %v5926 = vrot.slane %v5925, 1
    %v5927 = vadd.f32 %v5925, %v5926
    %v5928 = vadd.f32 %v5825, %v5829
    %v5929 = vrot.slane %v5928, 4
    %v5930 = vadd.f32 %v5928, %v5929
    %v5931 = vrot.slane %v5930, 2
    %v5932 = vadd.f32 %v5930, %v5931
    %v5933 = vrot.slane %v5932, 1
    %v5934 = vadd.f32 %v5932, %v5933
    %v5935 = vadd.f32 %v5909, %v5913
    %v5936 = vrot.slane %v5935, 4
    %v5937 = vadd.f32 %v5935, %v5936
    %v5938 = vrot.slane %v5937, 2
    %v5939 = vadd.f32 %v5937, %v5938
    %v5940 = vrot.slane %v5939, 1
    %v5941 = vadd.f32 %v5939, %v5940
    %v5942 = vadd.f32 %v5911, %v5915
    %v5943 = vrot.slane %v5942, 4
    %v5944 = vadd.f32 %v5942, %v5943
    %v5945 = vrot.slane %v5944, 2
    %v5946 = vadd.f32 %v5944, %v5945
    %v5947 = vrot.slane %v5946, 1
    %v5948 = vadd.f32 %v5946, %v5947
    %v5949 = vmul.f32 %v5927, %v1229
    %v5950 = vmul.f32 %v5934, %v1229
    %v5951 = vmul.f32 %v5941, %v1229
    %v5952 = vmul.f32 %v5948, %v1229
    %v5953 = vsub.f32 %v5823, %v5949
    %v5954 = vsub.f32 %v5825, %v5950
    %v5955 = vsub.f32 %v5909, %v5951
    %v5956 = vsub.f32 %v5911, %v5952
    %v5957 = vsub.f32 %v5827, %v5949
    %v5958 = vsub.f32 %v5829, %v5950
    %v5959 = vsub.f32 %v5913, %v5951
    %v5960 = vsub.f32 %v5915, %v5952
    %v5961 = vmul.f32 %v5953, %v5953
    %v5962 = vmul.f32 %v5954, %v5954
    %v5963 = vmul.f32 %v5955, %v5955
    %v5964 = vmul.f32 %v5956, %v5956
    %v5965 = vmul.f32 %v5957, %v5957
    %v5966 = vmul.f32 %v5958, %v5958
    %v5967 = vmul.f32 %v5959, %v5959
    %v5968 = vmul.f32 %v5960, %v5960
    %v5969 = vadd.f32 %v5961, %v5965
    %v5970 = vrot.slane %v5969, 4
    %v5971 = vadd.f32 %v5969, %v5970
    %v5972 = vrot.slane %v5971, 2
    %v5973 = vadd.f32 %v5971, %v5972
    %v5974 = vrot.slane %v5973, 1
    %v5975 = vadd.f32 %v5973, %v5974
    %v5976 = vadd.f32 %v5962, %v5966
    %v5977 = vrot.slane %v5976, 4
    %v5978 = vadd.f32 %v5976, %v5977
    %v5979 = vrot.slane %v5978, 2
    %v5980 = vadd.f32 %v5978, %v5979
    %v5981 = vrot.slane %v5980, 1
    %v5982 = vadd.f32 %v5980, %v5981
    %v5983 = vadd.f32 %v5963, %v5967
    %v5984 = vrot.slane %v5983, 4
    %v5985 = vadd.f32 %v5983, %v5984
    %v5986 = vrot.slane %v5985, 2
    %v5987 = vadd.f32 %v5985, %v5986
    %v5988 = vrot.slane %v5987, 1
    %v5989 = vadd.f32 %v5987, %v5988
    %v5990 = vadd.f32 %v5964, %v5968
    %v5991 = vrot.slane %v5990, 4
    %v5992 = vadd.f32 %v5990, %v5991
    %v5993 = vrot.slane %v5992, 2
    %v5994 = vadd.f32 %v5992, %v5993
    %v5995 = vrot.slane %v5994, 1
    %v5996 = vadd.f32 %v5994, %v5995
    %v5997 = vmul.f32 %v5975, %v1229
    %v5998 = vmul.f32 %v5982, %v1229
    %v5999 = vmul.f32 %v5989, %v1229
    %v6000 = vmul.f32 %v5996, %v1229
    %v6001 = vadd.f32 %v5997, 1e-05
    %v6002 = vadd.f32 %v5998, 1e-05
    %v6003 = vadd.f32 %v5999, 1e-05
    %v6004 = vadd.f32 %v6000, 1e-05
    %v6005 = vrsqrt.pop %v6001
    %v6006 = vrsqrt.pop %v6002
    %v6007 = vrsqrt.pop %v6003
    %v6008 = vrsqrt.pop %v6004
    %v6009 = vmul.f32 %v5953, %v6005
    %v6010 = vmul.f32 %v5954, %v6006
    %v6011 = vmul.f32 %v5955, %v6007
    %v6012 = vmul.f32 %v5956, %v6008
    %v6013 = vmul.f32 %v5957, %v6005
    %v6014 = vmul.f32 %v5958, %v6006
    %v6015 = vmul.f32 %v5959, %v6007
    %v6016 = vmul.f32 %v5960, %v6008
    %v6018 = vlaneseq
    %v6019 = vshrl.u32 %v6018, 7
    %v6020 = vsub.s32 0, %v6019
    %v6021 = vrot.slane %v5918, %v6020
    %v6022 = vlaneseq
    %v6023 = vshrl.u32 %v6022, 7
    %v6024 = vsub.s32 1, %v6023
    %v6025 = vrot.slane %v5918, %v6024
    %v6026 = vlaneseq
    %v6027 = vshrl.u32 %v6026, 7
    %v6028 = vsub.s32 2, %v6027
    %v6029 = vrot.slane %v5918, %v6028
    %v6030 = vlaneseq
    %v6031 = vshrl.u32 %v6030, 7
    %v6032 = vsub.s32 3, %v6031
    %v6033 = vrot.slane %v5918, %v6032
    %v6038 = vmul.f32 %v6009, %v6021
    %v6039 = vmul.f32 %v6010, %v6025
    %v6040 = vmul.f32 %v6011, %v6029
    %v6041 = vmul.f32 %v6012, %v6033
    %v6042 = vmul.f32 %v6013, %v6021
    %v6043 = vmul.f32 %v6014, %v6025
    %v6044 = vmul.f32 %v6015, %v6029
    %v6045 = vmul.f32 %v6016, %v6033
    %v6047 = vlaneseq
    %v6048 = vshrl.u32 %v6047, 7
    %v6049 = vsub.s32 0, %v6048
    %v6050 = vrot.slane %v5920, %v6049
    %v6051 = vlaneseq
    %v6052 = vshrl.u32 %v6051, 7
    %v6053 = vsub.s32 1, %v6052
    %v6054 = vrot.slane %v5920, %v6053
    %v6055 = vlaneseq
    %v6056 = vshrl.u32 %v6055, 7
    %v6057 = vsub.s32 2, %v6056
    %v6058 = vrot.slane %v5920, %v6057
    %v6059 = vlaneseq
    %v6060 = vshrl.u32 %v6059, 7
    %v6061 = vsub.s32 3, %v6060
    %v6062 = vrot.slane %v5920, %v6061
    %v6067 = vadd.f32 %v6038, %v6050
    %v6068 = vadd.f32 %v6039, %v6054
    %v6069 = vadd.f32 %v6040, %v6058
    %v6070 = vadd.f32 %v6041, %v6062
    %v6071 = vadd.f32 %v6042, %v6050
    %v6072 = vadd.f32 %v6043, %v6054
    %v6073 = vadd.f32 %v6044, %v6058
    %v6074 = vadd.f32 %v6045, %v6062
    %s6075 = sld [smem:[#allocation6 + $0x1]]
    %vm6076 = vcmp.ge.f32.partialorder %v6067, 0.0
    %vm6077 = vcmp.ge.f32.partialorder %v6068, 0.0
    %vm6078 = vcmp.ge.f32.partialorder %v6069, 0.0
    %vm6079 = vcmp.ge.f32.partialorder %v6070, 0.0
    %vm6080 = vcmp.ge.f32.partialorder %v6071, 0.0
    %vm6081 = vcmp.ge.f32.partialorder %v6072, 0.0
    %vm6082 = vcmp.ge.f32.partialorder %v6073, 0.0
    %vm6083 = vcmp.ge.f32.partialorder %v6074, 0.0
    %v6084 = vstv %s6075
    %v6085 = vmul.f32 %v6084, %v6067
    %v6086 = vmul.f32 %v6084, %v6068
    %v6087 = vmul.f32 %v6084, %v6069
    %v6088 = vmul.f32 %v6084, %v6070
    %v6089 = vmul.f32 %v6084, %v6071
    %v6090 = vmul.f32 %v6084, %v6072
    %v6091 = vmul.f32 %v6084, %v6073
    %v6092 = vmul.f32 %v6084, %v6074
    %v6093 = vsel %vm6076, %v6067, %v6085
    %v6094 = vsel %vm6077, %v6068, %v6086
    %v6095 = vsel %vm6078, %v6069, %v6087
    %v6096 = vsel %vm6079, %v6070, %v6088
    %v6097 = vsel %vm6080, %v6071, %v6089
    %v6098 = vsel %vm6081, %v6072, %v6090
    %v6099 = vsel %vm6082, %v6073, %v6091
    %v6100 = vsel %vm6083, %v6074, %v6092
    %s6101 = scalar_lea.vmem [#allocation17], 2048
    %v6102 = vld [vmem:[%s6101] sm:$0xff]
    %v6103 = vld [vmem:[%s6101 + $0x8] sm:$0xff]
    %v6104 = vld [vmem:[%s6101 + $0x10] sm:$0xff]
    %v6105 = vld [vmem:[%s6101 + $0x18] sm:$0xff]
    %v6106 = vld [vmem:[%s6101 + $0x20] sm:$0xff]
    %v6107 = vld [vmem:[%s6101 + $0x28] sm:$0xff]
    %v6108 = vld [vmem:[%s6101 + $0x30] sm:$0xff]
    %v6109 = vld [vmem:[%s6101 + $0x38] sm:$0xff]
    %v6110 = vld [vmem:[%s6101 + $0x40] sm:$0xff]
    %v6111 = vld [vmem:[%s6101 + $0x48] sm:$0xff]
    %v6112 = vld [vmem:[%s6101 + $0x50] sm:$0xff]
    %v6113 = vld [vmem:[%s6101 + $0x58] sm:$0xff]
    %v6114 = vld [vmem:[%s6101 + $0x60] sm:$0xff]
    %v6115 = vld [vmem:[%s6101 + $0x68] sm:$0xff]
    %v6116 = vld [vmem:[%s6101 + $0x70] sm:$0xff]
    %v6117 = vld [vmem:[%s6101 + $0x78] sm:$0xff]
    %v6118 = vld [vmem:[%s6101 + $0x80] sm:$0xff]
    %v6119 = vld [vmem:[%s6101 + $0x88] sm:$0xff]
    %v6120 = vld [vmem:[%s6101 + $0x90] sm:$0xff]
    %v6121 = vld [vmem:[%s6101 + $0x98] sm:$0xff]
    %v6122 = vld [vmem:[%s6101 + $0xa0] sm:$0xff]
    %v6123 = vld [vmem:[%s6101 + $0xa8] sm:$0xff]
    %v6124 = vld [vmem:[%s6101 + $0xb0] sm:$0xff]
    %v6125 = vld [vmem:[%s6101 + $0xb8] sm:$0xff]
    %v6126 = vld [vmem:[%s6101 + $0xc0] sm:$0xff]
    %v6127 = vld [vmem:[%s6101 + $0xc8] sm:$0xff]
    %v6128 = vld [vmem:[%s6101 + $0xd0] sm:$0xff]
    %v6129 = vld [vmem:[%s6101 + $0xd8] sm:$0xff]
    %v6130 = vld [vmem:[%s6101 + $0xe0] sm:$0xff]
    %v6131 = vld [vmem:[%s6101 + $0xe8] sm:$0xff]
    %v6132 = vld [vmem:[%s6101 + $0xf0] sm:$0xff]
    %v6133 = vld [vmem:[%s6101 + $0xf8] sm:$0xff]
    %v6134 = vld [vmem:[%s6101 + $0x100] sm:$0xff]
    %v6135 = vld [vmem:[%s6101 + $0x108] sm:$0xff]
    %v6136 = vld [vmem:[%s6101 + $0x110] sm:$0xff]
    %v6137 = vld [vmem:[%s6101 + $0x118] sm:$0xff]
    %v6138 = vld [vmem:[%s6101 + $0x120] sm:$0xff]
    %v6139 = vld [vmem:[%s6101 + $0x128] sm:$0xff]
    %v6140 = vld [vmem:[%s6101 + $0x130] sm:$0xff]
    %v6141 = vld [vmem:[%s6101 + $0x138] sm:$0xff]
    %v6142 = vld [vmem:[%s6101 + $0x140] sm:$0xff]
    %v6143 = vld [vmem:[%s6101 + $0x148] sm:$0xff]
    %v6144 = vld [vmem:[%s6101 + $0x150] sm:$0xff]
    %v6145 = vld [vmem:[%s6101 + $0x158] sm:$0xff]
    %v6146 = vld [vmem:[%s6101 + $0x160] sm:$0xff]
    %v6147 = vld [vmem:[%s6101 + $0x168] sm:$0xff]
    %v6148 = vld [vmem:[%s6101 + $0x170] sm:$0xff]
    %v6149 = vld [vmem:[%s6101 + $0x178] sm:$0xff]
    %v6150 = vld [vmem:[%s6101 + $0x180] sm:$0xff]
    %v6151 = vld [vmem:[%s6101 + $0x188] sm:$0xff]
    %v6152 = vld [vmem:[%s6101 + $0x190] sm:$0xff]
    %v6153 = vld [vmem:[%s6101 + $0x198] sm:$0xff]
    %v6154 = vld [vmem:[%s6101 + $0x1a0] sm:$0xff]
    %v6155 = vld [vmem:[%s6101 + $0x1a8] sm:$0xff]
    %v6156 = vld [vmem:[%s6101 + $0x1b0] sm:$0xff]
    %v6157 = vld [vmem:[%s6101 + $0x1b8] sm:$0xff]
    %v6158 = vld [vmem:[%s6101 + $0x1c0] sm:$0xff]
    %v6159 = vld [vmem:[%s6101 + $0x1c8] sm:$0xff]
    %v6160 = vld [vmem:[%s6101 + $0x1d0] sm:$0xff]
    %v6161 = vld [vmem:[%s6101 + $0x1d8] sm:$0xff]
    %v6162 = vld [vmem:[%s6101 + $0x1e0] sm:$0xff]
    %v6163 = vld [vmem:[%s6101 + $0x1e8] sm:$0xff]
    %v6164 = vld [vmem:[%s6101 + $0x1f0] sm:$0xff]
    %v6165 = vld [vmem:[%s6101 + $0x1f8] sm:$0xff]
    %v6166 = vld [vmem:[%s6101 + $0x200] sm:$0xff]
    %v6167 = vld [vmem:[%s6101 + $0x208] sm:$0xff]
    %v6168 = vld [vmem:[%s6101 + $0x210] sm:$0xff]
    %v6169 = vld [vmem:[%s6101 + $0x218] sm:$0xff]
    %v6170 = vld [vmem:[%s6101 + $0x220] sm:$0xff]
    %v6171 = vld [vmem:[%s6101 + $0x228] sm:$0xff]
    %v6172 = vld [vmem:[%s6101 + $0x230] sm:$0xff]
    %v6173 = vld [vmem:[%s6101 + $0x238] sm:$0xff]
    %v6174 = vld [vmem:[%s6101 + $0x240] sm:$0xff]
    %v6175 = vld [vmem:[%s6101 + $0x248] sm:$0xff]
    %v6176 = vld [vmem:[%s6101 + $0x250] sm:$0xff]
    %v6177 = vld [vmem:[%s6101 + $0x258] sm:$0xff]
    %v6178 = vld [vmem:[%s6101 + $0x260] sm:$0xff]
    %v6179 = vld [vmem:[%s6101 + $0x268] sm:$0xff]
    %v6180 = vld [vmem:[%s6101 + $0x270] sm:$0xff]
    %v6181 = vld [vmem:[%s6101 + $0x278] sm:$0xff]
    %v6182 = vld [vmem:[%s6101 + $0x280] sm:$0xff]
    %v6183 = vld [vmem:[%s6101 + $0x288] sm:$0xff]
    %v6184 = vld [vmem:[%s6101 + $0x290] sm:$0xff]
    %v6185 = vld [vmem:[%s6101 + $0x298] sm:$0xff]
    %v6186 = vld [vmem:[%s6101 + $0x2a0] sm:$0xff]
    %v6187 = vld [vmem:[%s6101 + $0x2a8] sm:$0xff]
    %v6188 = vld [vmem:[%s6101 + $0x2b0] sm:$0xff]
    %v6189 = vld [vmem:[%s6101 + $0x2b8] sm:$0xff]
    %v6190 = vld [vmem:[%s6101 + $0x2c0] sm:$0xff]
    %v6191 = vld [vmem:[%s6101 + $0x2c8] sm:$0xff]
    %v6192 = vld [vmem:[%s6101 + $0x2d0] sm:$0xff]
    %v6193 = vld [vmem:[%s6101 + $0x2d8] sm:$0xff]
    %v6194 = vld [vmem:[%s6101 + $0x2e0] sm:$0xff]
    %v6195 = vld [vmem:[%s6101 + $0x2e8] sm:$0xff]
    %v6196 = vld [vmem:[%s6101 + $0x2f0] sm:$0xff]
    %v6197 = vld [vmem:[%s6101 + $0x2f8] sm:$0xff]
    %v6198 = vld [vmem:[%s6101 + $0x300] sm:$0xff]
    %v6199 = vld [vmem:[%s6101 + $0x308] sm:$0xff]
    %v6200 = vld [vmem:[%s6101 + $0x310] sm:$0xff]
    %v6201 = vld [vmem:[%s6101 + $0x318] sm:$0xff]
    %v6202 = vld [vmem:[%s6101 + $0x320] sm:$0xff]
    %v6203 = vld [vmem:[%s6101 + $0x328] sm:$0xff]
    %v6204 = vld [vmem:[%s6101 + $0x330] sm:$0xff]
    %v6205 = vld [vmem:[%s6101 + $0x338] sm:$0xff]
    %v6206 = vld [vmem:[%s6101 + $0x340] sm:$0xff]
    %v6207 = vld [vmem:[%s6101 + $0x348] sm:$0xff]
    %v6208 = vld [vmem:[%s6101 + $0x350] sm:$0xff]
    %v6209 = vld [vmem:[%s6101 + $0x358] sm:$0xff]
    %v6210 = vld [vmem:[%s6101 + $0x360] sm:$0xff]
    %v6211 = vld [vmem:[%s6101 + $0x368] sm:$0xff]
    %v6212 = vld [vmem:[%s6101 + $0x370] sm:$0xff]
    %v6213 = vld [vmem:[%s6101 + $0x378] sm:$0xff]
    %v6214 = vld [vmem:[%s6101 + $0x380] sm:$0xff]
    %v6215 = vld [vmem:[%s6101 + $0x388] sm:$0xff]
    %v6216 = vld [vmem:[%s6101 + $0x390] sm:$0xff]
    %v6217 = vld [vmem:[%s6101 + $0x398] sm:$0xff]
    %v6218 = vld [vmem:[%s6101 + $0x3a0] sm:$0xff]
    %v6219 = vld [vmem:[%s6101 + $0x3a8] sm:$0xff]
    %v6220 = vld [vmem:[%s6101 + $0x3b0] sm:$0xff]
    %v6221 = vld [vmem:[%s6101 + $0x3b8] sm:$0xff]
    %v6222 = vld [vmem:[%s6101 + $0x3c0] sm:$0xff]
    %v6223 = vld [vmem:[%s6101 + $0x3c8] sm:$0xff]
    %v6224 = vld [vmem:[%s6101 + $0x3d0] sm:$0xff]
    %v6225 = vld [vmem:[%s6101 + $0x3d8] sm:$0xff]
    %v6226 = vld [vmem:[%s6101 + $0x3e0] sm:$0xff]
    %v6227 = vld [vmem:[%s6101 + $0x3e8] sm:$0xff]
    %v6228 = vld [vmem:[%s6101 + $0x3f0] sm:$0xff]
    %v6229 = vld [vmem:[%s6101 + $0x3f8] sm:$0xff]
    %v6230 = vpack.c.bf16 %v6097, %v6093
    %v6231 = vpack.c.bf16 %v6098, %v6094
    %v6232 = vpack.c.bf16 %v6099, %v6095
    %v6233 = vpack.c.bf16 %v6100, %v6096
    %v6234 = vld [vmem:[#allocation18] sm:$0xf]
    %v6236 = vlaneseq
    %v6237 = vshrl.u32 %v6236, 7
    %v6238 = vsub.s32 0, %v6237
    %v6239 = vrot.slane %v6234, %v6238
    %v6240 = vlaneseq
    %v6241 = vshrl.u32 %v6240, 7
    %v6242 = vsub.s32 1, %v6241
    %v6243 = vrot.slane %v6234, %v6242
    %v6244 = vlaneseq
    %v6245 = vshrl.u32 %v6244, 7
    %v6246 = vsub.s32 2, %v6245
    %v6247 = vrot.slane %v6234, %v6246
    %v6248 = vlaneseq
    %v6249 = vshrl.u32 %v6248, 7
    %v6250 = vsub.s32 3, %v6249
    %v6251 = vrot.slane %v6234, %v6250
    %v6384 = vunpack.c.l.b16 %v6102
    %v6385 = vunpack.c.h.b16 %v6102
    %v6386 = vunpack.c.l.b16 %v6103
    %v6387 = vunpack.c.h.b16 %v6103
    %v6388 = vunpack.c.l.b16 %v6104
    %v6389 = vunpack.c.h.b16 %v6104
    %v6390 = vunpack.c.l.b16 %v6105
    %v6391 = vunpack.c.h.b16 %v6105
    %v6392 = vunpack.c.l.b16 %v6106
    %v6393 = vunpack.c.h.b16 %v6106
    %v6394 = vunpack.c.l.b16 %v6107
    %v6395 = vunpack.c.h.b16 %v6107
    %v6396 = vunpack.c.l.b16 %v6108
    %v6397 = vunpack.c.h.b16 %v6108
    %v6398 = vunpack.c.l.b16 %v6109
    %v6399 = vunpack.c.h.b16 %v6109
    %v6400 = vunpack.c.l.b16 %v6110
    %v6401 = vunpack.c.h.b16 %v6110
    %v6402 = vunpack.c.l.b16 %v6111
    %v6403 = vunpack.c.h.b16 %v6111
    %v6404 = vunpack.c.l.b16 %v6112
    %v6405 = vunpack.c.h.b16 %v6112
    %v6406 = vunpack.c.l.b16 %v6113
    %v6407 = vunpack.c.h.b16 %v6113
    %v6408 = vunpack.c.l.b16 %v6114
    %v6409 = vunpack.c.h.b16 %v6114
    %v6410 = vunpack.c.l.b16 %v6115
    %v6411 = vunpack.c.h.b16 %v6115
    %v6412 = vunpack.c.l.b16 %v6116
    %v6413 = vunpack.c.h.b16 %v6116
    %v6414 = vunpack.c.l.b16 %v6117
    %v6415 = vunpack.c.h.b16 %v6117
    %v6416 = vunpack.c.l.b16 %v6118
    %v6417 = vunpack.c.h.b16 %v6118
    %v6418 = vunpack.c.l.b16 %v6119
    %v6419 = vunpack.c.h.b16 %v6119
    %v6420 = vunpack.c.l.b16 %v6120
    %v6421 = vunpack.c.h.b16 %v6120
    %v6422 = vunpack.c.l.b16 %v6121
    %v6423 = vunpack.c.h.b16 %v6121
    %v6424 = vunpack.c.l.b16 %v6122
    %v6425 = vunpack.c.h.b16 %v6122
    %v6426 = vunpack.c.l.b16 %v6123
    %v6427 = vunpack.c.h.b16 %v6123
    %v6428 = vunpack.c.l.b16 %v6124
    %v6429 = vunpack.c.h.b16 %v6124
    %v6430 = vunpack.c.l.b16 %v6125
    %v6431 = vunpack.c.h.b16 %v6125
    %v6432 = vunpack.c.l.b16 %v6126
    %v6433 = vunpack.c.h.b16 %v6126
    %v6434 = vunpack.c.l.b16 %v6127
    %v6435 = vunpack.c.h.b16 %v6127
    %v6436 = vunpack.c.l.b16 %v6128
    %v6437 = vunpack.c.h.b16 %v6128
    %v6438 = vunpack.c.l.b16 %v6129
    %v6439 = vunpack.c.h.b16 %v6129
    %v6440 = vunpack.c.l.b16 %v6130
    %v6441 = vunpack.c.h.b16 %v6130
    %v6442 = vunpack.c.l.b16 %v6131
    %v6443 = vunpack.c.h.b16 %v6131
    %v6444 = vunpack.c.l.b16 %v6132
    %v6445 = vunpack.c.h.b16 %v6132
    %v6446 = vunpack.c.l.b16 %v6133
    %v6447 = vunpack.c.h.b16 %v6133
    %v6448 = vunpack.c.l.b16 %v6134
    %v6449 = vunpack.c.h.b16 %v6134
    %v6450 = vunpack.c.l.b16 %v6135
    %v6451 = vunpack.c.h.b16 %v6135
    %v6452 = vunpack.c.l.b16 %v6136
    %v6453 = vunpack.c.h.b16 %v6136
    %v6454 = vunpack.c.l.b16 %v6137
    %v6455 = vunpack.c.h.b16 %v6137
    %v6456 = vunpack.c.l.b16 %v6138
    %v6457 = vunpack.c.h.b16 %v6138
    %v6458 = vunpack.c.l.b16 %v6139
    %v6459 = vunpack.c.h.b16 %v6139
    %v6460 = vunpack.c.l.b16 %v6140
    %v6461 = vunpack.c.h.b16 %v6140
    %v6462 = vunpack.c.l.b16 %v6141
    %v6463 = vunpack.c.h.b16 %v6141
    %v6464 = vunpack.c.l.b16 %v6142
    %v6465 = vunpack.c.h.b16 %v6142
    %v6466 = vunpack.c.l.b16 %v6143
    %v6467 = vunpack.c.h.b16 %v6143
    %v6468 = vunpack.c.l.b16 %v6144
    %v6469 = vunpack.c.h.b16 %v6144
    %v6470 = vunpack.c.l.b16 %v6145
    %v6471 = vunpack.c.h.b16 %v6145
    %v6472 = vunpack.c.l.b16 %v6146
    %v6473 = vunpack.c.h.b16 %v6146
    %v6474 = vunpack.c.l.b16 %v6147
    %v6475 = vunpack.c.h.b16 %v6147
    %v6476 = vunpack.c.l.b16 %v6148
    %v6477 = vunpack.c.h.b16 %v6148
    %v6478 = vunpack.c.l.b16 %v6149
    %v6479 = vunpack.c.h.b16 %v6149
    %v6480 = vunpack.c.l.b16 %v6150
    %v6481 = vunpack.c.h.b16 %v6150
    %v6482 = vunpack.c.l.b16 %v6151
    %v6483 = vunpack.c.h.b16 %v6151
    %v6484 = vunpack.c.l.b16 %v6152
    %v6485 = vunpack.c.h.b16 %v6152
    %v6486 = vunpack.c.l.b16 %v6153
    %v6487 = vunpack.c.h.b16 %v6153
    %v6488 = vunpack.c.l.b16 %v6154
    %v6489 = vunpack.c.h.b16 %v6154
    %v6490 = vunpack.c.l.b16 %v6155
    %v6491 = vunpack.c.h.b16 %v6155
    %v6492 = vunpack.c.l.b16 %v6156
    %v6493 = vunpack.c.h.b16 %v6156
    %v6494 = vunpack.c.l.b16 %v6157
    %v6495 = vunpack.c.h.b16 %v6157
    %v6496 = vunpack.c.l.b16 %v6158
    %v6497 = vunpack.c.h.b16 %v6158
    %v6498 = vunpack.c.l.b16 %v6159
    %v6499 = vunpack.c.h.b16 %v6159
    %v6500 = vunpack.c.l.b16 %v6160
    %v6501 = vunpack.c.h.b16 %v6160
    %v6502 = vunpack.c.l.b16 %v6161
    %v6503 = vunpack.c.h.b16 %v6161
    %v6504 = vunpack.c.l.b16 %v6162
    %v6505 = vunpack.c.h.b16 %v6162
    %v6506 = vunpack.c.l.b16 %v6163
    %v6507 = vunpack.c.h.b16 %v6163
    %v6508 = vunpack.c.l.b16 %v6164
    %v6509 = vunpack.c.h.b16 %v6164
    %v6510 = vunpack.c.l.b16 %v6165
    %v6511 = vunpack.c.h.b16 %v6165
    %v6512 = vunpack.c.l.b16 %v6166
    %v6513 = vunpack.c.h.b16 %v6166
    %v6514 = vunpack.c.l.b16 %v6167
    %v6515 = vunpack.c.h.b16 %v6167
    %v6516 = vunpack.c.l.b16 %v6168
    %v6517 = vunpack.c.h.b16 %v6168
    %v6518 = vunpack.c.l.b16 %v6169
    %v6519 = vunpack.c.h.b16 %v6169
    %v6520 = vunpack.c.l.b16 %v6170
    %v6521 = vunpack.c.h.b16 %v6170
    %v6522 = vunpack.c.l.b16 %v6171
    %v6523 = vunpack.c.h.b16 %v6171
    %v6524 = vunpack.c.l.b16 %v6172
    %v6525 = vunpack.c.h.b16 %v6172
    %v6526 = vunpack.c.l.b16 %v6173
    %v6527 = vunpack.c.h.b16 %v6173
    %v6528 = vunpack.c.l.b16 %v6174
    %v6529 = vunpack.c.h.b16 %v6174
    %v6530 = vunpack.c.l.b16 %v6175
    %v6531 = vunpack.c.h.b16 %v6175
    %v6532 = vunpack.c.l.b16 %v6176
    %v6533 = vunpack.c.h.b16 %v6176
    %v6534 = vunpack.c.l.b16 %v6177
    %v6535 = vunpack.c.h.b16 %v6177
    %v6536 = vunpack.c.l.b16 %v6178
    %v6537 = vunpack.c.h.b16 %v6178
    %v6538 = vunpack.c.l.b16 %v6179
    %v6539 = vunpack.c.h.b16 %v6179
    %v6540 = vunpack.c.l.b16 %v6180
    %v6541 = vunpack.c.h.b16 %v6180
    %v6542 = vunpack.c.l.b16 %v6181
    %v6543 = vunpack.c.h.b16 %v6181
    %v6544 = vunpack.c.l.b16 %v6182
    %v6545 = vunpack.c.h.b16 %v6182
    %v6546 = vunpack.c.l.b16 %v6183
    %v6547 = vunpack.c.h.b16 %v6183
    %v6548 = vunpack.c.l.b16 %v6184
    %v6549 = vunpack.c.h.b16 %v6184
    %v6550 = vunpack.c.l.b16 %v6185
    %v6551 = vunpack.c.h.b16 %v6185
    %v6552 = vunpack.c.l.b16 %v6186
    %v6553 = vunpack.c.h.b16 %v6186
    %v6554 = vunpack.c.l.b16 %v6187
    %v6555 = vunpack.c.h.b16 %v6187
    %v6556 = vunpack.c.l.b16 %v6188
    %v6557 = vunpack.c.h.b16 %v6188
    %v6558 = vunpack.c.l.b16 %v6189
    %v6559 = vunpack.c.h.b16 %v6189
    %v6560 = vunpack.c.l.b16 %v6190
    %v6561 = vunpack.c.h.b16 %v6190
    %v6562 = vunpack.c.l.b16 %v6191
    %v6563 = vunpack.c.h.b16 %v6191
    %v6564 = vunpack.c.l.b16 %v6192
    %v6565 = vunpack.c.h.b16 %v6192
    %v6566 = vunpack.c.l.b16 %v6193
    %v6567 = vunpack.c.h.b16 %v6193
    %v6568 = vunpack.c.l.b16 %v6194
    %v6569 = vunpack.c.h.b16 %v6194
    %v6570 = vunpack.c.l.b16 %v6195
    %v6571 = vunpack.c.h.b16 %v6195
    %v6572 = vunpack.c.l.b16 %v6196
    %v6573 = vunpack.c.h.b16 %v6196
    %v6574 = vunpack.c.l.b16 %v6197
    %v6575 = vunpack.c.h.b16 %v6197
    %v6576 = vunpack.c.l.b16 %v6198
    %v6577 = vunpack.c.h.b16 %v6198
    %v6578 = vunpack.c.l.b16 %v6199
    %v6579 = vunpack.c.h.b16 %v6199
    %v6580 = vunpack.c.l.b16 %v6200
    %v6581 = vunpack.c.h.b16 %v6200
    %v6582 = vunpack.c.l.b16 %v6201
    %v6583 = vunpack.c.h.b16 %v6201
    %v6584 = vunpack.c.l.b16 %v6202
    %v6585 = vunpack.c.h.b16 %v6202
    %v6586 = vunpack.c.l.b16 %v6203
    %v6587 = vunpack.c.h.b16 %v6203
    %v6588 = vunpack.c.l.b16 %v6204
    %v6589 = vunpack.c.h.b16 %v6204
    %v6590 = vunpack.c.l.b16 %v6205
    %v6591 = vunpack.c.h.b16 %v6205
    %v6592 = vunpack.c.l.b16 %v6206
    %v6593 = vunpack.c.h.b16 %v6206
    %v6594 = vunpack.c.l.b16 %v6207
    %v6595 = vunpack.c.h.b16 %v6207
    %v6596 = vunpack.c.l.b16 %v6208
    %v6597 = vunpack.c.h.b16 %v6208
    %v6598 = vunpack.c.l.b16 %v6209
    %v6599 = vunpack.c.h.b16 %v6209
    %v6600 = vunpack.c.l.b16 %v6210
    %v6601 = vunpack.c.h.b16 %v6210
    %v6602 = vunpack.c.l.b16 %v6211
    %v6603 = vunpack.c.h.b16 %v6211
    %v6604 = vunpack.c.l.b16 %v6212
    %v6605 = vunpack.c.h.b16 %v6212
    %v6606 = vunpack.c.l.b16 %v6213
    %v6607 = vunpack.c.h.b16 %v6213
    %v6608 = vunpack.c.l.b16 %v6214
    %v6609 = vunpack.c.h.b16 %v6214
    %v6610 = vunpack.c.l.b16 %v6215
    %v6611 = vunpack.c.h.b16 %v6215
    %v6612 = vunpack.c.l.b16 %v6216
    %v6613 = vunpack.c.h.b16 %v6216
    %v6614 = vunpack.c.l.b16 %v6217
    %v6615 = vunpack.c.h.b16 %v6217
    %v6616 = vunpack.c.l.b16 %v6218
    %v6617 = vunpack.c.h.b16 %v6218
    %v6618 = vunpack.c.l.b16 %v6219
    %v6619 = vunpack.c.h.b16 %v6219
    %v6620 = vunpack.c.l.b16 %v6220
    %v6621 = vunpack.c.h.b16 %v6220
    %v6622 = vunpack.c.l.b16 %v6221
    %v6623 = vunpack.c.h.b16 %v6221
    %v6624 = vunpack.c.l.b16 %v6222
    %v6625 = vunpack.c.h.b16 %v6222
    %v6626 = vunpack.c.l.b16 %v6223
    %v6627 = vunpack.c.h.b16 %v6223
    %v6628 = vunpack.c.l.b16 %v6224
    %v6629 = vunpack.c.h.b16 %v6224
    %v6630 = vunpack.c.l.b16 %v6225
    %v6631 = vunpack.c.h.b16 %v6225
    %v6632 = vunpack.c.l.b16 %v6226
    %v6633 = vunpack.c.h.b16 %v6226
    %v6634 = vunpack.c.l.b16 %v6227
    %v6635 = vunpack.c.h.b16 %v6227
    %v6636 = vunpack.c.l.b16 %v6228
    %v6637 = vunpack.c.h.b16 %v6228
    %v6638 = vunpack.c.l.b16 %v6229
    %v6639 = vunpack.c.h.b16 %v6229
    %v6640 = vpack.c.b16 %v6388, %v6384
    %v6641 = vpack.c.b16 %v6389, %v6385
    %v6642 = vpack.c.b16 %v6390, %v6386
    %v6643 = vpack.c.b16 %v6391, %v6387
    %v6644 = vpack.c.b16 %v6396, %v6392
    %v6645 = vpack.c.b16 %v6397, %v6393
    %v6646 = vpack.c.b16 %v6398, %v6394
    %v6647 = vpack.c.b16 %v6399, %v6395
    %v6648 = vpack.c.b16 %v6404, %v6400
    %v6649 = vpack.c.b16 %v6405, %v6401
    %v6650 = vpack.c.b16 %v6406, %v6402
    %v6651 = vpack.c.b16 %v6407, %v6403
    %v6652 = vpack.c.b16 %v6412, %v6408
    %v6653 = vpack.c.b16 %v6413, %v6409
    %v6654 = vpack.c.b16 %v6414, %v6410
    %v6655 = vpack.c.b16 %v6415, %v6411
    %v6656 = vpack.c.b16 %v6420, %v6416
    %v6657 = vpack.c.b16 %v6421, %v6417
    %v6658 = vpack.c.b16 %v6422, %v6418
    %v6659 = vpack.c.b16 %v6423, %v6419
    %v6660 = vpack.c.b16 %v6428, %v6424
    %v6661 = vpack.c.b16 %v6429, %v6425
    %v6662 = vpack.c.b16 %v6430, %v6426
    %v6663 = vpack.c.b16 %v6431, %v6427
    %v6664 = vpack.c.b16 %v6436, %v6432
    %v6665 = vpack.c.b16 %v6437, %v6433
    %v6666 = vpack.c.b16 %v6438, %v6434
    %v6667 = vpack.c.b16 %v6439, %v6435
    %v6668 = vpack.c.b16 %v6444, %v6440
    %v6669 = vpack.c.b16 %v6445, %v6441
    %v6670 = vpack.c.b16 %v6446, %v6442
    %v6671 = vpack.c.b16 %v6447, %v6443
    %v6672 = vpack.c.b16 %v6452, %v6448
    %v6673 = vpack.c.b16 %v6453, %v6449
    %v6674 = vpack.c.b16 %v6454, %v6450
    %v6675 = vpack.c.b16 %v6455, %v6451
    %v6676 = vpack.c.b16 %v6460, %v6456
    %v6677 = vpack.c.b16 %v6461, %v6457
    %v6678 = vpack.c.b16 %v6462, %v6458
    %v6679 = vpack.c.b16 %v6463, %v6459
    %v6680 = vpack.c.b16 %v6468, %v6464
    %v6681 = vpack.c.b16 %v6469, %v6465
    %v6682 = vpack.c.b16 %v6470, %v6466
    %v6683 = vpack.c.b16 %v6471, %v6467
    %v6684 = vpack.c.b16 %v6476, %v6472
    %v6685 = vpack.c.b16 %v6477, %v6473
    %v6686 = vpack.c.b16 %v6478, %v6474
    %v6687 = vpack.c.b16 %v6479, %v6475
    %v6688 = vpack.c.b16 %v6484, %v6480
    %v6689 = vpack.c.b16 %v6485, %v6481
    %v6690 = vpack.c.b16 %v6486, %v6482
    %v6691 = vpack.c.b16 %v6487, %v6483
    %v6692 = vpack.c.b16 %v6492, %v6488
    %v6693 = vpack.c.b16 %v6493, %v6489
    %v6694 = vpack.c.b16 %v6494, %v6490
    %v6695 = vpack.c.b16 %v6495, %v6491
    %v6696 = vpack.c.b16 %v6500, %v6496
    %v6697 = vpack.c.b16 %v6501, %v6497
    %v6698 = vpack.c.b16 %v6502, %v6498
    %v6699 = vpack.c.b16 %v6503, %v6499
    %v6700 = vpack.c.b16 %v6508, %v6504
    %v6701 = vpack.c.b16 %v6509, %v6505
    %v6702 = vpack.c.b16 %v6510, %v6506
    %v6703 = vpack.c.b16 %v6511, %v6507
    %v6704 = vpack.c.b16 %v6516, %v6512
    %v6705 = vpack.c.b16 %v6517, %v6513
    %v6706 = vpack.c.b16 %v6518, %v6514
    %v6707 = vpack.c.b16 %v6519, %v6515
    %v6708 = vpack.c.b16 %v6524, %v6520
    %v6709 = vpack.c.b16 %v6525, %v6521
    %v6710 = vpack.c.b16 %v6526, %v6522
    %v6711 = vpack.c.b16 %v6527, %v6523
    %v6712 = vpack.c.b16 %v6532, %v6528
    %v6713 = vpack.c.b16 %v6533, %v6529
    %v6714 = vpack.c.b16 %v6534, %v6530
    %v6715 = vpack.c.b16 %v6535, %v6531
    %v6716 = vpack.c.b16 %v6540, %v6536
    %v6717 = vpack.c.b16 %v6541, %v6537
    %v6718 = vpack.c.b16 %v6542, %v6538
    %v6719 = vpack.c.b16 %v6543, %v6539
    %v6720 = vpack.c.b16 %v6548, %v6544
    %v6721 = vpack.c.b16 %v6549, %v6545
    %v6722 = vpack.c.b16 %v6550, %v6546
    %v6723 = vpack.c.b16 %v6551, %v6547
    %v6724 = vpack.c.b16 %v6556, %v6552
    %v6725 = vpack.c.b16 %v6557, %v6553
    %v6726 = vpack.c.b16 %v6558, %v6554
    %v6727 = vpack.c.b16 %v6559, %v6555
    %v6728 = vpack.c.b16 %v6564, %v6560
    %v6729 = vpack.c.b16 %v6565, %v6561
    %v6730 = vpack.c.b16 %v6566, %v6562
    %v6731 = vpack.c.b16 %v6567, %v6563
    %v6732 = vpack.c.b16 %v6572, %v6568
    %v6733 = vpack.c.b16 %v6573, %v6569
    %v6734 = vpack.c.b16 %v6574, %v6570
    %v6735 = vpack.c.b16 %v6575, %v6571
    %v6736 = vpack.c.b16 %v6580, %v6576
    %v6737 = vpack.c.b16 %v6581, %v6577
    %v6738 = vpack.c.b16 %v6582, %v6578
    %v6739 = vpack.c.b16 %v6583, %v6579
    %v6740 = vpack.c.b16 %v6588, %v6584
    %v6741 = vpack.c.b16 %v6589, %v6585
    %v6742 = vpack.c.b16 %v6590, %v6586
    %v6743 = vpack.c.b16 %v6591, %v6587
    %v6744 = vpack.c.b16 %v6596, %v6592
    %v6745 = vpack.c.b16 %v6597, %v6593
    %v6746 = vpack.c.b16 %v6598, %v6594
    %v6747 = vpack.c.b16 %v6599, %v6595
    %v6748 = vpack.c.b16 %v6604, %v6600
    %v6749 = vpack.c.b16 %v6605, %v6601
    %v6750 = vpack.c.b16 %v6606, %v6602
    %v6751 = vpack.c.b16 %v6607, %v6603
    %v6752 = vpack.c.b16 %v6612, %v6608
    %v6753 = vpack.c.b16 %v6613, %v6609
    %v6754 = vpack.c.b16 %v6614, %v6610
    %v6755 = vpack.c.b16 %v6615, %v6611
    %v6756 = vpack.c.b16 %v6620, %v6616
    %v6757 = vpack.c.b16 %v6621, %v6617
    %v6758 = vpack.c.b16 %v6622, %v6618
    %v6759 = vpack.c.b16 %v6623, %v6619
    %v6760 = vpack.c.b16 %v6628, %v6624
    %v6761 = vpack.c.b16 %v6629, %v6625
    %v6762 = vpack.c.b16 %v6630, %v6626
    %v6763 = vpack.c.b16 %v6631, %v6627
    %v6764 = vpack.c.b16 %v6636, %v6632
    %v6765 = vpack.c.b16 %v6637, %v6633
    %v6766 = vpack.c.b16 %v6638, %v6634
    %v6767 = vpack.c.b16 %v6639, %v6635
    %6896 = vmatprep.subr.bf16.mxu0 %v6669
    %6897 = vmatpush1.bf16.msra.mxu0 %v6668
    %6898 = vmatprep.subr.bf16.mxu0 %v6665
    %6899 = vmatpush1.bf16.msra.mxu0 %v6664
    %6900 = vmatprep.subr.bf16.mxu0 %v6661
    %6901 = vmatpush1.bf16.msra.mxu0 %v6660
    %6902 = vmatprep.subr.bf16.mxu0 %v6657
    %6903 = vmatpush1.bf16.msra.mxu0 %v6656
    %6904 = vmatprep.subr.bf16.mxu0 %v6653
    %6905 = vmatpush1.bf16.msra.mxu0 %v6652
    %6906 = vmatprep.subr.bf16.mxu0 %v6649
    %6907 = vmatpush1.bf16.msra.mxu0 %v6648
    %6908 = vmatprep.subr.bf16.mxu0 %v6645
    %6909 = vmatpush1.bf16.msra.mxu0 %v6644
    %6910 = vmatprep.subr.bf16.mxu0 %v6641
    %6911 = vmatpush1.bf16.msra.mxu0 %v6640
    %6912 = vmatprep.subr.bf16.mxu0 %v6701
    %6913 = vmatpush2.bf16.msra.mxu0 %v6700
    %6914 = vmatprep.subr.bf16.mxu0 %v6697
    %6915 = vmatpush2.bf16.msra.mxu0 %v6696
    %6916 = vmatprep.subr.bf16.mxu0 %v6693
    %6917 = vmatpush2.bf16.msra.mxu0 %v6692
    %6918 = vmatprep.subr.bf16.mxu0 %v6689
    %6919 = vmatpush2.bf16.msra.mxu0 %v6688
    %6920 = vmatprep.subr.bf16.mxu0 %v6685
    %6921 = vmatpush2.bf16.msra.mxu0 %v6684
    %6922 = vmatprep.subr.bf16.mxu0 %v6681
    %6923 = vmatpush2.bf16.msra.mxu0 %v6680
    %6924 = vmatprep.subr.bf16.mxu0 %v6677
    %6925 = vmatpush2.bf16.msra.mxu0 %v6676
    %6926 = vmatprep.subr.bf16.mxu0 %v6673
    %6927 = vmatpush2.bf16.msra.mxu0 %v6672
    %6928 = vmatprep.mubr.bf16.mxu0 %v6231
    %6929 = vmatmul.mubr.bf16.gmra.mxu0 %v6230
    %v6930 = vpop.f32.mrf.mxu0
    %v6931 = vadd.f32 %v6239, %v6930
    %v6932 = vpop.f32.mrf.mxu0
    %v6933 = vadd.f32 %v6243, %v6932
    %v6934 = vpop.f32.mrf.mxu0
    %v6935 = vadd.f32 %v6239, %v6934
    %v6936 = vpop.f32.mrf.mxu0
    %v6937 = vadd.f32 %v6243, %v6936
    %6938 = vdwg.mxu0
    %6939 = vmatprep.subr.bf16.mxu0 %v6733
    %6940 = vmatpush1.bf16.msra.mxu0 %v6732
    %6941 = vmatprep.subr.bf16.mxu0 %v6729
    %6942 = vmatpush1.bf16.msra.mxu0 %v6728
    %6943 = vmatprep.subr.bf16.mxu0 %v6725
    %6944 = vmatpush1.bf16.msra.mxu0 %v6724
    %6945 = vmatprep.subr.bf16.mxu0 %v6721
    %6946 = vmatpush1.bf16.msra.mxu0 %v6720
    %6947 = vmatprep.subr.bf16.mxu0 %v6717
    %6948 = vmatpush1.bf16.msra.mxu0 %v6716
    %6949 = vmatprep.subr.bf16.mxu0 %v6713
    %6950 = vmatpush1.bf16.msra.mxu0 %v6712
    %6951 = vmatprep.subr.bf16.mxu0 %v6709
    %6952 = vmatpush1.bf16.msra.mxu0 %v6708
    %6953 = vmatprep.subr.bf16.mxu0 %v6705
    %6954 = vmatpush1.bf16.msra.mxu0 %v6704
    %6955 = vmatprep.subr.bf16.mxu0 %v6765
    %6956 = vmatpush2.bf16.msra.mxu0 %v6764
    %6957 = vmatprep.subr.bf16.mxu0 %v6761
    %6958 = vmatpush2.bf16.msra.mxu0 %v6760
    %6959 = vmatprep.subr.bf16.mxu0 %v6757
    %6960 = vmatpush2.bf16.msra.mxu0 %v6756
    %6961 = vmatprep.subr.bf16.mxu0 %v6753
    %6962 = vmatpush2.bf16.msra.mxu0 %v6752
    %6963 = vmatprep.subr.bf16.mxu0 %v6749
    %6964 = vmatpush2.bf16.msra.mxu0 %v6748
    %6965 = vmatprep.subr.bf16.mxu0 %v6745
    %6966 = vmatpush2.bf16.msra.mxu0 %v6744
    %6967 = vmatprep.subr.bf16.mxu0 %v6741
    %6968 = vmatpush2.bf16.msra.mxu0 %v6740
    %6969 = vmatprep.subr.bf16.mxu0 %v6737
    %6970 = vmatpush2.bf16.msra.mxu0 %v6736
    %6971 = vmatprep.mubr.bf16.mxu0 %v6233
    %6972 = vmatmul.mubr.bf16.gmra.mxu0 %v6232
    %v6973 = vpop.f32.mrf.mxu0
    %v6974 = vadd.f32 %v6931, %v6973
    %v6975 = vpop.f32.mrf.mxu0
    %v6976 = vadd.f32 %v6933, %v6975
    %v6977 = vpop.f32.mrf.mxu0
    %v6978 = vadd.f32 %v6935, %v6977
    %v6979 = vpop.f32.mrf.mxu0
    %v6980 = vadd.f32 %v6937, %v6979
    %6981 = vdwg.mxu0
    %6982 = vmatprep.subr.bf16.mxu0 %v6671
    %6983 = vmatpush1.bf16.msra.mxu0 %v6670
    %6984 = vmatprep.subr.bf16.mxu0 %v6667
    %6985 = vmatpush1.bf16.msra.mxu0 %v6666
    %6986 = vmatprep.subr.bf16.mxu0 %v6663
    %6987 = vmatpush1.bf16.msra.mxu0 %v6662
    %6988 = vmatprep.subr.bf16.mxu0 %v6659
    %6989 = vmatpush1.bf16.msra.mxu0 %v6658
    %6990 = vmatprep.subr.bf16.mxu0 %v6655
    %6991 = vmatpush1.bf16.msra.mxu0 %v6654
    %6992 = vmatprep.subr.bf16.mxu0 %v6651
    %6993 = vmatpush1.bf16.msra.mxu0 %v6650
    %6994 = vmatprep.subr.bf16.mxu0 %v6647
    %6995 = vmatpush1.bf16.msra.mxu0 %v6646
    %6996 = vmatprep.subr.bf16.mxu0 %v6643
    %6997 = vmatpush1.bf16.msra.mxu0 %v6642
    %6998 = vmatprep.subr.bf16.mxu0 %v6703
    %6999 = vmatpush2.bf16.msra.mxu0 %v6702
    %7000 = vmatprep.subr.bf16.mxu0 %v6699
    %7001 = vmatpush2.bf16.msra.mxu0 %v6698
    %7002 = vmatprep.subr.bf16.mxu0 %v6695
    %7003 = vmatpush2.bf16.msra.mxu0 %v6694
    %7004 = vmatprep.subr.bf16.mxu0 %v6691
    %7005 = vmatpush2.bf16.msra.mxu0 %v6690
    %7006 = vmatprep.subr.bf16.mxu0 %v6687
    %7007 = vmatpush2.bf16.msra.mxu0 %v6686
    %7008 = vmatprep.subr.bf16.mxu0 %v6683
    %7009 = vmatpush2.bf16.msra.mxu0 %v6682
    %7010 = vmatprep.subr.bf16.mxu0 %v6679
    %7011 = vmatpush2.bf16.msra.mxu0 %v6678
    %7012 = vmatprep.subr.bf16.mxu0 %v6675
    %7013 = vmatpush2.bf16.msra.mxu0 %v6674
    %7014 = vmatprep.mubr.bf16.mxu0 %v6231
    %7015 = vmatmul.mubr.bf16.gmra.mxu0 %v6230
    %v7016 = vpop.f32.mrf.mxu0
    %v7017 = vadd.f32 %v6247, %v7016
    %v7018 = vpop.f32.mrf.mxu0
    %v7019 = vadd.f32 %v6251, %v7018
    %v7020 = vpop.f32.mrf.mxu0
    %v7021 = vadd.f32 %v6247, %v7020
    %v7022 = vpop.f32.mrf.mxu0
    %v7023 = vadd.f32 %v6251, %v7022
    %7024 = vdwg.mxu0
    %7025 = vmatprep.subr.bf16.mxu0 %v6735
    %7026 = vmatpush1.bf16.msra.mxu0 %v6734
    %7027 = vmatprep.subr.bf16.mxu0 %v6731
    %7028 = vmatpush1.bf16.msra.mxu0 %v6730
    %7029 = vmatprep.subr.bf16.mxu0 %v6727
    %7030 = vmatpush1.bf16.msra.mxu0 %v6726
    %7031 = vmatprep.subr.bf16.mxu0 %v6723
    %7032 = vmatpush1.bf16.msra.mxu0 %v6722
    %7033 = vmatprep.subr.bf16.mxu0 %v6719
    %7034 = vmatpush1.bf16.msra.mxu0 %v6718
    %7035 = vmatprep.subr.bf16.mxu0 %v6715
    %7036 = vmatpush1.bf16.msra.mxu0 %v6714
    %7037 = vmatprep.subr.bf16.mxu0 %v6711
    %7038 = vmatpush1.bf16.msra.mxu0 %v6710
    %7039 = vmatprep.subr.bf16.mxu0 %v6707
    %7040 = vmatpush1.bf16.msra.mxu0 %v6706
    %7041 = vmatprep.subr.bf16.mxu0 %v6767
    %7042 = vmatpush2.bf16.msra.mxu0 %v6766
    %7043 = vmatprep.subr.bf16.mxu0 %v6763
    %7044 = vmatpush2.bf16.msra.mxu0 %v6762
    %7045 = vmatprep.subr.bf16.mxu0 %v6759
    %7046 = vmatpush2.bf16.msra.mxu0 %v6758
    %7047 = vmatprep.subr.bf16.mxu0 %v6755
    %7048 = vmatpush2.bf16.msra.mxu0 %v6754
    %7049 = vmatprep.subr.bf16.mxu0 %v6751
    %7050 = vmatpush2.bf16.msra.mxu0 %v6750
    %7051 = vmatprep.subr.bf16.mxu0 %v6747
    %7052 = vmatpush2.bf16.msra.mxu0 %v6746
    %7053 = vmatprep.subr.bf16.mxu0 %v6743
    %7054 = vmatpush2.bf16.msra.mxu0 %v6742
    %7055 = vmatprep.subr.bf16.mxu0 %v6739
    %7056 = vmatpush2.bf16.msra.mxu0 %v6738
    %7057 = vmatprep.mubr.bf16.mxu0 %v6233
    %7058 = vmatmul.mubr.bf16.gmra.mxu0 %v6232
    %v7059 = vpop.f32.mrf.mxu0
    %v7060 = vadd.f32 %v7017, %v7059
    %v7061 = vpop.f32.mrf.mxu0
    %v7062 = vadd.f32 %v7019, %v7061
    %v7063 = vpop.f32.mrf.mxu0
    %v7064 = vadd.f32 %v7021, %v7063
    %v7065 = vpop.f32.mrf.mxu0
    %v7066 = vadd.f32 %v7023, %v7065
    %7067 = vdwg.mxu0
    %7068 = vst [vmem:[#allocation23] sm:$0xff] %v6974
    %7069 = vst [vmem:[#allocation23 + $0x8] sm:$0xff] %v6976
    %7070 = vst [vmem:[#allocation23 + $0x10] sm:$0xff] %v7060
    %7071 = vst [vmem:[#allocation23 + $0x18] sm:$0xff] %v7062
    %7072 = vst [vmem:[#allocation23 + $0x20] sm:$0xff] %v6978
    %7073 = vst [vmem:[#allocation23 + $0x28] sm:$0xff] %v6980
    %7074 = vst [vmem:[#allocation23 + $0x30] sm:$0xff] %v7064
    %7075 = vst [vmem:[#allocation23 + $0x38] sm:$0xff] %v7066
    // Predicated region
    $region98: #{tpu_custom_call.1} parent=1 // pred_check
      _
    $region99: #{tpu_custom_call.1} parent=1 // pred_check_branch
      %7077 = sbr.rel (0) target = $region101
    $region100: #{tpu_custom_call.1} parent=1 // pred_region
      %s7079 = ssub.s32 1024, 1024
      %7080 = vsyncadd [#allocation4], %s7079
      %s7081 = sshll.u32 [#allocation23], 4
      %s7082 = int_to_ptr.vmem [resolvable:$true] %s7081
      %7087 = dma.vmem_to_hbm [thread:$0]  %s7082, 1024, %s12, [#allocation4], 512, 512, 32
    $region101: #{tpu_custom_call.1} parent=1 // pred_fallthru
      _
    // Predicated region
    $region102: #{tpu_custom_call.1} parent=1 // pred_check
      _
    $region103: #{tpu_custom_call.1} parent=1 // pred_check_branch
      %7089 = sbr.rel (0) target = $region105
    $region104: #{tpu_custom_call.1} parent=1 // pred_region
      %7090 = dma.done [#allocation4], 1024
    $region105: #{tpu_custom_call.1} parent=1 // pred_fallthru
      _
    %7091 = vsyncpa [#allocation3], 1
    %7092 = vsyncpa [#allocation10], 1
    %7093 = vsyncpa [#allocation13], 1
    %7094 = vsyncpa [#allocation16], 1
    %7095 = vsyncpa [#allocation19], 1
    %7096 = vsyncpa [#allocation22], 1
    %7097 = vsyncpa [#allocation4], 1
    %7098 = vsyncpa [#allocation5], 1
    %7099 = vsyncpa [#allocation7], 1

</llo_original>
